<compile_context>
chip_gen: v6e
topology: v6e:2x2x1
jax: 0.10.0
libtpu: 0.0.40
codegen_flags: <defaults>
</compile_context>

<pallas_src>
import functools

import jax
import jax.numpy as jnp
from jax.experimental import pallas as pl
from jax.experimental.pallas import tpu as pltpu

NEG_SLOPE = 0.01  # PyTorch nn.LeakyReLU default

LAYER_DIMS = [(320, 32), (32, 32), (32, 32), (32, 32), (32, 32), (32, 512)]
N_MID = 4
HID = 32
IN_DIM = LAYER_DIMS[0][0]
OUT_DIM = LAYER_DIMS[-1][1]

DEFAULT_TILE_B = 2048          # good for v6e/v7x; see VMEM_LIMIT_BYTES for v5e
VMEM_LIMIT_BYTES = 40 << 20    # covers double-buffered TB=2048 tiles everywhere


def _leaky_relu(v):
    # max(v, a*v) == LeakyReLU(v) for 0 < a < 1.
    return jnp.maximum(v, NEG_SLOPE * v)


def _round_up(n, m):
    return ((n + m - 1) // m) * m


def encoder_kernel(x_ref, w1_ref, b1_ref, wm_ref, bm_ref, w6_ref, b6_ref,
                   o_ref):
    """One (TB, 320) -> (TB, 512) batch tile; all 6 layers fused in VMEM."""
    # Downcast input tile to bf16 in-kernel (hidden under DMA; no extra HBM pass).
    x = x_ref[...].astype(jnp.bfloat16)

    # fc1: (TB, 320) bf16 @ (320, 32) bf16 -> f32 accumulate
    h = jnp.dot(x, w1_ref[...], preferred_element_type=jnp.float32)
    h = _leaky_relu(h + b1_ref[...])

    # fc2..fc5: (4, 32, 32) weights, static leading-axis index (plain offset).
    for l in range(N_MID):
        h = jnp.dot(h.astype(jnp.bfloat16), wm_ref[l],
                    preferred_element_type=jnp.float32)
        h = _leaky_relu(h + bm_ref[l])

    # fc6: (TB, 32) bf16 @ (32, 512) bf16 -> f32 accumulate
    h = jnp.dot(h.astype(jnp.bfloat16), w6_ref[...],
                preferred_element_type=jnp.float32)
    h = _leaky_relu(h + b6_ref[...])

    o_ref[...] = h.astype(o_ref.dtype)


def prepare_params(params):
    """One-time packing / bf16 cast of the weights (hoisted out of forward).

    params: list of (W_t (in, out) f32, b (1, out) f32) for fc1..fc6.
    """
    w1, b1 = params[0]
    w6, b6 = params[-1]
    w_mid = jnp.stack([w for (w, _) in params[1:-1]], axis=0)  # (4, 32, 32)
    b_mid = jnp.stack([b for (_, b) in params[1:-1]], axis=0)  # (4, 1, 32)
    return (w1.astype(jnp.bfloat16), b1,
            w_mid.astype(jnp.bfloat16), b_mid,
            w6.astype(jnp.bfloat16), b6)


@functools.partial(jax.jit, static_argnames=("tile_b", "out_dtype"))
def encoder_forward(x, prepared, *, tile_b=DEFAULT_TILE_B,
                    out_dtype=jnp.float32):
    """x: (B, 320) float32. prepared: output of prepare_params()."""
    w1, b1, w_mid, b_mid, w6, b6 = prepared
    B = x.shape[0]
    assert x.shape[1] == IN_DIM

    # Batch tile: multiple of 8 sublanes; partial last block is masked by
    # Pallas, so no wrapper-side pad / slice (no extra HBM passes).
    tb = min(tile_b, _round_up(B, 8))
    grid = (pl.cdiv(B, tb),)

    def const2(shape):
        return pl.BlockSpec(shape, lambda i: (0, 0))

    def const3(shape):
        return pl.BlockSpec(shape, lambda i: (0, 0, 0))

    return pl.pallas_call(
        encoder_kernel,
        out_shape=jax.ShapeDtypeStruct((B, OUT_DIM), out_dtype),
        grid=grid,
        in_specs=[
            pl.BlockSpec((tb, IN_DIM), lambda i: (i, 0)),      # x tile (f32)
            const2(w1.shape), const2(b1.shape),                # fc1 (resident)
            const3(w_mid.shape), const3(b_mid.shape),          # fc2..fc5
            const2(w6.shape), const2(b6.shape),                # fc6
        ],
        out_specs=pl.BlockSpec((tb, OUT_DIM), lambda i: (i, 0)),  # lane-dense 512
        compiler_params=pltpu.CompilerParams(
            dimension_semantics=("parallel",),      # megacore batch split (v7x)
            vmem_limit_bytes=VMEM_LIMIT_BYTES,      # TB=2048 safe on v5e too
        ),
    )(x, w1, b1, w_mid, b_mid, w6, b6)


def init_params(key):
    """Synthetic nn.Linear-style init. Weight pre-transposed to (in, out)."""
    params = []
    for fan_in, fan_out in LAYER_DIMS:
        key, kw, kb = jax.random.split(key, 3)
        bound = 1.0 / jnp.sqrt(fan_in)
        w = jax.random.uniform(kw, (fan_out, fan_in), jnp.float32, -bound, bound)
        b = jax.random.uniform(kb, (fan_out,), jnp.float32, -bound, bound)
        params.append((w.T, b.reshape(1, fan_out)))
    return params


def reference_forward_f32(x, params):
    """Pure-f32 JAX reference of the PyTorch forward."""
    h = x
    for w_t, b in params:
        h = h @ w_t + b
        h = jnp.where(h > 0, h, NEG_SLOPE * h)
    return h


def reference_forward_bf16(x, params):
    """Reference matching the kernel's precision (bf16 operands, f32 accum)."""
    h = x
    for w_t, b in params:
        h = jnp.dot(h.astype(jnp.bfloat16), w_t.astype(jnp.bfloat16),
                    preferred_element_type=jnp.float32) + b
        h = jnp.where(h > 0, h, NEG_SLOPE * h)
    return h


if __name__ == "__main__":
    key = jax.random.PRNGKey(0)
    kx, kx2, kp = jax.random.split(key, 3)
    params = init_params(kp)
    prepared = prepare_params(params)

    # Main check: small batch, tile_b=256 -> 2 full grid steps.
    B = 512
    x = jax.random.normal(kx, (B, IN_DIM), jnp.float32)
    out = jax.block_until_ready(encoder_forward(x, prepared, tile_b=256))
    assert out.shape == (B, OUT_DIM) and out.dtype == jnp.float32

    ref_bf = reference_forward_bf16(x, params)
    assert jnp.allclose(out, ref_bf, atol=1e-3, rtol=1e-3), "mismatch vs bf16 ref"
    ref_f32 = reference_forward_f32(x, params)
    assert jnp.allclose(out, ref_f32, atol=0.1, rtol=0.1), "mismatch vs f32 ref"

    # Partial-last-block check: B=200, tile=128 -> masked writeback, no pad/slice.
    B2 = 200
    x2 = jax.random.normal(kx2, (B2, IN_DIM), jnp.float32)
    out2 = jax.block_until_ready(encoder_forward(x2, prepared, tile_b=128))
    assert out2.shape == (B2, OUT_DIM)
    assert jnp.allclose(out2, reference_forward_bf16(x2, params),
                        atol=1e-3, rtol=1e-3), "mismatch on partial block"

    print("KERNEL_OK")
</pallas_src>

<mosaic_0001>
module attributes {stable_mosaic.version = 11 : i64} {
  func.func @encoder_kernel(%arg0: i32, %arg1: memref<256x320xf32, #tpu.memory_space<vmem>>, %arg2: memref<320x32xbf16, #tpu.memory_space<vmem>>, %arg3: memref<1x32xf32, #tpu.memory_space<vmem>>, %arg4: memref<4x32x32xbf16, #tpu.memory_space<vmem>>, %arg5: memref<4x1x32xf32, #tpu.memory_space<vmem>>, %arg6: memref<32x512xbf16, #tpu.memory_space<vmem>>, %arg7: memref<1x512xf32, #tpu.memory_space<vmem>>, %arg8: memref<256x512xf32, #tpu.memory_space<vmem>>) attributes {dimension_semantics = [#tpu.dimension_semantics<parallel>], iteration_bounds = array<i64: 2>, scalar_prefetch = 0 : i64, scratch_operands = 0 : i64, tpu.core_type = #tpu.core_type<tc>, window_params = [{transform_indices = @transform_0, window_bounds = array<i64: 256, 320>}, {pipeline_mode = #tpu.pipeline_mode<synchronous>, transform_indices = @transform_1, window_bounds = array<i64: 320, 32>}, {pipeline_mode = #tpu.pipeline_mode<synchronous>, transform_indices = @transform_2, window_bounds = array<i64: 1, 32>}, {pipeline_mode = #tpu.pipeline_mode<synchronous>, transform_indices = @transform_3, window_bounds = array<i64: 4, 32, 32>}, {pipeline_mode = #tpu.pipeline_mode<synchronous>, transform_indices = @transform_4, window_bounds = array<i64: 4, 1, 32>}, {pipeline_mode = #tpu.pipeline_mode<synchronous>, transform_indices = @transform_5, window_bounds = array<i64: 32, 512>}, {pipeline_mode = #tpu.pipeline_mode<synchronous>, transform_indices = @transform_6, window_bounds = array<i64: 1, 512>}, {transform_indices = @transform_7, window_bounds = array<i64: 256, 512>}]} {
    %c0 = arith.constant 0 : index
    %c0_0 = arith.constant 0 : index
    %0 = vector.load %arg1[%c0, %c0_0] : memref<256x320xf32, #tpu.memory_space<vmem>>, vector<256x320xf32>
    %1 = arith.truncf %0 : vector<256x320xf32> to vector<256x320xbf16>
    %c0_1 = arith.constant 0 : index
    %c0_2 = arith.constant 0 : index
    %2 = vector.load %arg2[%c0_1, %c0_2] : memref<320x32xbf16, #tpu.memory_space<vmem>>, vector<320x32xbf16>
    %cst = arith.constant dense<0.000000e+00> : vector<256x32xf32>
    %3 = tpu.matmul %1, %2, %cst {dimension_numbers = #tpu.dot_dimension_numbers<[1], [0], [0], [1], [0, 0, 1, 1], [], []>} : vector<256x320xbf16>, vector<320x32xbf16>, vector<256x32xf32> -> vector<256x32xf32>
    %c0_3 = arith.constant 0 : index
    %c0_4 = arith.constant 0 : index
    %4 = vector.load %arg3[%c0_3, %c0_4] : memref<1x32xf32, #tpu.memory_space<vmem>>, vector<1x32xf32>
    %5 = vector.broadcast %4 : vector<1x32xf32> to vector<256x32xf32>
    %6 = arith.addf %3, %5 : vector<256x32xf32>
    %cst_5 = arith.constant 0.00999999977 : f32
    %7 = vector.broadcast %cst_5 : f32 to vector<256x32xf32>
    %8 = arith.mulf %7, %6 : vector<256x32xf32>
    %9 = arith.maximumf %6, %8 : vector<256x32xf32>
    %10 = arith.truncf %9 : vector<256x32xf32> to vector<256x32xbf16>
    %c0_6 = arith.constant 0 : index
    %c0_7 = arith.constant 0 : index
    %c0_8 = arith.constant 0 : index
    %11 = vector.load %arg4[%c0_6, %c0_7, %c0_8] : memref<4x32x32xbf16, #tpu.memory_space<vmem>>, vector<1x32x32xbf16>
    %12 = vector.shape_cast %11 : vector<1x32x32xbf16> to vector<32x32xbf16>
    %cst_9 = arith.constant dense<0.000000e+00> : vector<256x32xf32>
    %13 = tpu.matmul %10, %12, %cst_9 {dimension_numbers = #tpu.dot_dimension_numbers<[1], [0], [0], [1], [0, 0, 1, 1], [], []>} : vector<256x32xbf16>, vector<32x32xbf16>, vector<256x32xf32> -> vector<256x32xf32>
    %c0_10 = arith.constant 0 : index
    %c0_11 = arith.constant 0 : index
    %c0_12 = arith.constant 0 : index
    %14 = vector.load %arg5[%c0_10, %c0_11, %c0_12] : memref<4x1x32xf32, #tpu.memory_space<vmem>>, vector<1x1x32xf32>
    %15 = vector.shape_cast %14 : vector<1x1x32xf32> to vector<1x32xf32>
    %16 = vector.broadcast %15 : vector<1x32xf32> to vector<256x32xf32>
    %17 = arith.addf %13, %16 : vector<256x32xf32>
    %cst_13 = arith.constant 0.00999999977 : f32
    %18 = vector.broadcast %cst_13 : f32 to vector<256x32xf32>
    %19 = arith.mulf %18, %17 : vector<256x32xf32>
    %20 = arith.maximumf %17, %19 : vector<256x32xf32>
    %21 = arith.truncf %20 : vector<256x32xf32> to vector<256x32xbf16>
    %c1 = arith.constant 1 : index
    %c0_14 = arith.constant 0 : index
    %c0_15 = arith.constant 0 : index
    %22 = vector.load %arg4[%c1, %c0_14, %c0_15] : memref<4x32x32xbf16, #tpu.memory_space<vmem>>, vector<1x32x32xbf16>
    %23 = vector.shape_cast %22 : vector<1x32x32xbf16> to vector<32x32xbf16>
    %cst_16 = arith.constant dense<0.000000e+00> : vector<256x32xf32>
    %24 = tpu.matmul %21, %23, %cst_16 {dimension_numbers = #tpu.dot_dimension_numbers<[1], [0], [0], [1], [0, 0, 1, 1], [], []>} : vector<256x32xbf16>, vector<32x32xbf16>, vector<256x32xf32> -> vector<256x32xf32>
    %c1_17 = arith.constant 1 : index
    %c0_18 = arith.constant 0 : index
    %c0_19 = arith.constant 0 : index
    %25 = vector.load %arg5[%c1_17, %c0_18, %c0_19] : memref<4x1x32xf32, #tpu.memory_space<vmem>>, vector<1x1x32xf32>
    %26 = vector.shape_cast %25 : vector<1x1x32xf32> to vector<1x32xf32>
    %27 = vector.broadcast %26 : vector<1x32xf32> to vector<256x32xf32>
    %28 = arith.addf %24, %27 : vector<256x32xf32>
    %cst_20 = arith.constant 0.00999999977 : f32
    %29 = vector.broadcast %cst_20 : f32 to vector<256x32xf32>
    %30 = arith.mulf %29, %28 : vector<256x32xf32>
    %31 = arith.maximumf %28, %30 : vector<256x32xf32>
    %32 = arith.truncf %31 : vector<256x32xf32> to vector<256x32xbf16>
    %c2 = arith.constant 2 : index
    %c0_21 = arith.constant 0 : index
    %c0_22 = arith.constant 0 : index
    %33 = vector.load %arg4[%c2, %c0_21, %c0_22] : memref<4x32x32xbf16, #tpu.memory_space<vmem>>, vector<1x32x32xbf16>
    %34 = vector.shape_cast %33 : vector<1x32x32xbf16> to vector<32x32xbf16>
    %cst_23 = arith.constant dense<0.000000e+00> : vector<256x32xf32>
    %35 = tpu.matmul %32, %34, %cst_23 {dimension_numbers = #tpu.dot_dimension_numbers<[1], [0], [0], [1], [0, 0, 1, 1], [], []>} : vector<256x32xbf16>, vector<32x32xbf16>, vector<256x32xf32> -> vector<256x32xf32>
    %c2_24 = arith.constant 2 : index
    %c0_25 = arith.constant 0 : index
    %c0_26 = arith.constant 0 : index
    %36 = vector.load %arg5[%c2_24, %c0_25, %c0_26] : memref<4x1x32xf32, #tpu.memory_space<vmem>>, vector<1x1x32xf32>
    %37 = vector.shape_cast %36 : vector<1x1x32xf32> to vector<1x32xf32>
    %38 = vector.broadcast %37 : vector<1x32xf32> to vector<256x32xf32>
    %39 = arith.addf %35, %38 : vector<256x32xf32>
    %cst_27 = arith.constant 0.00999999977 : f32
    %40 = vector.broadcast %cst_27 : f32 to vector<256x32xf32>
    %41 = arith.mulf %40, %39 : vector<256x32xf32>
    %42 = arith.maximumf %39, %41 : vector<256x32xf32>
    %43 = arith.truncf %42 : vector<256x32xf32> to vector<256x32xbf16>
    %c3 = arith.constant 3 : index
    %c0_28 = arith.constant 0 : index
    %c0_29 = arith.constant 0 : index
    %44 = vector.load %arg4[%c3, %c0_28, %c0_29] : memref<4x32x32xbf16, #tpu.memory_space<vmem>>, vector<1x32x32xbf16>
    %45 = vector.shape_cast %44 : vector<1x32x32xbf16> to vector<32x32xbf16>
    %cst_30 = arith.constant dense<0.000000e+00> : vector<256x32xf32>
    %46 = tpu.matmul %43, %45, %cst_30 {dimension_numbers = #tpu.dot_dimension_numbers<[1], [0], [0], [1], [0, 0, 1, 1], [], []>} : vector<256x32xbf16>, vector<32x32xbf16>, vector<256x32xf32> -> vector<256x32xf32>
    %c3_31 = arith.constant 3 : index
    %c0_32 = arith.constant 0 : index
    %c0_33 = arith.constant 0 : index
    %47 = vector.load %arg5[%c3_31, %c0_32, %c0_33] : memref<4x1x32xf32, #tpu.memory_space<vmem>>, vector<1x1x32xf32>
    %48 = vector.shape_cast %47 : vector<1x1x32xf32> to vector<1x32xf32>
    %49 = vector.broadcast %48 : vector<1x32xf32> to vector<256x32xf32>
    %50 = arith.addf %46, %49 : vector<256x32xf32>
    %cst_34 = arith.constant 0.00999999977 : f32
    %51 = vector.broadcast %cst_34 : f32 to vector<256x32xf32>
    %52 = arith.mulf %51, %50 : vector<256x32xf32>
    %53 = arith.maximumf %50, %52 : vector<256x32xf32>
    %54 = arith.truncf %53 : vector<256x32xf32> to vector<256x32xbf16>
    %c0_35 = arith.constant 0 : index
    %c0_36 = arith.constant 0 : index
    %55 = vector.load %arg6[%c0_35, %c0_36] : memref<32x512xbf16, #tpu.memory_space<vmem>>, vector<32x512xbf16>
    %cst_37 = arith.constant dense<0.000000e+00> : vector<256x512xf32>
    %56 = tpu.matmul %54, %55, %cst_37 {dimension_numbers = #tpu.dot_dimension_numbers<[1], [0], [0], [1], [0, 0, 1, 1], [], []>} : vector<256x32xbf16>, vector<32x512xbf16>, vector<256x512xf32> -> vector<256x512xf32>
    %c0_38 = arith.constant 0 : index
    %c0_39 = arith.constant 0 : index
    %57 = vector.load %arg7[%c0_38, %c0_39] : memref<1x512xf32, #tpu.memory_space<vmem>>, vector<1x512xf32>
    %58 = vector.broadcast %57 : vector<1x512xf32> to vector<256x512xf32>
    %59 = arith.addf %56, %58 : vector<256x512xf32>
    %cst_40 = arith.constant 0.00999999977 : f32
    %60 = vector.broadcast %cst_40 : f32 to vector<256x512xf32>
    %61 = arith.mulf %60, %59 : vector<256x512xf32>
    %62 = arith.maximumf %59, %61 : vector<256x512xf32>
    %c0_41 = arith.constant 0 : index
    %c0_42 = arith.constant 0 : index
    %63 = vector.load %arg8[%c0_41, %c0_42] : memref<256x512xf32, #tpu.memory_space<vmem>>, vector<256x512xf32>
    tpu.vector_store %arg8[%c0_41, %c0_42], %62 {strides = array<i32>} : memref<256x512xf32, #tpu.memory_space<vmem>>, vector<256x512xf32>,
    return
  }
  func.func @transform_0(%arg0: i32) -> (i32, i32) {
    %c0_i32 = arith.constant 0 : i32
    %c0_i32_0 = arith.constant 0 : i32
    return %arg0, %c0_i32 : i32, i32
  }
  func.func @transform_1(%arg0: i32) -> (i32, i32) {
    %c0_i32 = arith.constant 0 : i32
    %c0_i32_0 = arith.constant 0 : i32
    %c0_i32_1 = arith.constant 0 : i32
    return %c0_i32, %c0_i32_0 : i32, i32
  }
  func.func @transform_2(%arg0: i32) -> (i32, i32) {
    %c0_i32 = arith.constant 0 : i32
    %c0_i32_0 = arith.constant 0 : i32
    %c0_i32_1 = arith.constant 0 : i32
    return %c0_i32, %c0_i32_0 : i32, i32
  }
  func.func @transform_3(%arg0: i32) -> (i32, i32, i32) {
    %c0_i32 = arith.constant 0 : i32
    %c0_i32_0 = arith.constant 0 : i32
    %c0_i32_1 = arith.constant 0 : i32
    %c0_i32_2 = arith.constant 0 : i32
    return %c0_i32, %c0_i32_0, %c0_i32_1 : i32, i32, i32
  }
  func.func @transform_4(%arg0: i32) -> (i32, i32, i32) {
    %c0_i32 = arith.constant 0 : i32
    %c0_i32_0 = arith.constant 0 : i32
    %c0_i32_1 = arith.constant 0 : i32
    %c0_i32_2 = arith.constant 0 : i32
    return %c0_i32, %c0_i32_0, %c0_i32_1 : i32, i32, i32
  }
  func.func @transform_5(%arg0: i32) -> (i32, i32) {
    %c0_i32 = arith.constant 0 : i32
    %c0_i32_0 = arith.constant 0 : i32
    %c0_i32_1 = arith.constant 0 : i32
    return %c0_i32, %c0_i32_0 : i32, i32
  }
  func.func @transform_6(%arg0: i32) -> (i32, i32) {
    %c0_i32 = arith.constant 0 : i32
    %c0_i32_0 = arith.constant 0 : i32
    %c0_i32_1 = arith.constant 0 : i32
    return %c0_i32, %c0_i32_0 : i32, i32
  }
  func.func @transform_7(%arg0: i32) -> (i32, i32) {
    %c0_i32 = arith.constant 0 : i32
    %c0_i32_0 = arith.constant 0 : i32
    return %arg0, %c0_i32 : i32, i32
  }
}

</mosaic_0001>

<llo_original>
// kernel: encoder_forward.1
$region0: #{encoder_forward.1}
  #allocation0 [shape = 'u32[]', space=smem, size = 0x4, offset = 0x4, fixed_abs, tag = 'smem constant byte address 0x4 - core index']
  #allocation1 [shape = 'u32[144,128]{1,0:T(1,128)}', space=vmem, size = 0x12000, scoped, tag = 'internal scratch']
  %s0 = inlined_call_operand.vmem [shape: f32[512,320], index: 0, kind: input, shape index: {}]
  %s1 = inlined_call_operand.vmem [shape: bf16[320,32], index: 1, kind: input, shape index: {}]
  %s2 = inlined_call_operand.vmem [shape: f32[1,32], index: 2, kind: input, shape index: {}]
  %s3 = inlined_call_operand.vmem [shape: bf16[4,32,32], index: 3, kind: input, shape index: {}]
  %s4 = inlined_call_operand.vmem [shape: f32[4,1,32], index: 4, kind: input, shape index: {}]
  %s5 = inlined_call_operand.vmem [shape: bf16[32,512], index: 5, kind: input, shape index: {}]
  %s6 = inlined_call_operand.vmem [shape: f32[1,512], index: 6, kind: input, shape index: {}]
  %s7 = inlined_call_operand.hbm [shape: f32[512,512], index: 7, kind: output, shape index: {}]
  %s8 = sld [smem:[#allocation0]]
  $region61: #{encoder_forward.1} parent=0
    _
  %s10 = ssub.s32 1, %s8
  %s11 = scalar_select 0, %s10, %s8
  $region1: #{encoder_forward.1} parent=0
    #allocation2 [shape = 'u8[1048576]{0}', space=vmem, size = 0x100000, scoped, tag = 'output window, operand 0']
    #allocation3 [shape = 's32[2]{0}', space=sflag, size = 0x8, scoped, tag = 'scoped memory for encoder_forward.1']
    %12 = vsyncpa [#allocation3], 0
    %s13 = scalar_lea.sflag [#allocation3], 1
    %14 = vsyncpa %s13, 0
    loop: start=0, step=1, limit=4
    $region2: #{encoder_forward.1} parent=1 // loop_pre_header
      _
    $region3: #{encoder_forward.1} parent=1 // loop_header
      %s16 = sphi 0, %s20
      %p17 = scmp.ge.s32.totalorder %s16, 4
      %s26 = sphi 0, %s28
      %s29 = sphi 0, %s26
      %s30 = sphi 0, %s29
      %s46 = sphi 0, %s30
      %s50 = sphi 0, %s50
      %s52 = sphi 0, %s50
      %s53 = sphi 0, %s52
      %s67 = sphi 0, %s53
      %s71 = sphi 0, %s71
      %s73 = sphi 0, %s71
      %s74 = sphi 0, %s73
      %s88 = sphi 0, %s74
      %s92 = sphi 0, %s92
      %s94 = sphi 0, %s92
      %s95 = sphi 0, %s94
      %s109 = sphi 0, %s95
      %s113 = sphi 0, %s113
      %s115 = sphi 0, %s113
      %s116 = sphi 0, %s115
      %s130 = sphi 0, %s116
      %s134 = sphi 0, %s134
      %s136 = sphi 0, %s134
      %s137 = sphi 0, %s136
      %s151 = sphi 0, %s137
      %s155 = sphi 0, %s155
      %s157 = sphi 0, %s155
      %s158 = sphi 0, %s157
      %s172 = sphi 0, %s158
      %s178 = sphi 0, %s180
      %s181 = sphi 0, %s178
      %s182 = sphi 0, %s181
      %s198 = sphi 0, %s182
    $region4: #{encoder_forward.1} parent=1 // loop_header_branch
      %19 = sbr.rel (%p17) target = $region8
    $region5: #{encoder_forward.1} parent=1 // loop_body
      %s21 = ssub.s32 %s16, 1
      %s22 = ssub.s32 %s16, 2
      %s23 = sadd.s32 %s16, 1
      %s24 = ssub.s32 %s16, %s23
      %p25 = scmp.eq.s32.totalorder %s24, 0
      %s27 = sadd.s32 %s26, 1
      %s28 = scalar_select %p25, %s26, %s27
      %p31 = pneg %p25
      %p32 = scmp.eq.s32.totalorder %s16, 1
      %p33 = por %p31, %p32
      %p34 = scmp.ne.s32.totalorder %s26, %s29
      %p35 = scmp.eq.s32.totalorder %s16, 0
      %p36 = por %p34, %p35
      %p37 = scmp.ne.s32.totalorder %s26, %s29
      %p38 = scmp.eq.s32.totalorder %s21, 1
      %p39 = por %p37, %p38
      %p40 = scmp.ne.s32.totalorder %s29, %s30
      %p41 = scmp.eq.s32.totalorder %s21, 0
      %p42 = por %p40, %p41
      %p43 = scmp.ne.s32.totalorder %s29, %s30
      %p44 = scmp.eq.s32.totalorder %s22, 1
      %p45 = por %p43, %p44
      %p47 = scmp.ne.s32.totalorder %s30, %s46
      %p48 = scmp.eq.s32.totalorder %s22, 0
      %p49 = por %p47, %p48
      %s51 = sadd.s32 %s50, 1
      %p54 = scmp.eq.s32.totalorder %s16, 1
      %p55 = scmp.ne.s32.totalorder %s50, %s52
      %p56 = scmp.eq.s32.totalorder %s16, 0
      %p57 = por %p55, %p56
      %p58 = scmp.ne.s32.totalorder %s50, %s52
      %p59 = scmp.eq.s32.totalorder %s21, 1
      %p60 = por %p58, %p59
      %p61 = scmp.ne.s32.totalorder %s52, %s53
      %p62 = scmp.eq.s32.totalorder %s21, 0
      %p63 = por %p61, %p62
      %p64 = scmp.ne.s32.totalorder %s52, %s53
      %p65 = scmp.eq.s32.totalorder %s22, 1
      %p66 = por %p64, %p65
      %p68 = scmp.ne.s32.totalorder %s53, %s67
      %p69 = scmp.eq.s32.totalorder %s22, 0
      %p70 = por %p68, %p69
      %s72 = sadd.s32 %s71, 1
      %p75 = scmp.eq.s32.totalorder %s16, 1
      %p76 = scmp.ne.s32.totalorder %s71, %s73
      %p77 = scmp.eq.s32.totalorder %s16, 0
      %p78 = por %p76, %p77
      %p79 = scmp.ne.s32.totalorder %s71, %s73
      %p80 = scmp.eq.s32.totalorder %s21, 1
      %p81 = por %p79, %p80
      %p82 = scmp.ne.s32.totalorder %s73, %s74
      %p83 = scmp.eq.s32.totalorder %s21, 0
      %p84 = por %p82, %p83
      %p85 = scmp.ne.s32.totalorder %s73, %s74
      %p86 = scmp.eq.s32.totalorder %s22, 1
      %p87 = por %p85, %p86
      %p89 = scmp.ne.s32.totalorder %s74, %s88
      %p90 = scmp.eq.s32.totalorder %s22, 0
      %p91 = por %p89, %p90
      %s93 = sadd.s32 %s92, 1
      %p96 = scmp.eq.s32.totalorder %s16, 1
      %p97 = scmp.ne.s32.totalorder %s92, %s94
      %p98 = scmp.eq.s32.totalorder %s16, 0
      %p99 = por %p97, %p98
      %p100 = scmp.ne.s32.totalorder %s92, %s94
      %p101 = scmp.eq.s32.totalorder %s21, 1
      %p102 = por %p100, %p101
      %p103 = scmp.ne.s32.totalorder %s94, %s95
      %p104 = scmp.eq.s32.totalorder %s21, 0
      %p105 = por %p103, %p104
      %p106 = scmp.ne.s32.totalorder %s94, %s95
      %p107 = scmp.eq.s32.totalorder %s22, 1
      %p108 = por %p106, %p107
      %p110 = scmp.ne.s32.totalorder %s95, %s109
      %p111 = scmp.eq.s32.totalorder %s22, 0
      %p112 = por %p110, %p111
      %s114 = sadd.s32 %s113, 1
      %p117 = scmp.eq.s32.totalorder %s16, 1
      %p118 = scmp.ne.s32.totalorder %s113, %s115
      %p119 = scmp.eq.s32.totalorder %s16, 0
      %p120 = por %p118, %p119
      %p121 = scmp.ne.s32.totalorder %s113, %s115
      %p122 = scmp.eq.s32.totalorder %s21, 1
      %p123 = por %p121, %p122
      %p124 = scmp.ne.s32.totalorder %s115, %s116
      %p125 = scmp.eq.s32.totalorder %s21, 0
      %p126 = por %p124, %p125
      %p127 = scmp.ne.s32.totalorder %s115, %s116
      %p128 = scmp.eq.s32.totalorder %s22, 1
      %p129 = por %p127, %p128
      %p131 = scmp.ne.s32.totalorder %s116, %s130
      %p132 = scmp.eq.s32.totalorder %s22, 0
      %p133 = por %p131, %p132
      %s135 = sadd.s32 %s134, 1
      %p138 = scmp.eq.s32.totalorder %s16, 1
      %p139 = scmp.ne.s32.totalorder %s134, %s136
      %p140 = scmp.eq.s32.totalorder %s16, 0
      %p141 = por %p139, %p140
      %p142 = scmp.ne.s32.totalorder %s134, %s136
      %p143 = scmp.eq.s32.totalorder %s21, 1
      %p144 = por %p142, %p143
      %p145 = scmp.ne.s32.totalorder %s136, %s137
      %p146 = scmp.eq.s32.totalorder %s21, 0
      %p147 = por %p145, %p146
      %p148 = scmp.ne.s32.totalorder %s136, %s137
      %p149 = scmp.eq.s32.totalorder %s22, 1
      %p150 = por %p148, %p149
      %p152 = scmp.ne.s32.totalorder %s137, %s151
      %p153 = scmp.eq.s32.totalorder %s22, 0
      %p154 = por %p152, %p153
      %s156 = sadd.s32 %s155, 1
      %p159 = scmp.eq.s32.totalorder %s16, 1
      %p160 = scmp.ne.s32.totalorder %s155, %s157
      %p161 = scmp.eq.s32.totalorder %s16, 0
      %p162 = por %p160, %p161
      %p163 = scmp.ne.s32.totalorder %s155, %s157
      %p164 = scmp.eq.s32.totalorder %s21, 1
      %p165 = por %p163, %p164
      %p166 = scmp.ne.s32.totalorder %s157, %s158
      %p167 = scmp.eq.s32.totalorder %s21, 0
      %p168 = por %p166, %p167
      %p169 = scmp.ne.s32.totalorder %s157, %s158
      %p170 = scmp.eq.s32.totalorder %s22, 1
      %p171 = por %p169, %p170
      %p173 = scmp.ne.s32.totalorder %s158, %s172
      %p174 = scmp.eq.s32.totalorder %s22, 0
      %p175 = por %p173, %p174
      %s176 = ssub.s32 %s16, %s23
      %p177 = scmp.eq.s32.totalorder %s176, 0
      %s179 = sadd.s32 %s178, 1
      %s180 = scalar_select %p177, %s178, %s179
      %p183 = pneg %p177
      %p184 = scmp.eq.s32.totalorder %s16, 1
      %p185 = por %p183, %p184
      %p186 = scmp.ne.s32.totalorder %s178, %s181
      %p187 = scmp.eq.s32.totalorder %s16, 0
      %p188 = por %p186, %p187
      %p189 = scmp.ne.s32.totalorder %s178, %s181
      %p190 = scmp.eq.s32.totalorder %s21, 1
      %p191 = por %p189, %p190
      %p192 = scmp.ne.s32.totalorder %s181, %s182
      %p193 = scmp.eq.s32.totalorder %s21, 0
      %p194 = por %p192, %p193
      %p195 = scmp.ne.s32.totalorder %s181, %s182
      %p196 = scmp.eq.s32.totalorder %s22, 1
      %p197 = por %p195, %p196
      %p199 = scmp.ne.s32.totalorder %s182, %s198
      %p200 = scmp.eq.s32.totalorder %s22, 0
      %p201 = por %p199, %p200
      %p202 = scmp.le.s32.totalorder 1, %s16
      %p203 = scmp.lt.s32.totalorder %s16, 3
      %p204 = pnand %p202, %p203
      %p205 = pneg %p204
      // Predicated region
      $region9: #{encoder_forward.1} parent=5 // pred_check
        _
      $region10: #{encoder_forward.1} parent=5 // pred_check_branch
        %207 = sbr.rel (%p204) target = $region12
      $region11: #{encoder_forward.1} parent=5 // pred_region
        %s208 = ssub.s32 %s16, 1
        // Predicated region
        $region13: #{encoder_forward.1} parent=11 // pred_check
          %p209 = pneg %p63
        $region14: #{encoder_forward.1} parent=11 // pred_check_branch
          %211 = sbr.rel (%p209) target = $region16
        $region15: #{encoder_forward.1} parent=11 // pred_region
          _
        $region16: #{encoder_forward.1} parent=11 // pred_fallthru
          _
        // Predicated region
        $region17: #{encoder_forward.1} parent=11 // pred_check
          %p212 = pneg %p84
        $region18: #{encoder_forward.1} parent=11 // pred_check_branch
          %214 = sbr.rel (%p212) target = $region20
        $region19: #{encoder_forward.1} parent=11 // pred_region
          _
        $region20: #{encoder_forward.1} parent=11 // pred_fallthru
          _
        // Predicated region
        $region21: #{encoder_forward.1} parent=11 // pred_check
          %p215 = pneg %p105
        $region22: #{encoder_forward.1} parent=11 // pred_check_branch
          %217 = sbr.rel (%p215) target = $region24
        $region23: #{encoder_forward.1} parent=11 // pred_region
          _
        $region24: #{encoder_forward.1} parent=11 // pred_fallthru
          _
        // Predicated region
        $region25: #{encoder_forward.1} parent=11 // pred_check
          %p218 = pneg %p126
        $region26: #{encoder_forward.1} parent=11 // pred_check_branch
          %220 = sbr.rel (%p218) target = $region28
        $region27: #{encoder_forward.1} parent=11 // pred_region
          _
        $region28: #{encoder_forward.1} parent=11 // pred_fallthru
          _
        // Predicated region
        $region29: #{encoder_forward.1} parent=11 // pred_check
          %p221 = pneg %p147
        $region30: #{encoder_forward.1} parent=11 // pred_check_branch
          %223 = sbr.rel (%p221) target = $region32
        $region31: #{encoder_forward.1} parent=11 // pred_region
          _
        $region32: #{encoder_forward.1} parent=11 // pred_fallthru
          _
        // Predicated region
        $region33: #{encoder_forward.1} parent=11 // pred_check
          %p224 = pneg %p168
        $region34: #{encoder_forward.1} parent=11 // pred_check_branch
          %226 = sbr.rel (%p224) target = $region36
        $region35: #{encoder_forward.1} parent=11 // pred_region
          _
        $region36: #{encoder_forward.1} parent=11 // pred_fallthru
          _
      $region12: #{encoder_forward.1} parent=5 // pred_fallthru
        _
      %p227 = scmp.lt.s32.totalorder %s16, 2
      // Predicated region
      $region37: #{encoder_forward.1} parent=5 // pred_check
        %p228 = pneg %p227
      $region38: #{encoder_forward.1} parent=5 // pred_check_branch
        %230 = sbr.rel (%p228) target = $region40
      $region39: #{encoder_forward.1} parent=5 // pred_region
        // Predicated region
        $region41: #{encoder_forward.1} parent=39 // pred_check
          %p231 = pneg %p36
        $region42: #{encoder_forward.1} parent=39 // pred_check_branch
          %233 = sbr.rel (%p231) target = $region44
        $region43: #{encoder_forward.1} parent=39 // pred_region
          %s234 = smul.u32 32, %s16
          %p235 = scmp.lt.s32.totalorder %s234, 63
          %s236 = scalar_select %p235, %s234, 63
          %s237 = smul.addr %s236, 3
          %s238 = smul.addr %s237, 8
          %s239 = scalar_lea.vmem %s0, %s238
          %s240 = smul.u32 32, %s16
        $region44: #{encoder_forward.1} parent=39 // pred_fallthru
          _
      $region40: #{encoder_forward.1} parent=5 // pred_fallthru
        _
      %p241 = scmp.le.s32.totalorder 1, %s16
      %p242 = scmp.lt.s32.totalorder %s16, 3
      %p243 = pnand %p241, %p242
      %p244 = pneg %p243
      // Predicated region
      $region45: #{encoder_forward.1} parent=5 // pred_check
        _
      $region46: #{encoder_forward.1} parent=5 // pred_check_branch
        %246 = sbr.rel (%p243) target = $region48
      $region47: #{encoder_forward.1} parent=5 // pred_region
        %s247 = ssub.s32 %s16, 1
        %s248 = smul.u32 32, %s21
        %p249 = scmp.lt.s32.totalorder %s248, 63
        %s250 = scalar_select %p249, %s248, 63
        %s251 = smul.addr %s250, 3
        %s252 = smul.addr %s251, 8
        %s253 = scalar_lea.vmem %s0, %s252
        %p254 = pneg %p42
        %p255 = pneg %p39
        %p256 = pneg %p63
        %p257 = pneg %p60
        %p258 = pneg %p84
        %p259 = pneg %p81
        %p260 = pneg %p105
        %p261 = pneg %p102
        %p262 = pneg %p126
        %p263 = pneg %p123
        %p264 = pneg %p147
        %p265 = pneg %p144
        %p266 = pneg %p168
        %p267 = pneg %p165
        %p268 = pneg %p194
        %p269 = pneg %p191
        %s270 = sand.u32 %s181, 1
        %s271 = scalar_lea.sflag [#allocation3], %s270
        %s272 = sand.u32 %s181, 1
        %s273 = smul.addr %s272, 1024
        %s274 = scalar_lea.vmem [#allocation2], %s273
        %s275 = smul.u32 32, %s21
        %p276 = scmp.lt.s32.totalorder %s275, 63
        %s277 = scalar_select %p276, %s275, 63
        %s278 = smul.addr %s277, 3
        %s279 = smul.addr %s278, 8
        %s280 = scalar_lea.vmem %s0, %s279
        %s281 = smul.u32 32, %s21
        %s282 = smul.u32 32, %s21
        %v284 = vld [vmem:[%s280] sm:$0xff]
        %v285 = vld [vmem:[%s280 + $0x8] sm:$0xff]
        %v286 = vld [vmem:[%s280 + $0x10] sm:$0xff]
        %v287 = vld [vmem:[%s280 + $0x18] sm:$0xff]
        %v288 = vld [vmem:[%s280 + $0x20] sm:$0xff]
        %v289 = vld [vmem:[%s280 + $0x28] sm:$0xff]
        %v290 = vld [vmem:[%s280 + $0x30] sm:$0xff]
        %v291 = vld [vmem:[%s280 + $0x38] sm:$0xff]
        %v292 = vld [vmem:[%s280 + $0x40] sm:$0xff]
        %v293 = vld [vmem:[%s280 + $0x48] sm:$0xff]
        %v294 = vld [vmem:[%s280 + $0x50] sm:$0xff]
        %v295 = vld [vmem:[%s280 + $0x58] sm:$0xff]
        %v296 = vld [vmem:[%s280 + $0x60] sm:$0xff]
        %v297 = vld [vmem:[%s280 + $0x68] sm:$0xff]
        %v298 = vld [vmem:[%s280 + $0x70] sm:$0xff]
        %v299 = vld [vmem:[%s280 + $0x78] sm:$0xff]
        %v300 = vld [vmem:[%s280 + $0x80] sm:$0xff]
        %v301 = vld [vmem:[%s280 + $0x88] sm:$0xff]
        %v302 = vld [vmem:[%s280 + $0x90] sm:$0xff]
        %v303 = vld [vmem:[%s280 + $0x98] sm:$0xff]
        %v304 = vld [vmem:[%s280 + $0xa0] sm:$0xff]
        %v305 = vld [vmem:[%s280 + $0xa8] sm:$0xff]
        %v306 = vld [vmem:[%s280 + $0xb0] sm:$0xff]
        %v307 = vld [vmem:[%s280 + $0xb8] sm:$0xff]
        %v308 = vld [vmem:[%s280 + $0xc0] sm:$0xff]
        %v309 = vld [vmem:[%s280 + $0xc8] sm:$0xff]
        %v310 = vld [vmem:[%s280 + $0xd0] sm:$0xff]
        %v311 = vld [vmem:[%s280 + $0xd8] sm:$0xff]
        %v312 = vld [vmem:[%s280 + $0xe0] sm:$0xff]
        %v313 = vld [vmem:[%s280 + $0xe8] sm:$0xff]
        %v314 = vld [vmem:[%s280 + $0xf0] sm:$0xff]
        %v315 = vld [vmem:[%s280 + $0xf8] sm:$0xff]
        %v316 = vld [vmem:[%s280 + $0x100] sm:$0xff]
        %v317 = vld [vmem:[%s280 + $0x108] sm:$0xff]
        %v318 = vld [vmem:[%s280 + $0x110] sm:$0xff]
        %v319 = vld [vmem:[%s280 + $0x118] sm:$0xff]
        %v320 = vld [vmem:[%s280 + $0x120] sm:$0xff]
        %v321 = vld [vmem:[%s280 + $0x128] sm:$0xff]
        %v322 = vld [vmem:[%s280 + $0x130] sm:$0xff]
        %v323 = vld [vmem:[%s280 + $0x138] sm:$0xff]
        %v324 = vld [vmem:[%s280 + $0x140] sm:$0xff]
        %v325 = vld [vmem:[%s280 + $0x148] sm:$0xff]
        %v326 = vld [vmem:[%s280 + $0x150] sm:$0xff]
        %v327 = vld [vmem:[%s280 + $0x158] sm:$0xff]
        %v328 = vld [vmem:[%s280 + $0x160] sm:$0xff]
        %v329 = vld [vmem:[%s280 + $0x168] sm:$0xff]
        %v330 = vld [vmem:[%s280 + $0x170] sm:$0xff]
        %v331 = vld [vmem:[%s280 + $0x178] sm:$0xff]
        %v332 = vld [vmem:[%s280 + $0x180] sm:$0xff]
        %v333 = vld [vmem:[%s280 + $0x188] sm:$0xff]
        %v334 = vld [vmem:[%s280 + $0x190] sm:$0xff]
        %v335 = vld [vmem:[%s280 + $0x198] sm:$0xff]
        %v336 = vld [vmem:[%s280 + $0x1a0] sm:$0xff]
        %v337 = vld [vmem:[%s280 + $0x1a8] sm:$0xff]
        %v338 = vld [vmem:[%s280 + $0x1b0] sm:$0xff]
        %v339 = vld [vmem:[%s280 + $0x1b8] sm:$0xff]
        %v340 = vld [vmem:[%s280 + $0x1c0] sm:$0xff]
        %v341 = vld [vmem:[%s280 + $0x1c8] sm:$0xff]
        %v342 = vld [vmem:[%s280 + $0x1d0] sm:$0xff]
        %v343 = vld [vmem:[%s280 + $0x1d8] sm:$0xff]
        %v344 = vld [vmem:[%s280 + $0x1e0] sm:$0xff]
        %v345 = vld [vmem:[%s280 + $0x1e8] sm:$0xff]
        %v346 = vld [vmem:[%s280 + $0x1f0] sm:$0xff]
        %v347 = vld [vmem:[%s280 + $0x1f8] sm:$0xff]
        %v348 = vld [vmem:[%s280 + $0x200] sm:$0xff]
        %v349 = vld [vmem:[%s280 + $0x208] sm:$0xff]
        %v350 = vld [vmem:[%s280 + $0x210] sm:$0xff]
        %v351 = vld [vmem:[%s280 + $0x218] sm:$0xff]
        %v352 = vld [vmem:[%s280 + $0x220] sm:$0xff]
        %v353 = vld [vmem:[%s280 + $0x228] sm:$0xff]
        %v354 = vld [vmem:[%s280 + $0x230] sm:$0xff]
        %v355 = vld [vmem:[%s280 + $0x238] sm:$0xff]
        %v356 = vld [vmem:[%s280 + $0x240] sm:$0xff]
        %v357 = vld [vmem:[%s280 + $0x248] sm:$0xff]
        %v358 = vld [vmem:[%s280 + $0x250] sm:$0xff]
        %v359 = vld [vmem:[%s280 + $0x258] sm:$0xff]
        %v360 = vld [vmem:[%s280 + $0x260] sm:$0xff]
        %v361 = vld [vmem:[%s280 + $0x268] sm:$0xff]
        %v362 = vld [vmem:[%s280 + $0x270] sm:$0xff]
        %v363 = vld [vmem:[%s280 + $0x278] sm:$0xff]
        %v364 = vld [vmem:[%s280 + $0x280] sm:$0xff]
        %v365 = vld [vmem:[%s280 + $0x288] sm:$0xff]
        %v366 = vld [vmem:[%s280 + $0x290] sm:$0xff]
        %v367 = vld [vmem:[%s280 + $0x298] sm:$0xff]
        %v368 = vld [vmem:[%s280 + $0x2a0] sm:$0xff]
        %v369 = vld [vmem:[%s280 + $0x2a8] sm:$0xff]
        %v370 = vld [vmem:[%s280 + $0x2b0] sm:$0xff]
        %v371 = vld [vmem:[%s280 + $0x2b8] sm:$0xff]
        %v372 = vld [vmem:[%s280 + $0x2c0] sm:$0xff]
        %v373 = vld [vmem:[%s280 + $0x2c8] sm:$0xff]
        %v374 = vld [vmem:[%s280 + $0x2d0] sm:$0xff]
        %v375 = vld [vmem:[%s280 + $0x2d8] sm:$0xff]
        %v376 = vld [vmem:[%s280 + $0x2e0] sm:$0xff]
        %v377 = vld [vmem:[%s280 + $0x2e8] sm:$0xff]
        %v378 = vld [vmem:[%s280 + $0x2f0] sm:$0xff]
        %v379 = vld [vmem:[%s280 + $0x2f8] sm:$0xff]
        %v380 = vpack.c.bf16 %v287, %v284
        %v381 = vpack.c.bf16 %v288, %v285
        %v382 = vpack.c.bf16 %v289, %v286
        %v383 = vpack.c.bf16 %v293, %v290
        %v384 = vpack.c.bf16 %v294, %v291
        %v385 = vpack.c.bf16 %v295, %v292
        %v386 = vpack.c.bf16 %v299, %v296
        %v387 = vpack.c.bf16 %v300, %v297
        %v388 = vpack.c.bf16 %v301, %v298
        %v389 = vpack.c.bf16 %v305, %v302
        %v390 = vpack.c.bf16 %v306, %v303
        %v391 = vpack.c.bf16 %v307, %v304
        %v392 = vpack.c.bf16 %v311, %v308
        %v393 = vpack.c.bf16 %v312, %v309
        %v394 = vpack.c.bf16 %v313, %v310
        %v395 = vpack.c.bf16 %v317, %v314
        %v396 = vpack.c.bf16 %v318, %v315
        %v397 = vpack.c.bf16 %v319, %v316
        %v398 = vpack.c.bf16 %v323, %v320
        %v399 = vpack.c.bf16 %v324, %v321
        %v400 = vpack.c.bf16 %v325, %v322
        %v401 = vpack.c.bf16 %v329, %v326
        %v402 = vpack.c.bf16 %v330, %v327
        %v403 = vpack.c.bf16 %v331, %v328
        %v404 = vpack.c.bf16 %v335, %v332
        %v405 = vpack.c.bf16 %v336, %v333
        %v406 = vpack.c.bf16 %v337, %v334
        %v407 = vpack.c.bf16 %v341, %v338
        %v408 = vpack.c.bf16 %v342, %v339
        %v409 = vpack.c.bf16 %v343, %v340
        %v410 = vpack.c.bf16 %v347, %v344
        %v411 = vpack.c.bf16 %v348, %v345
        %v412 = vpack.c.bf16 %v349, %v346
        %v413 = vpack.c.bf16 %v353, %v350
        %v414 = vpack.c.bf16 %v354, %v351
        %v415 = vpack.c.bf16 %v355, %v352
        %v416 = vpack.c.bf16 %v359, %v356
        %v417 = vpack.c.bf16 %v360, %v357
        %v418 = vpack.c.bf16 %v361, %v358
        %v419 = vpack.c.bf16 %v365, %v362
        %v420 = vpack.c.bf16 %v366, %v363
        %v421 = vpack.c.bf16 %v367, %v364
        %v422 = vpack.c.bf16 %v371, %v368
        %v423 = vpack.c.bf16 %v372, %v369
        %v424 = vpack.c.bf16 %v373, %v370
        %v425 = vpack.c.bf16 %v377, %v374
        %v426 = vpack.c.bf16 %v378, %v375
        %v427 = vpack.c.bf16 %v379, %v376
        %v428 = vld [vmem:[%s1] sm:$0xf]
        %v429 = vld [vmem:[%s1 + $0x4] sm:$0xf]
        %v430 = vld [vmem:[%s1 + $0x8] sm:$0xf]
        %v431 = vld [vmem:[%s1 + $0xc] sm:$0xf]
        %v432 = vld [vmem:[%s1 + $0x10] sm:$0xf]
        %v433 = vld [vmem:[%s1 + $0x14] sm:$0xf]
        %v434 = vld [vmem:[%s1 + $0x18] sm:$0xf]
        %v435 = vld [vmem:[%s1 + $0x1c] sm:$0xf]
        %v436 = vld [vmem:[%s1 + $0x20] sm:$0xf]
        %v437 = vld [vmem:[%s1 + $0x24] sm:$0xf]
        %v438 = vld [vmem:[%s1 + $0x28] sm:$0xf]
        %v439 = vld [vmem:[%s1 + $0x2c] sm:$0xf]
        %v440 = vld [vmem:[%s1 + $0x30] sm:$0xf]
        %v441 = vld [vmem:[%s1 + $0x34] sm:$0xf]
        %v442 = vld [vmem:[%s1 + $0x38] sm:$0xf]
        %v443 = vld [vmem:[%s1 + $0x3c] sm:$0xf]
        %v444 = vld [vmem:[%s1 + $0x40] sm:$0xf]
        %v445 = vld [vmem:[%s1 + $0x44] sm:$0xf]
        %v446 = vld [vmem:[%s1 + $0x48] sm:$0xf]
        %v447 = vld [vmem:[%s1 + $0x4c] sm:$0xf]
        %v448 = vld [vmem:[%s1 + $0x50] sm:$0xf]
        %v449 = vld [vmem:[%s1 + $0x54] sm:$0xf]
        %v450 = vld [vmem:[%s1 + $0x58] sm:$0xf]
        %v451 = vld [vmem:[%s1 + $0x5c] sm:$0xf]
        %v452 = vld [vmem:[%s1 + $0x60] sm:$0xf]
        %v453 = vld [vmem:[%s1 + $0x64] sm:$0xf]
        %v454 = vld [vmem:[%s1 + $0x68] sm:$0xf]
        %v455 = vld [vmem:[%s1 + $0x6c] sm:$0xf]
        %v456 = vld [vmem:[%s1 + $0x70] sm:$0xf]
        %v457 = vld [vmem:[%s1 + $0x74] sm:$0xf]
        %v458 = vld [vmem:[%s1 + $0x78] sm:$0xf]
        %v459 = vld [vmem:[%s1 + $0x7c] sm:$0xf]
        %v460 = vld [vmem:[%s1 + $0x80] sm:$0xf]
        %v461 = vld [vmem:[%s1 + $0x84] sm:$0xf]
        %v462 = vld [vmem:[%s1 + $0x88] sm:$0xf]
        %v463 = vld [vmem:[%s1 + $0x8c] sm:$0xf]
        %v464 = vld [vmem:[%s1 + $0x90] sm:$0xf]
        %v465 = vld [vmem:[%s1 + $0x94] sm:$0xf]
        %v466 = vld [vmem:[%s1 + $0x98] sm:$0xf]
        %v467 = vld [vmem:[%s1 + $0x9c] sm:$0xf]
        %v468 = vld [vmem:[%s2] sm:$0x1]
        %v470 = vlaneseq
        %v471 = vshrl.u32 %v470, 7
        %v472 = vsub.s32 0, %v471
        %v473 = vrot.slane %v468, %v472
        %v515 = vunpack.c.l.b16 %v428
        %v516 = vunpack.c.l.b16 %v429
        %v517 = vunpack.c.l.b16 %v430
        %v518 = vunpack.c.l.b16 %v431
        %v519 = vunpack.c.l.b16 %v432
        %v520 = vunpack.c.l.b16 %v433
        %v521 = vunpack.c.l.b16 %v434
        %v522 = vunpack.c.l.b16 %v435
        %v523 = vunpack.c.l.b16 %v436
        %v524 = vunpack.c.l.b16 %v437
        %v525 = vunpack.c.l.b16 %v438
        %v526 = vunpack.c.l.b16 %v439
        %v527 = vunpack.c.l.b16 %v440
        %v528 = vunpack.c.l.b16 %v441
        %v529 = vunpack.c.l.b16 %v442
        %v530 = vunpack.c.l.b16 %v443
        %v531 = vunpack.c.l.b16 %v444
        %v532 = vunpack.c.l.b16 %v445
        %v533 = vunpack.c.l.b16 %v446
        %v534 = vunpack.c.l.b16 %v447
        %v535 = vunpack.c.l.b16 %v448
        %v536 = vunpack.c.l.b16 %v449
        %v537 = vunpack.c.l.b16 %v450
        %v538 = vunpack.c.l.b16 %v451
        %v539 = vunpack.c.l.b16 %v452
        %v540 = vunpack.c.l.b16 %v453
        %v541 = vunpack.c.l.b16 %v454
        %v542 = vunpack.c.l.b16 %v455
        %v543 = vunpack.c.l.b16 %v456
        %v544 = vunpack.c.l.b16 %v457
        %v545 = vunpack.c.l.b16 %v458
        %v546 = vunpack.c.l.b16 %v459
        %v547 = vunpack.c.l.b16 %v460
        %v548 = vunpack.c.l.b16 %v461
        %v549 = vunpack.c.l.b16 %v462
        %v550 = vunpack.c.l.b16 %v463
        %v551 = vunpack.c.l.b16 %v464
        %v552 = vunpack.c.l.b16 %v465
        %v553 = vunpack.c.l.b16 %v466
        %v554 = vunpack.c.l.b16 %v467
        %v555 = vpack.c.b16 %v516, %v515
        %v556 = vpack.c.b16 %v518, %v517
        %v557 = vpack.c.b16 %v520, %v519
        %v558 = vpack.c.b16 %v522, %v521
        %v559 = vpack.c.b16 %v524, %v523
        %v560 = vpack.c.b16 %v526, %v525
        %v561 = vpack.c.b16 %v528, %v527
        %v562 = vpack.c.b16 %v530, %v529
        %v563 = vpack.c.b16 %v532, %v531
        %v564 = vpack.c.b16 %v534, %v533
        %v565 = vpack.c.b16 %v536, %v535
        %v566 = vpack.c.b16 %v538, %v537
        %v567 = vpack.c.b16 %v540, %v539
        %v568 = vpack.c.b16 %v542, %v541
        %v569 = vpack.c.b16 %v544, %v543
        %v570 = vpack.c.b16 %v546, %v545
        %v571 = vpack.c.b16 %v548, %v547
        %v572 = vpack.c.b16 %v550, %v549
        %v573 = vpack.c.b16 %v552, %v551
        %v574 = vpack.c.b16 %v554, %v553
        %vm595 = vcmask 523264
        %v597 = vsel %vm595, %v382, 0
        %v600 = vsel %vm595, %v385, 0
        %v603 = vsel %vm595, %v388, 0
        %v606 = vsel %vm595, %v391, 0
        %v609 = vsel %vm595, %v394, 0
        %v612 = vsel %vm595, %v397, 0
        %v615 = vsel %vm595, %v400, 0
        %v618 = vsel %vm595, %v403, 0
        %v621 = vsel %vm595, %v406, 0
        %v624 = vsel %vm595, %v409, 0
        %v627 = vsel %vm595, %v412, 0
        %v630 = vsel %vm595, %v415, 0
        %v633 = vsel %vm595, %v418, 0
        %v636 = vsel %vm595, %v421, 0
        %v639 = vsel %vm595, %v424, 0
        %v642 = vsel %vm595, %v427, 0
        %644 = vmatprep.subr.bf16.mxu0 0
        %645 = vmatpush1.bf16.msra.mxu0 %v562
        %646 = vmatprep.subr.bf16.mxu0 0
        %647 = vmatpush1.bf16.msra.mxu0 %v561
        %648 = vmatprep.subr.bf16.mxu0 0
        %649 = vmatpush1.bf16.msra.mxu0 %v560
        %650 = vmatprep.subr.bf16.mxu0 0
        %651 = vmatpush1.bf16.msra.mxu0 %v559
        %652 = vmatprep.subr.bf16.mxu0 0
        %653 = vmatpush1.bf16.msra.mxu0 %v558
        %654 = vmatprep.subr.bf16.mxu0 0
        %655 = vmatpush1.bf16.msra.mxu0 %v557
        %656 = vmatprep.subr.bf16.mxu0 0
        %657 = vmatpush1.bf16.msra.mxu0 %v556
        %658 = vmatprep.subr.bf16.mxu0 0
        %659 = vmatpush1.bf16.msra.mxu0 %v555
        %660 = vmatprep.subr.bf16.mxu0 0
        %661 = vmatpush2.bf16.msra.mxu0 %v570
        %662 = vmatprep.subr.bf16.mxu0 0
        %663 = vmatpush2.bf16.msra.mxu0 %v569
        %664 = vmatprep.subr.bf16.mxu0 0
        %665 = vmatpush2.bf16.msra.mxu0 %v568
        %666 = vmatprep.subr.bf16.mxu0 0
        %667 = vmatpush2.bf16.msra.mxu0 %v567
        %668 = vmatprep.subr.bf16.mxu0 0
        %669 = vmatpush2.bf16.msra.mxu0 %v566
        %670 = vmatprep.subr.bf16.mxu0 0
        %671 = vmatpush2.bf16.msra.mxu0 %v565
        %672 = vmatprep.subr.bf16.mxu0 0
        %673 = vmatpush2.bf16.msra.mxu0 %v564
        %674 = vmatprep.subr.bf16.mxu0 0
        %675 = vmatpush2.bf16.msra.mxu0 %v563
        %676 = vmatprep.mubr.bf16.mxu0 %v381
        %677 = vmatmul.mubr.bf16.gmra.mxu0 %v380
        %v678 = vpop.f32.mrf.mxu0
        %v679 = vadd.f32 %v473, %v678
        %v680 = vpop.f32.mrf.mxu0
        %v681 = vpop.f32.mrf.mxu0
        %v682 = vadd.f32 %v473, %v681
        %v683 = vpop.f32.mrf.mxu0
        %684 = vmatprep.mubr.bf16.mxu0 %v384
        %685 = vmatmul.mubr.bf16.gmra.mxu0 %v383
        %v686 = vpop.f32.mrf.mxu0
        %v687 = vadd.f32 %v473, %v686
        %v688 = vpop.f32.mrf.mxu0
        %v689 = vpop.f32.mrf.mxu0
        %v690 = vadd.f32 %v473, %v689
        %v691 = vpop.f32.mrf.mxu0
        %692 = vmatprep.mubr.bf16.mxu0 %v387
        %693 = vmatmul.mubr.bf16.gmra.mxu0 %v386
        %v694 = vpop.f32.mrf.mxu0
        %v695 = vadd.f32 %v473, %v694
        %v696 = vpop.f32.mrf.mxu0
        %v697 = vpop.f32.mrf.mxu0
        %v698 = vadd.f32 %v473, %v697
        %v699 = vpop.f32.mrf.mxu0
        %700 = vmatprep.mubr.bf16.mxu0 %v390
        %701 = vmatmul.mubr.bf16.gmra.mxu0 %v389
        %v702 = vpop.f32.mrf.mxu0
        %v703 = vadd.f32 %v473, %v702
        %v704 = vpop.f32.mrf.mxu0
        %v705 = vpop.f32.mrf.mxu0
        %v706 = vadd.f32 %v473, %v705
        %v707 = vpop.f32.mrf.mxu0
        %708 = vmatprep.mubr.bf16.mxu0 %v393
        %709 = vmatmul.mubr.bf16.gmra.mxu0 %v392
        %v710 = vpop.f32.mrf.mxu0
        %v711 = vadd.f32 %v473, %v710
        %v712 = vpop.f32.mrf.mxu0
        %v713 = vpop.f32.mrf.mxu0
        %v714 = vadd.f32 %v473, %v713
        %v715 = vpop.f32.mrf.mxu0
        %716 = vmatprep.mubr.bf16.mxu0 %v396
        %717 = vmatmul.mubr.bf16.gmra.mxu0 %v395
        %v718 = vpop.f32.mrf.mxu0
        %v719 = vadd.f32 %v473, %v718
        %v720 = vpop.f32.mrf.mxu0
        %v721 = vpop.f32.mrf.mxu0
        %v722 = vadd.f32 %v473, %v721
        %v723 = vpop.f32.mrf.mxu0
        %724 = vmatprep.mubr.bf16.mxu0 %v399
        %725 = vmatmul.mubr.bf16.gmra.mxu0 %v398
        %v726 = vpop.f32.mrf.mxu0
        %v727 = vadd.f32 %v473, %v726
        %v728 = vpop.f32.mrf.mxu0
        %v729 = vpop.f32.mrf.mxu0
        %v730 = vadd.f32 %v473, %v729
        %v731 = vpop.f32.mrf.mxu0
        %732 = vmatprep.mubr.bf16.mxu0 %v402
        %733 = vmatmul.mubr.bf16.gmra.mxu0 %v401
        %v734 = vpop.f32.mrf.mxu0
        %v735 = vadd.f32 %v473, %v734
        %v736 = vpop.f32.mrf.mxu0
        %v737 = vpop.f32.mrf.mxu0
        %v738 = vadd.f32 %v473, %v737
        %v739 = vpop.f32.mrf.mxu0
        %740 = vmatprep.mubr.bf16.mxu0 %v405
        %741 = vmatmul.mubr.bf16.gmra.mxu0 %v404
        %v742 = vpop.f32.mrf.mxu0
        %v743 = vadd.f32 %v473, %v742
        %v744 = vpop.f32.mrf.mxu0
        %v745 = vpop.f32.mrf.mxu0
        %v746 = vadd.f32 %v473, %v745
        %v747 = vpop.f32.mrf.mxu0
        %748 = vmatprep.mubr.bf16.mxu0 %v408
        %749 = vmatmul.mubr.bf16.gmra.mxu0 %v407
        %v750 = vpop.f32.mrf.mxu0
        %v751 = vadd.f32 %v473, %v750
        %v752 = vpop.f32.mrf.mxu0
        %v753 = vpop.f32.mrf.mxu0
        %v754 = vadd.f32 %v473, %v753
        %v755 = vpop.f32.mrf.mxu0
        %756 = vmatprep.mubr.bf16.mxu0 %v411
        %757 = vmatmul.mubr.bf16.gmra.mxu0 %v410
        %v758 = vpop.f32.mrf.mxu0
        %v759 = vadd.f32 %v473, %v758
        %v760 = vpop.f32.mrf.mxu0
        %v761 = vpop.f32.mrf.mxu0
        %v762 = vadd.f32 %v473, %v761
        %v763 = vpop.f32.mrf.mxu0
        %764 = vmatprep.mubr.bf16.mxu0 %v414
        %765 = vmatmul.mubr.bf16.gmra.mxu0 %v413
        %v766 = vpop.f32.mrf.mxu0
        %v767 = vadd.f32 %v473, %v766
        %v768 = vpop.f32.mrf.mxu0
        %v769 = vpop.f32.mrf.mxu0
        %v770 = vadd.f32 %v473, %v769
        %v771 = vpop.f32.mrf.mxu0
        %772 = vmatprep.mubr.bf16.mxu0 %v417
        %773 = vmatmul.mubr.bf16.gmra.mxu0 %v416
        %v774 = vpop.f32.mrf.mxu0
        %v775 = vadd.f32 %v473, %v774
        %v776 = vpop.f32.mrf.mxu0
        %v777 = vpop.f32.mrf.mxu0
        %v778 = vadd.f32 %v473, %v777
        %v779 = vpop.f32.mrf.mxu0
        %780 = vmatprep.mubr.bf16.mxu0 %v420
        %781 = vmatmul.mubr.bf16.gmra.mxu0 %v419
        %v782 = vpop.f32.mrf.mxu0
        %v783 = vadd.f32 %v473, %v782
        %v784 = vpop.f32.mrf.mxu0
        %v785 = vpop.f32.mrf.mxu0
        %v786 = vadd.f32 %v473, %v785
        %v787 = vpop.f32.mrf.mxu0
        %788 = vmatprep.mubr.bf16.mxu0 %v423
        %789 = vmatmul.mubr.bf16.gmra.mxu0 %v422
        %v790 = vpop.f32.mrf.mxu0
        %v791 = vadd.f32 %v473, %v790
        %v792 = vpop.f32.mrf.mxu0
        %v793 = vpop.f32.mrf.mxu0
        %v794 = vadd.f32 %v473, %v793
        %v795 = vpop.f32.mrf.mxu0
        %796 = vmatprep.mubr.bf16.mxu0 %v426
        %797 = vmatmul.mubr.bf16.gmra.mxu0 %v425
        %v798 = vpop.f32.mrf.mxu0
        %v799 = vadd.f32 %v473, %v798
        %v800 = vpop.f32.mrf.mxu0
        %v801 = vpop.f32.mrf.mxu0
        %v802 = vadd.f32 %v473, %v801
        %v803 = vpop.f32.mrf.mxu0
        %804 = vdwg.mxu0
        %805 = vmatprep.subr.bf16.mxu0 0
        %806 = vmatpush1.bf16.msra.mxu0 0
        %807 = vmatprep.subr.bf16.mxu0 0
        %808 = vmatpush1.bf16.msra.mxu0 0
        %809 = vmatprep.subr.bf16.mxu0 0
        %810 = vmatpush1.bf16.msra.mxu0 0
        %811 = vmatprep.subr.bf16.mxu0 0
        %812 = vmatpush1.bf16.msra.mxu0 0
        %813 = vmatprep.subr.bf16.mxu0 0
        %814 = vmatpush1.bf16.msra.mxu0 %v574
        %815 = vmatprep.subr.bf16.mxu0 0
        %816 = vmatpush1.bf16.msra.mxu0 %v573
        %817 = vmatprep.subr.bf16.mxu0 0
        %818 = vmatpush1.bf16.msra.mxu0 %v572
        %819 = vmatprep.subr.bf16.mxu0 0
        %820 = vmatpush1.bf16.msra.mxu0 %v571
        %821 = vmatprep.subr.bf16.mxu0 0
        %822 = vmatpush2.bf16.msra.mxu0 0
        %823 = vmatprep.subr.bf16.mxu0 0
        %824 = vmatpush2.bf16.msra.mxu0 0
        %825 = vmatprep.subr.bf16.mxu0 0
        %826 = vmatpush2.bf16.msra.mxu0 0
        %827 = vmatprep.subr.bf16.mxu0 0
        %828 = vmatpush2.bf16.msra.mxu0 0
        %829 = vmatprep.subr.bf16.mxu0 0
        %830 = vmatpush2.bf16.msra.mxu0 0
        %831 = vmatprep.subr.bf16.mxu0 0
        %832 = vmatpush2.bf16.msra.mxu0 0
        %833 = vmatprep.subr.bf16.mxu0 0
        %834 = vmatpush2.bf16.msra.mxu0 0
        %835 = vmatprep.subr.bf16.mxu0 0
        %836 = vmatpush2.bf16.msra.mxu0 0
        %837 = vmatprep.mubr.bf16.mxu0 0
        %838 = vmatmul.mubr.bf16.gmra.mxu0 %v597
        %v839 = vpop.f32.mrf.mxu0
        %v840 = vadd.f32 %v679, %v839
        %v841 = vpop.f32.mrf.mxu0
        %v842 = vpop.f32.mrf.mxu0
        %v843 = vadd.f32 %v682, %v842
        %v844 = vpop.f32.mrf.mxu0
        %845 = vmatprep.mubr.bf16.mxu0 0
        %846 = vmatmul.mubr.bf16.gmra.mxu0 %v600
        %v847 = vpop.f32.mrf.mxu0
        %v848 = vadd.f32 %v687, %v847
        %v849 = vpop.f32.mrf.mxu0
        %v850 = vpop.f32.mrf.mxu0
        %v851 = vadd.f32 %v690, %v850
        %v852 = vpop.f32.mrf.mxu0
        %853 = vmatprep.mubr.bf16.mxu0 0
        %854 = vmatmul.mubr.bf16.gmra.mxu0 %v603
        %v855 = vpop.f32.mrf.mxu0
        %v856 = vadd.f32 %v695, %v855
        %v857 = vpop.f32.mrf.mxu0
        %v858 = vpop.f32.mrf.mxu0
        %v859 = vadd.f32 %v698, %v858
        %v860 = vpop.f32.mrf.mxu0
        %861 = vmatprep.mubr.bf16.mxu0 0
        %862 = vmatmul.mubr.bf16.gmra.mxu0 %v606
        %v863 = vpop.f32.mrf.mxu0
        %v864 = vadd.f32 %v703, %v863
        %v865 = vpop.f32.mrf.mxu0
        %v866 = vpop.f32.mrf.mxu0
        %v867 = vadd.f32 %v706, %v866
        %v868 = vpop.f32.mrf.mxu0
        %869 = vmatprep.mubr.bf16.mxu0 0
        %870 = vmatmul.mubr.bf16.gmra.mxu0 %v609
        %v871 = vpop.f32.mrf.mxu0
        %v872 = vadd.f32 %v711, %v871
        %v873 = vpop.f32.mrf.mxu0
        %v874 = vpop.f32.mrf.mxu0
        %v875 = vadd.f32 %v714, %v874
        %v876 = vpop.f32.mrf.mxu0
        %877 = vmatprep.mubr.bf16.mxu0 0
        %878 = vmatmul.mubr.bf16.gmra.mxu0 %v612
        %v879 = vpop.f32.mrf.mxu0
        %v880 = vadd.f32 %v719, %v879
        %v881 = vpop.f32.mrf.mxu0
        %v882 = vpop.f32.mrf.mxu0
        %v883 = vadd.f32 %v722, %v882
        %v884 = vpop.f32.mrf.mxu0
        %885 = vmatprep.mubr.bf16.mxu0 0
        %886 = vmatmul.mubr.bf16.gmra.mxu0 %v615
        %v887 = vpop.f32.mrf.mxu0
        %v888 = vadd.f32 %v727, %v887
        %v889 = vpop.f32.mrf.mxu0
        %v890 = vpop.f32.mrf.mxu0
        %v891 = vadd.f32 %v730, %v890
        %v892 = vpop.f32.mrf.mxu0
        %893 = vmatprep.mubr.bf16.mxu0 0
        %894 = vmatmul.mubr.bf16.gmra.mxu0 %v618
        %v895 = vpop.f32.mrf.mxu0
        %v896 = vadd.f32 %v735, %v895
        %v897 = vpop.f32.mrf.mxu0
        %v898 = vpop.f32.mrf.mxu0
        %v899 = vadd.f32 %v738, %v898
        %v900 = vpop.f32.mrf.mxu0
        %901 = vmatprep.mubr.bf16.mxu0 0
        %902 = vmatmul.mubr.bf16.gmra.mxu0 %v621
        %v903 = vpop.f32.mrf.mxu0
        %v904 = vadd.f32 %v743, %v903
        %v905 = vpop.f32.mrf.mxu0
        %v906 = vpop.f32.mrf.mxu0
        %v907 = vadd.f32 %v746, %v906
        %v908 = vpop.f32.mrf.mxu0
        %909 = vmatprep.mubr.bf16.mxu0 0
        %910 = vmatmul.mubr.bf16.gmra.mxu0 %v624
        %v911 = vpop.f32.mrf.mxu0
        %v912 = vadd.f32 %v751, %v911
        %v913 = vpop.f32.mrf.mxu0
        %v914 = vpop.f32.mrf.mxu0
        %v915 = vadd.f32 %v754, %v914
        %v916 = vpop.f32.mrf.mxu0
        %917 = vmatprep.mubr.bf16.mxu0 0
        %918 = vmatmul.mubr.bf16.gmra.mxu0 %v627
        %v919 = vpop.f32.mrf.mxu0
        %v920 = vadd.f32 %v759, %v919
        %v921 = vpop.f32.mrf.mxu0
        %v922 = vpop.f32.mrf.mxu0
        %v923 = vadd.f32 %v762, %v922
        %v924 = vpop.f32.mrf.mxu0
        %925 = vmatprep.mubr.bf16.mxu0 0
        %926 = vmatmul.mubr.bf16.gmra.mxu0 %v630
        %v927 = vpop.f32.mrf.mxu0
        %v928 = vadd.f32 %v767, %v927
        %v929 = vpop.f32.mrf.mxu0
        %v930 = vpop.f32.mrf.mxu0
        %v931 = vadd.f32 %v770, %v930
        %v932 = vpop.f32.mrf.mxu0
        %933 = vmatprep.mubr.bf16.mxu0 0
        %934 = vmatmul.mubr.bf16.gmra.mxu0 %v633
        %v935 = vpop.f32.mrf.mxu0
        %v936 = vadd.f32 %v775, %v935
        %v937 = vpop.f32.mrf.mxu0
        %v938 = vpop.f32.mrf.mxu0
        %v939 = vadd.f32 %v778, %v938
        %v940 = vpop.f32.mrf.mxu0
        %941 = vmatprep.mubr.bf16.mxu0 0
        %942 = vmatmul.mubr.bf16.gmra.mxu0 %v636
        %v943 = vpop.f32.mrf.mxu0
        %v944 = vadd.f32 %v783, %v943
        %v945 = vpop.f32.mrf.mxu0
        %v946 = vpop.f32.mrf.mxu0
        %v947 = vadd.f32 %v786, %v946
        %v948 = vpop.f32.mrf.mxu0
        %949 = vmatprep.mubr.bf16.mxu0 0
        %950 = vmatmul.mubr.bf16.gmra.mxu0 %v639
        %v951 = vpop.f32.mrf.mxu0
        %v952 = vadd.f32 %v791, %v951
        %v953 = vpop.f32.mrf.mxu0
        %v954 = vpop.f32.mrf.mxu0
        %v955 = vadd.f32 %v794, %v954
        %v956 = vpop.f32.mrf.mxu0
        %957 = vmatprep.mubr.bf16.mxu0 0
        %958 = vmatmul.mubr.bf16.gmra.mxu0 %v642
        %v959 = vpop.f32.mrf.mxu0
        %v960 = vadd.f32 %v799, %v959
        %v961 = vpop.f32.mrf.mxu0
        %v962 = vpop.f32.mrf.mxu0
        %v963 = vadd.f32 %v802, %v962
        %v964 = vpop.f32.mrf.mxu0
        %965 = vdwg.mxu0
        %v966 = vmul.f32 %v840, 0.01
        %v967 = vmul.f32 %v843, 0.01
        %v968 = vmul.f32 %v848, 0.01
        %v969 = vmul.f32 %v851, 0.01
        %v970 = vmul.f32 %v856, 0.01
        %v971 = vmul.f32 %v859, 0.01
        %v972 = vmul.f32 %v864, 0.01
        %v973 = vmul.f32 %v867, 0.01
        %v974 = vmul.f32 %v872, 0.01
        %v975 = vmul.f32 %v875, 0.01
        %v976 = vmul.f32 %v880, 0.01
        %v977 = vmul.f32 %v883, 0.01
        %v978 = vmul.f32 %v888, 0.01
        %v979 = vmul.f32 %v891, 0.01
        %v980 = vmul.f32 %v896, 0.01
        %v981 = vmul.f32 %v899, 0.01
        %v982 = vmul.f32 %v904, 0.01
        %v983 = vmul.f32 %v907, 0.01
        %v984 = vmul.f32 %v912, 0.01
        %v985 = vmul.f32 %v915, 0.01
        %v986 = vmul.f32 %v920, 0.01
        %v987 = vmul.f32 %v923, 0.01
        %v988 = vmul.f32 %v928, 0.01
        %v989 = vmul.f32 %v931, 0.01
        %v990 = vmul.f32 %v936, 0.01
        %v991 = vmul.f32 %v939, 0.01
        %v992 = vmul.f32 %v944, 0.01
        %v993 = vmul.f32 %v947, 0.01
        %v994 = vmul.f32 %v952, 0.01
        %v995 = vmul.f32 %v955, 0.01
        %v996 = vmul.f32 %v960, 0.01
        %v997 = vmul.f32 %v963, 0.01
        %v998 = vmax.f32 %v840, %v966
        %v999 = vmax.f32 %v843, %v967
        %v1000 = vmax.f32 %v848, %v968
        %v1001 = vmax.f32 %v851, %v969
        %v1002 = vmax.f32 %v856, %v970
        %v1003 = vmax.f32 %v859, %v971
        %v1004 = vmax.f32 %v864, %v972
        %v1005 = vmax.f32 %v867, %v973
        %v1006 = vmax.f32 %v872, %v974
        %v1007 = vmax.f32 %v875, %v975
        %v1008 = vmax.f32 %v880, %v976
        %v1009 = vmax.f32 %v883, %v977
        %v1010 = vmax.f32 %v888, %v978
        %v1011 = vmax.f32 %v891, %v979
        %v1012 = vmax.f32 %v896, %v980
        %v1013 = vmax.f32 %v899, %v981
        %v1014 = vmax.f32 %v904, %v982
        %v1015 = vmax.f32 %v907, %v983
        %v1016 = vmax.f32 %v912, %v984
        %v1017 = vmax.f32 %v915, %v985
        %v1018 = vmax.f32 %v920, %v986
        %v1019 = vmax.f32 %v923, %v987
        %v1020 = vmax.f32 %v928, %v988
        %v1021 = vmax.f32 %v931, %v989
        %v1022 = vmax.f32 %v936, %v990
        %v1023 = vmax.f32 %v939, %v991
        %v1024 = vmax.f32 %v944, %v992
        %v1025 = vmax.f32 %v947, %v993
        %v1026 = vmax.f32 %v952, %v994
        %v1027 = vmax.f32 %v955, %v995
        %v1028 = vmax.f32 %v960, %v996
        %v1029 = vmax.f32 %v963, %v997
        %v1030 = vpack.c.bf16 %v999, %v998
        %v1031 = vpack.c.bf16 %v1001, %v1000
        %v1032 = vpack.c.bf16 %v1003, %v1002
        %v1033 = vpack.c.bf16 %v1005, %v1004
        %v1034 = vpack.c.bf16 %v1007, %v1006
        %v1035 = vpack.c.bf16 %v1009, %v1008
        %v1036 = vpack.c.bf16 %v1011, %v1010
        %v1037 = vpack.c.bf16 %v1013, %v1012
        %v1038 = vpack.c.bf16 %v1015, %v1014
        %v1039 = vpack.c.bf16 %v1017, %v1016
        %v1040 = vpack.c.bf16 %v1019, %v1018
        %v1041 = vpack.c.bf16 %v1021, %v1020
        %v1042 = vpack.c.bf16 %v1023, %v1022
        %v1043 = vpack.c.bf16 %v1025, %v1024
        %v1044 = vpack.c.bf16 %v1027, %v1026
        %v1045 = vpack.c.bf16 %v1029, %v1028
        %v1046 = vld [vmem:[%s3] sm:$0xf]
        %v1047 = vld [vmem:[%s3 + $0x4] sm:$0xf]
        %v1048 = vld [vmem:[%s3 + $0x8] sm:$0xf]
        %v1049 = vld [vmem:[%s3 + $0xc] sm:$0xf]
        %v1050 = vld [vmem:[%s4] sm:$0x1]
        %v1052 = vlaneseq
        %v1053 = vshrl.u32 %v1052, 7
        %v1054 = vsub.s32 0, %v1053
        %v1055 = vrot.slane %v1050, %v1054
        %v1061 = vunpack.c.l.b16 %v1046
        %v1062 = vunpack.c.l.b16 %v1047
        %v1063 = vunpack.c.l.b16 %v1048
        %v1064 = vunpack.c.l.b16 %v1049
        %v1065 = vpack.c.b16 %v1062, %v1061
        %v1066 = vpack.c.b16 %v1064, %v1063
        %vm1069 = vcmask 261120
        %v1071 = vsel %vm1069, %v1030, 0
        %v1074 = vsel %vm1069, %v1031, 0
        %v1077 = vsel %vm1069, %v1032, 0
        %v1080 = vsel %vm1069, %v1033, 0
        %v1083 = vsel %vm1069, %v1034, 0
        %v1086 = vsel %vm1069, %v1035, 0
        %v1089 = vsel %vm1069, %v1036, 0
        %v1092 = vsel %vm1069, %v1037, 0
        %v1095 = vsel %vm1069, %v1038, 0
        %v1098 = vsel %vm1069, %v1039, 0
        %v1101 = vsel %vm1069, %v1040, 0
        %v1104 = vsel %vm1069, %v1041, 0
        %v1107 = vsel %vm1069, %v1042, 0
        %v1110 = vsel %vm1069, %v1043, 0
        %v1113 = vsel %vm1069, %v1044, 0
        %v1116 = vsel %vm1069, %v1045, 0
        %1118 = vmatprep.subr.bf16.mxu0 0
        %1119 = vmatpush1.bf16.msra.mxu0 0
        %1120 = vmatprep.subr.bf16.mxu0 0
        %1121 = vmatpush1.bf16.msra.mxu0 0
        %1122 = vmatprep.subr.bf16.mxu0 0
        %1123 = vmatpush1.bf16.msra.mxu0 0
        %1124 = vmatprep.subr.bf16.mxu0 0
        %1125 = vmatpush1.bf16.msra.mxu0 0
        %1126 = vmatprep.subr.bf16.mxu0 0
        %1127 = vmatpush1.bf16.msra.mxu0 0
        %1128 = vmatprep.subr.bf16.mxu0 0
        %1129 = vmatpush1.bf16.msra.mxu0 0
        %1130 = vmatprep.subr.bf16.mxu0 0
        %1131 = vmatpush1.bf16.msra.mxu0 %v1066
        %1132 = vmatprep.subr.bf16.mxu0 0
        %1133 = vmatpush1.bf16.msra.mxu0 %v1065
        %1134 = vmatprep.subr.bf16.mxu0 0
        %1135 = vmatpush2.bf16.msra.mxu0 0
        %1136 = vmatprep.subr.bf16.mxu0 0
        %1137 = vmatpush2.bf16.msra.mxu0 0
        %1138 = vmatprep.subr.bf16.mxu0 0
        %1139 = vmatpush2.bf16.msra.mxu0 0
        %1140 = vmatprep.subr.bf16.mxu0 0
        %1141 = vmatpush2.bf16.msra.mxu0 0
        %1142 = vmatprep.subr.bf16.mxu0 0
        %1143 = vmatpush2.bf16.msra.mxu0 0
        %1144 = vmatprep.subr.bf16.mxu0 0
        %1145 = vmatpush2.bf16.msra.mxu0 0
        %1146 = vmatprep.subr.bf16.mxu0 0
        %1147 = vmatpush2.bf16.msra.mxu0 0
        %1148 = vmatprep.subr.bf16.mxu0 0
        %1149 = vmatpush2.bf16.msra.mxu0 0
        %1150 = vmatprep.mubr.bf16.mxu0 0
        %1151 = vmatmul.mubr.bf16.gmra.mxu0 %v1071
        %v1152 = vpop.f32.mrf.mxu0
        %v1153 = vadd.f32 %v1055, %v1152
        %v1154 = vpop.f32.mrf.mxu0
        %v1155 = vpop.f32.mrf.mxu0
        %v1156 = vadd.f32 %v1055, %v1155
        %v1157 = vpop.f32.mrf.mxu0
        %1158 = vmatprep.mubr.bf16.mxu0 0
        %1159 = vmatmul.mubr.bf16.gmra.mxu0 %v1074
        %v1160 = vpop.f32.mrf.mxu0
        %v1161 = vadd.f32 %v1055, %v1160
        %v1162 = vpop.f32.mrf.mxu0
        %v1163 = vpop.f32.mrf.mxu0
        %v1164 = vadd.f32 %v1055, %v1163
        %v1165 = vpop.f32.mrf.mxu0
        %1166 = vmatprep.mubr.bf16.mxu0 0
        %1167 = vmatmul.mubr.bf16.gmra.mxu0 %v1077
        %v1168 = vpop.f32.mrf.mxu0
        %v1169 = vadd.f32 %v1055, %v1168
        %v1170 = vpop.f32.mrf.mxu0
        %v1171 = vpop.f32.mrf.mxu0
        %v1172 = vadd.f32 %v1055, %v1171
        %v1173 = vpop.f32.mrf.mxu0
        %1174 = vmatprep.mubr.bf16.mxu0 0
        %1175 = vmatmul.mubr.bf16.gmra.mxu0 %v1080
        %v1176 = vpop.f32.mrf.mxu0
        %v1177 = vadd.f32 %v1055, %v1176
        %v1178 = vpop.f32.mrf.mxu0
        %v1179 = vpop.f32.mrf.mxu0
        %v1180 = vadd.f32 %v1055, %v1179
        %v1181 = vpop.f32.mrf.mxu0
        %1182 = vmatprep.mubr.bf16.mxu0 0
        %1183 = vmatmul.mubr.bf16.gmra.mxu0 %v1083
        %v1184 = vpop.f32.mrf.mxu0
        %v1185 = vadd.f32 %v1055, %v1184
        %v1186 = vpop.f32.mrf.mxu0
        %v1187 = vpop.f32.mrf.mxu0
        %v1188 = vadd.f32 %v1055, %v1187
        %v1189 = vpop.f32.mrf.mxu0
        %1190 = vmatprep.mubr.bf16.mxu0 0
        %1191 = vmatmul.mubr.bf16.gmra.mxu0 %v1086
        %v1192 = vpop.f32.mrf.mxu0
        %v1193 = vadd.f32 %v1055, %v1192
        %v1194 = vpop.f32.mrf.mxu0
        %v1195 = vpop.f32.mrf.mxu0
        %v1196 = vadd.f32 %v1055, %v1195
        %v1197 = vpop.f32.mrf.mxu0
        %1198 = vmatprep.mubr.bf16.mxu0 0
        %1199 = vmatmul.mubr.bf16.gmra.mxu0 %v1089
        %v1200 = vpop.f32.mrf.mxu0
        %v1201 = vadd.f32 %v1055, %v1200
        %v1202 = vpop.f32.mrf.mxu0
        %v1203 = vpop.f32.mrf.mxu0
        %v1204 = vadd.f32 %v1055, %v1203
        %v1205 = vpop.f32.mrf.mxu0
        %1206 = vmatprep.mubr.bf16.mxu0 0
        %1207 = vmatmul.mubr.bf16.gmra.mxu0 %v1092
        %v1208 = vpop.f32.mrf.mxu0
        %v1209 = vadd.f32 %v1055, %v1208
        %v1210 = vpop.f32.mrf.mxu0
        %v1211 = vpop.f32.mrf.mxu0
        %v1212 = vadd.f32 %v1055, %v1211
        %v1213 = vpop.f32.mrf.mxu0
        %1214 = vmatprep.mubr.bf16.mxu0 0
        %1215 = vmatmul.mubr.bf16.gmra.mxu0 %v1095
        %v1216 = vpop.f32.mrf.mxu0
        %v1217 = vadd.f32 %v1055, %v1216
        %v1218 = vpop.f32.mrf.mxu0
        %v1219 = vpop.f32.mrf.mxu0
        %v1220 = vadd.f32 %v1055, %v1219
        %v1221 = vpop.f32.mrf.mxu0
        %1222 = vmatprep.mubr.bf16.mxu0 0
        %1223 = vmatmul.mubr.bf16.gmra.mxu0 %v1098
        %v1224 = vpop.f32.mrf.mxu0
        %v1225 = vadd.f32 %v1055, %v1224
        %v1226 = vpop.f32.mrf.mxu0
        %v1227 = vpop.f32.mrf.mxu0
        %v1228 = vadd.f32 %v1055, %v1227
        %v1229 = vpop.f32.mrf.mxu0
        %1230 = vmatprep.mubr.bf16.mxu0 0
        %1231 = vmatmul.mubr.bf16.gmra.mxu0 %v1101
        %v1232 = vpop.f32.mrf.mxu0
        %v1233 = vadd.f32 %v1055, %v1232
        %v1234 = vpop.f32.mrf.mxu0
        %v1235 = vpop.f32.mrf.mxu0
        %v1236 = vadd.f32 %v1055, %v1235
        %v1237 = vpop.f32.mrf.mxu0
        %1238 = vmatprep.mubr.bf16.mxu0 0
        %1239 = vmatmul.mubr.bf16.gmra.mxu0 %v1104
        %v1240 = vpop.f32.mrf.mxu0
        %v1241 = vadd.f32 %v1055, %v1240
        %v1242 = vpop.f32.mrf.mxu0
        %v1243 = vpop.f32.mrf.mxu0
        %v1244 = vadd.f32 %v1055, %v1243
        %v1245 = vpop.f32.mrf.mxu0
        %1246 = vmatprep.mubr.bf16.mxu0 0
        %1247 = vmatmul.mubr.bf16.gmra.mxu0 %v1107
        %v1248 = vpop.f32.mrf.mxu0
        %v1249 = vadd.f32 %v1055, %v1248
        %v1250 = vpop.f32.mrf.mxu0
        %v1251 = vpop.f32.mrf.mxu0
        %v1252 = vadd.f32 %v1055, %v1251
        %v1253 = vpop.f32.mrf.mxu0
        %1254 = vmatprep.mubr.bf16.mxu0 0
        %1255 = vmatmul.mubr.bf16.gmra.mxu0 %v1110
        %v1256 = vpop.f32.mrf.mxu0
        %v1257 = vadd.f32 %v1055, %v1256
        %v1258 = vpop.f32.mrf.mxu0
        %v1259 = vpop.f32.mrf.mxu0
        %v1260 = vadd.f32 %v1055, %v1259
        %v1261 = vpop.f32.mrf.mxu0
        %1262 = vmatprep.mubr.bf16.mxu0 0
        %1263 = vmatmul.mubr.bf16.gmra.mxu0 %v1113
        %v1264 = vpop.f32.mrf.mxu0
        %v1265 = vadd.f32 %v1055, %v1264
        %v1266 = vpop.f32.mrf.mxu0
        %v1267 = vpop.f32.mrf.mxu0
        %v1268 = vadd.f32 %v1055, %v1267
        %v1269 = vpop.f32.mrf.mxu0
        %1270 = vmatprep.mubr.bf16.mxu0 0
        %1271 = vmatmul.mubr.bf16.gmra.mxu0 %v1116
        %v1272 = vpop.f32.mrf.mxu0
        %v1273 = vadd.f32 %v1055, %v1272
        %v1274 = vpop.f32.mrf.mxu0
        %v1275 = vpop.f32.mrf.mxu0
        %v1276 = vadd.f32 %v1055, %v1275
        %v1277 = vpop.f32.mrf.mxu0
        %1278 = vdwg.mxu0
        %v1279 = vmul.f32 %v1153, 0.01
        %v1280 = vmul.f32 %v1156, 0.01
        %v1281 = vmul.f32 %v1161, 0.01
        %v1282 = vmul.f32 %v1164, 0.01
        %v1283 = vmul.f32 %v1169, 0.01
        %v1284 = vmul.f32 %v1172, 0.01
        %v1285 = vmul.f32 %v1177, 0.01
        %v1286 = vmul.f32 %v1180, 0.01
        %v1287 = vmul.f32 %v1185, 0.01
        %v1288 = vmul.f32 %v1188, 0.01
        %v1289 = vmul.f32 %v1193, 0.01
        %v1290 = vmul.f32 %v1196, 0.01
        %v1291 = vmul.f32 %v1201, 0.01
        %v1292 = vmul.f32 %v1204, 0.01
        %v1293 = vmul.f32 %v1209, 0.01
        %v1294 = vmul.f32 %v1212, 0.01
        %v1295 = vmul.f32 %v1217, 0.01
        %v1296 = vmul.f32 %v1220, 0.01
        %v1297 = vmul.f32 %v1225, 0.01
        %v1298 = vmul.f32 %v1228, 0.01
        %v1299 = vmul.f32 %v1233, 0.01
        %v1300 = vmul.f32 %v1236, 0.01
        %v1301 = vmul.f32 %v1241, 0.01
        %v1302 = vmul.f32 %v1244, 0.01
        %v1303 = vmul.f32 %v1249, 0.01
        %v1304 = vmul.f32 %v1252, 0.01
        %v1305 = vmul.f32 %v1257, 0.01
        %v1306 = vmul.f32 %v1260, 0.01
        %v1307 = vmul.f32 %v1265, 0.01
        %v1308 = vmul.f32 %v1268, 0.01
        %v1309 = vmul.f32 %v1273, 0.01
        %v1310 = vmul.f32 %v1276, 0.01
        %v1311 = vmax.f32 %v1153, %v1279
        %v1312 = vmax.f32 %v1156, %v1280
        %v1313 = vmax.f32 %v1161, %v1281
        %v1314 = vmax.f32 %v1164, %v1282
        %v1315 = vmax.f32 %v1169, %v1283
        %v1316 = vmax.f32 %v1172, %v1284
        %v1317 = vmax.f32 %v1177, %v1285
        %v1318 = vmax.f32 %v1180, %v1286
        %v1319 = vmax.f32 %v1185, %v1287
        %v1320 = vmax.f32 %v1188, %v1288
        %v1321 = vmax.f32 %v1193, %v1289
        %v1322 = vmax.f32 %v1196, %v1290
        %v1323 = vmax.f32 %v1201, %v1291
        %v1324 = vmax.f32 %v1204, %v1292
        %v1325 = vmax.f32 %v1209, %v1293
        %v1326 = vmax.f32 %v1212, %v1294
        %v1327 = vmax.f32 %v1217, %v1295
        %v1328 = vmax.f32 %v1220, %v1296
        %v1329 = vmax.f32 %v1225, %v1297
        %v1330 = vmax.f32 %v1228, %v1298
        %v1331 = vmax.f32 %v1233, %v1299
        %v1332 = vmax.f32 %v1236, %v1300
        %v1333 = vmax.f32 %v1241, %v1301
        %v1334 = vmax.f32 %v1244, %v1302
        %v1335 = vmax.f32 %v1249, %v1303
        %v1336 = vmax.f32 %v1252, %v1304
        %v1337 = vmax.f32 %v1257, %v1305
        %v1338 = vmax.f32 %v1260, %v1306
        %v1339 = vmax.f32 %v1265, %v1307
        %v1340 = vmax.f32 %v1268, %v1308
        %v1341 = vmax.f32 %v1273, %v1309
        %v1342 = vmax.f32 %v1276, %v1310
        %v1343 = vpack.c.bf16 %v1312, %v1311
        %v1344 = vpack.c.bf16 %v1314, %v1313
        %v1345 = vpack.c.bf16 %v1316, %v1315
        %v1346 = vpack.c.bf16 %v1318, %v1317
        %v1347 = vpack.c.bf16 %v1320, %v1319
        %v1348 = vpack.c.bf16 %v1322, %v1321
        %v1349 = vpack.c.bf16 %v1324, %v1323
        %v1350 = vpack.c.bf16 %v1326, %v1325
        %v1351 = vpack.c.bf16 %v1328, %v1327
        %v1352 = vpack.c.bf16 %v1330, %v1329
        %v1353 = vpack.c.bf16 %v1332, %v1331
        %v1354 = vpack.c.bf16 %v1334, %v1333
        %v1355 = vpack.c.bf16 %v1336, %v1335
        %v1356 = vpack.c.bf16 %v1338, %v1337
        %v1357 = vpack.c.bf16 %v1340, %v1339
        %v1358 = vpack.c.bf16 %v1342, %v1341
        %s1359 = scalar_lea.vmem %s3, 16
        %v1360 = vld [vmem:[%s1359] sm:$0xf]
        %v1361 = vld [vmem:[%s1359 + $0x4] sm:$0xf]
        %v1362 = vld [vmem:[%s1359 + $0x8] sm:$0xf]
        %v1363 = vld [vmem:[%s1359 + $0xc] sm:$0xf]
        %s1364 = scalar_lea.vmem %s4, 1
        %v1365 = vld [vmem:[%s1364] sm:$0x1]
        %v1367 = vlaneseq
        %v1368 = vshrl.u32 %v1367, 7
        %v1369 = vsub.s32 0, %v1368
        %v1370 = vrot.slane %v1365, %v1369
        %v1376 = vunpack.c.l.b16 %v1360
        %v1377 = vunpack.c.l.b16 %v1361
        %v1378 = vunpack.c.l.b16 %v1362
        %v1379 = vunpack.c.l.b16 %v1363
        %v1380 = vpack.c.b16 %v1377, %v1376
        %v1381 = vpack.c.b16 %v1379, %v1378
        %v1385 = vsel %vm1069, %v1343, 0
        %v1388 = vsel %vm1069, %v1344, 0
        %v1391 = vsel %vm1069, %v1345, 0
        %v1394 = vsel %vm1069, %v1346, 0
        %v1397 = vsel %vm1069, %v1347, 0
        %v1400 = vsel %vm1069, %v1348, 0
        %v1403 = vsel %vm1069, %v1349, 0
        %v1406 = vsel %vm1069, %v1350, 0
        %v1409 = vsel %vm1069, %v1351, 0
        %v1412 = vsel %vm1069, %v1352, 0
        %v1415 = vsel %vm1069, %v1353, 0
        %v1418 = vsel %vm1069, %v1354, 0
        %v1421 = vsel %vm1069, %v1355, 0
        %v1424 = vsel %vm1069, %v1356, 0
        %v1427 = vsel %vm1069, %v1357, 0
        %v1430 = vsel %vm1069, %v1358, 0
        %1432 = vmatprep.subr.bf16.mxu0 0
        %1433 = vmatpush1.bf16.msra.mxu0 0
        %1434 = vmatprep.subr.bf16.mxu0 0
        %1435 = vmatpush1.bf16.msra.mxu0 0
        %1436 = vmatprep.subr.bf16.mxu0 0
        %1437 = vmatpush1.bf16.msra.mxu0 0
        %1438 = vmatprep.subr.bf16.mxu0 0
        %1439 = vmatpush1.bf16.msra.mxu0 0
        %1440 = vmatprep.subr.bf16.mxu0 0
        %1441 = vmatpush1.bf16.msra.mxu0 0
        %1442 = vmatprep.subr.bf16.mxu0 0
        %1443 = vmatpush1.bf16.msra.mxu0 0
        %1444 = vmatprep.subr.bf16.mxu0 0
        %1445 = vmatpush1.bf16.msra.mxu0 %v1381
        %1446 = vmatprep.subr.bf16.mxu0 0
        %1447 = vmatpush1.bf16.msra.mxu0 %v1380
        %1448 = vmatprep.subr.bf16.mxu0 0
        %1449 = vmatpush2.bf16.msra.mxu0 0
        %1450 = vmatprep.subr.bf16.mxu0 0
        %1451 = vmatpush2.bf16.msra.mxu0 0
        %1452 = vmatprep.subr.bf16.mxu0 0
        %1453 = vmatpush2.bf16.msra.mxu0 0
        %1454 = vmatprep.subr.bf16.mxu0 0
        %1455 = vmatpush2.bf16.msra.mxu0 0
        %1456 = vmatprep.subr.bf16.mxu0 0
        %1457 = vmatpush2.bf16.msra.mxu0 0
        %1458 = vmatprep.subr.bf16.mxu0 0
        %1459 = vmatpush2.bf16.msra.mxu0 0
        %1460 = vmatprep.subr.bf16.mxu0 0
        %1461 = vmatpush2.bf16.msra.mxu0 0
        %1462 = vmatprep.subr.bf16.mxu0 0
        %1463 = vmatpush2.bf16.msra.mxu0 0
        %1464 = vmatprep.mubr.bf16.mxu0 0
        %1465 = vmatmul.mubr.bf16.gmra.mxu0 %v1385
        %v1466 = vpop.f32.mrf.mxu0
        %v1467 = vadd.f32 %v1370, %v1466
        %v1468 = vpop.f32.mrf.mxu0
        %v1469 = vpop.f32.mrf.mxu0
        %v1470 = vadd.f32 %v1370, %v1469
        %v1471 = vpop.f32.mrf.mxu0
        %1472 = vmatprep.mubr.bf16.mxu0 0
        %1473 = vmatmul.mubr.bf16.gmra.mxu0 %v1388
        %v1474 = vpop.f32.mrf.mxu0
        %v1475 = vadd.f32 %v1370, %v1474
        %v1476 = vpop.f32.mrf.mxu0
        %v1477 = vpop.f32.mrf.mxu0
        %v1478 = vadd.f32 %v1370, %v1477
        %v1479 = vpop.f32.mrf.mxu0
        %1480 = vmatprep.mubr.bf16.mxu0 0
        %1481 = vmatmul.mubr.bf16.gmra.mxu0 %v1391
        %v1482 = vpop.f32.mrf.mxu0
        %v1483 = vadd.f32 %v1370, %v1482
        %v1484 = vpop.f32.mrf.mxu0
        %v1485 = vpop.f32.mrf.mxu0
        %v1486 = vadd.f32 %v1370, %v1485
        %v1487 = vpop.f32.mrf.mxu0
        %1488 = vmatprep.mubr.bf16.mxu0 0
        %1489 = vmatmul.mubr.bf16.gmra.mxu0 %v1394
        %v1490 = vpop.f32.mrf.mxu0
        %v1491 = vadd.f32 %v1370, %v1490
        %v1492 = vpop.f32.mrf.mxu0
        %v1493 = vpop.f32.mrf.mxu0
        %v1494 = vadd.f32 %v1370, %v1493
        %v1495 = vpop.f32.mrf.mxu0
        %1496 = vmatprep.mubr.bf16.mxu0 0
        %1497 = vmatmul.mubr.bf16.gmra.mxu0 %v1397
        %v1498 = vpop.f32.mrf.mxu0
        %v1499 = vadd.f32 %v1370, %v1498
        %v1500 = vpop.f32.mrf.mxu0
        %v1501 = vpop.f32.mrf.mxu0
        %v1502 = vadd.f32 %v1370, %v1501
        %v1503 = vpop.f32.mrf.mxu0
        %1504 = vmatprep.mubr.bf16.mxu0 0
        %1505 = vmatmul.mubr.bf16.gmra.mxu0 %v1400
        %v1506 = vpop.f32.mrf.mxu0
        %v1507 = vadd.f32 %v1370, %v1506
        %v1508 = vpop.f32.mrf.mxu0
        %v1509 = vpop.f32.mrf.mxu0
        %v1510 = vadd.f32 %v1370, %v1509
        %v1511 = vpop.f32.mrf.mxu0
        %1512 = vmatprep.mubr.bf16.mxu0 0
        %1513 = vmatmul.mubr.bf16.gmra.mxu0 %v1403
        %v1514 = vpop.f32.mrf.mxu0
        %v1515 = vadd.f32 %v1370, %v1514
        %v1516 = vpop.f32.mrf.mxu0
        %v1517 = vpop.f32.mrf.mxu0
        %v1518 = vadd.f32 %v1370, %v1517
        %v1519 = vpop.f32.mrf.mxu0
        %1520 = vmatprep.mubr.bf16.mxu0 0
        %1521 = vmatmul.mubr.bf16.gmra.mxu0 %v1406
        %v1522 = vpop.f32.mrf.mxu0
        %v1523 = vadd.f32 %v1370, %v1522
        %v1524 = vpop.f32.mrf.mxu0
        %v1525 = vpop.f32.mrf.mxu0
        %v1526 = vadd.f32 %v1370, %v1525
        %v1527 = vpop.f32.mrf.mxu0
        %1528 = vmatprep.mubr.bf16.mxu0 0
        %1529 = vmatmul.mubr.bf16.gmra.mxu0 %v1409
        %v1530 = vpop.f32.mrf.mxu0
        %v1531 = vadd.f32 %v1370, %v1530
        %v1532 = vpop.f32.mrf.mxu0
        %v1533 = vpop.f32.mrf.mxu0
        %v1534 = vadd.f32 %v1370, %v1533
        %v1535 = vpop.f32.mrf.mxu0
        %1536 = vmatprep.mubr.bf16.mxu0 0
        %1537 = vmatmul.mubr.bf16.gmra.mxu0 %v1412
        %v1538 = vpop.f32.mrf.mxu0
        %v1539 = vadd.f32 %v1370, %v1538
        %v1540 = vpop.f32.mrf.mxu0
        %v1541 = vpop.f32.mrf.mxu0
        %v1542 = vadd.f32 %v1370, %v1541
        %v1543 = vpop.f32.mrf.mxu0
        %1544 = vmatprep.mubr.bf16.mxu0 0
        %1545 = vmatmul.mubr.bf16.gmra.mxu0 %v1415
        %v1546 = vpop.f32.mrf.mxu0
        %v1547 = vadd.f32 %v1370, %v1546
        %v1548 = vpop.f32.mrf.mxu0
        %v1549 = vpop.f32.mrf.mxu0
        %v1550 = vadd.f32 %v1370, %v1549
        %v1551 = vpop.f32.mrf.mxu0
        %1552 = vmatprep.mubr.bf16.mxu0 0
        %1553 = vmatmul.mubr.bf16.gmra.mxu0 %v1418
        %v1554 = vpop.f32.mrf.mxu0
        %v1555 = vadd.f32 %v1370, %v1554
        %v1556 = vpop.f32.mrf.mxu0
        %v1557 = vpop.f32.mrf.mxu0
        %v1558 = vadd.f32 %v1370, %v1557
        %v1559 = vpop.f32.mrf.mxu0
        %1560 = vmatprep.mubr.bf16.mxu0 0
        %1561 = vmatmul.mubr.bf16.gmra.mxu0 %v1421
        %v1562 = vpop.f32.mrf.mxu0
        %v1563 = vadd.f32 %v1370, %v1562
        %v1564 = vpop.f32.mrf.mxu0
        %v1565 = vpop.f32.mrf.mxu0
        %v1566 = vadd.f32 %v1370, %v1565
        %v1567 = vpop.f32.mrf.mxu0
        %1568 = vmatprep.mubr.bf16.mxu0 0
        %1569 = vmatmul.mubr.bf16.gmra.mxu0 %v1424
        %v1570 = vpop.f32.mrf.mxu0
        %v1571 = vadd.f32 %v1370, %v1570
        %v1572 = vpop.f32.mrf.mxu0
        %v1573 = vpop.f32.mrf.mxu0
        %v1574 = vadd.f32 %v1370, %v1573
        %v1575 = vpop.f32.mrf.mxu0
        %1576 = vmatprep.mubr.bf16.mxu0 0
        %1577 = vmatmul.mubr.bf16.gmra.mxu0 %v1427
        %v1578 = vpop.f32.mrf.mxu0
        %v1579 = vadd.f32 %v1370, %v1578
        %v1580 = vpop.f32.mrf.mxu0
        %v1581 = vpop.f32.mrf.mxu0
        %v1582 = vadd.f32 %v1370, %v1581
        %v1583 = vpop.f32.mrf.mxu0
        %1584 = vmatprep.mubr.bf16.mxu0 0
        %1585 = vmatmul.mubr.bf16.gmra.mxu0 %v1430
        %v1586 = vpop.f32.mrf.mxu0
        %v1587 = vadd.f32 %v1370, %v1586
        %v1588 = vpop.f32.mrf.mxu0
        %v1589 = vpop.f32.mrf.mxu0
        %v1590 = vadd.f32 %v1370, %v1589
        %v1591 = vpop.f32.mrf.mxu0
        %1592 = vdwg.mxu0
        %v1593 = vmul.f32 %v1467, 0.01
        %v1594 = vmul.f32 %v1470, 0.01
        %v1595 = vmul.f32 %v1475, 0.01
        %v1596 = vmul.f32 %v1478, 0.01
        %v1597 = vmul.f32 %v1483, 0.01
        %v1598 = vmul.f32 %v1486, 0.01
        %v1599 = vmul.f32 %v1491, 0.01
        %v1600 = vmul.f32 %v1494, 0.01
        %v1601 = vmul.f32 %v1499, 0.01
        %v1602 = vmul.f32 %v1502, 0.01
        %v1603 = vmul.f32 %v1507, 0.01
        %v1604 = vmul.f32 %v1510, 0.01
        %v1605 = vmul.f32 %v1515, 0.01
        %v1606 = vmul.f32 %v1518, 0.01
        %v1607 = vmul.f32 %v1523, 0.01
        %v1608 = vmul.f32 %v1526, 0.01
        %v1609 = vmul.f32 %v1531, 0.01
        %v1610 = vmul.f32 %v1534, 0.01
        %v1611 = vmul.f32 %v1539, 0.01
        %v1612 = vmul.f32 %v1542, 0.01
        %v1613 = vmul.f32 %v1547, 0.01
        %v1614 = vmul.f32 %v1550, 0.01
        %v1615 = vmul.f32 %v1555, 0.01
        %v1616 = vmul.f32 %v1558, 0.01
        %v1617 = vmul.f32 %v1563, 0.01
        %v1618 = vmul.f32 %v1566, 0.01
        %v1619 = vmul.f32 %v1571, 0.01
        %v1620 = vmul.f32 %v1574, 0.01
        %v1621 = vmul.f32 %v1579, 0.01
        %v1622 = vmul.f32 %v1582, 0.01
        %v1623 = vmul.f32 %v1587, 0.01
        %v1624 = vmul.f32 %v1590, 0.01
        %v1625 = vmax.f32 %v1467, %v1593
        %v1626 = vmax.f32 %v1470, %v1594
        %v1627 = vmax.f32 %v1475, %v1595
        %v1628 = vmax.f32 %v1478, %v1596
        %v1629 = vmax.f32 %v1483, %v1597
        %v1630 = vmax.f32 %v1486, %v1598
        %v1631 = vmax.f32 %v1491, %v1599
        %v1632 = vmax.f32 %v1494, %v1600
        %v1633 = vmax.f32 %v1499, %v1601
        %v1634 = vmax.f32 %v1502, %v1602
        %v1635 = vmax.f32 %v1507, %v1603
        %v1636 = vmax.f32 %v1510, %v1604
        %v1637 = vmax.f32 %v1515, %v1605
        %v1638 = vmax.f32 %v1518, %v1606
        %v1639 = vmax.f32 %v1523, %v1607
        %v1640 = vmax.f32 %v1526, %v1608
        %v1641 = vmax.f32 %v1531, %v1609
        %v1642 = vmax.f32 %v1534, %v1610
        %v1643 = vmax.f32 %v1539, %v1611
        %v1644 = vmax.f32 %v1542, %v1612
        %v1645 = vmax.f32 %v1547, %v1613
        %v1646 = vmax.f32 %v1550, %v1614
        %v1647 = vmax.f32 %v1555, %v1615
        %v1648 = vmax.f32 %v1558, %v1616
        %v1649 = vmax.f32 %v1563, %v1617
        %v1650 = vmax.f32 %v1566, %v1618
        %v1651 = vmax.f32 %v1571, %v1619
        %v1652 = vmax.f32 %v1574, %v1620
        %v1653 = vmax.f32 %v1579, %v1621
        %v1654 = vmax.f32 %v1582, %v1622
        %v1655 = vmax.f32 %v1587, %v1623
        %v1656 = vmax.f32 %v1590, %v1624
        %v1657 = vpack.c.bf16 %v1626, %v1625
        %v1658 = vpack.c.bf16 %v1628, %v1627
        %v1659 = vpack.c.bf16 %v1630, %v1629
        %v1660 = vpack.c.bf16 %v1632, %v1631
        %v1661 = vpack.c.bf16 %v1634, %v1633
        %v1662 = vpack.c.bf16 %v1636, %v1635
        %v1663 = vpack.c.bf16 %v1638, %v1637
        %v1664 = vpack.c.bf16 %v1640, %v1639
        %v1665 = vpack.c.bf16 %v1642, %v1641
        %v1666 = vpack.c.bf16 %v1644, %v1643
        %v1667 = vpack.c.bf16 %v1646, %v1645
        %v1668 = vpack.c.bf16 %v1648, %v1647
        %v1669 = vpack.c.bf16 %v1650, %v1649
        %v1670 = vpack.c.bf16 %v1652, %v1651
        %v1671 = vpack.c.bf16 %v1654, %v1653
        %v1672 = vpack.c.bf16 %v1656, %v1655
        %s1673 = scalar_lea.vmem %s3, 32
        %v1674 = vld [vmem:[%s1673] sm:$0xf]
        %v1675 = vld [vmem:[%s1673 + $0x4] sm:$0xf]
        %v1676 = vld [vmem:[%s1673 + $0x8] sm:$0xf]
        %v1677 = vld [vmem:[%s1673 + $0xc] sm:$0xf]
        %s1678 = scalar_lea.vmem %s4, 2
        %v1679 = vld [vmem:[%s1678] sm:$0x1]
        %v1681 = vlaneseq
        %v1682 = vshrl.u32 %v1681, 7
        %v1683 = vsub.s32 0, %v1682
        %v1684 = vrot.slane %v1679, %v1683
        %v1690 = vunpack.c.l.b16 %v1674
        %v1691 = vunpack.c.l.b16 %v1675
        %v1692 = vunpack.c.l.b16 %v1676
        %v1693 = vunpack.c.l.b16 %v1677
        %v1694 = vpack.c.b16 %v1691, %v1690
        %v1695 = vpack.c.b16 %v1693, %v1692
        %v1699 = vsel %vm1069, %v1657, 0
        %v1702 = vsel %vm1069, %v1658, 0
        %v1705 = vsel %vm1069, %v1659, 0
        %v1708 = vsel %vm1069, %v1660, 0
        %v1711 = vsel %vm1069, %v1661, 0
        %v1714 = vsel %vm1069, %v1662, 0
        %v1717 = vsel %vm1069, %v1663, 0
        %v1720 = vsel %vm1069, %v1664, 0
        %v1723 = vsel %vm1069, %v1665, 0
        %v1726 = vsel %vm1069, %v1666, 0
        %v1729 = vsel %vm1069, %v1667, 0
        %v1732 = vsel %vm1069, %v1668, 0
        %v1735 = vsel %vm1069, %v1669, 0
        %v1738 = vsel %vm1069, %v1670, 0
        %v1741 = vsel %vm1069, %v1671, 0
        %v1744 = vsel %vm1069, %v1672, 0
        %1746 = vmatprep.subr.bf16.mxu0 0
        %1747 = vmatpush1.bf16.msra.mxu0 0
        %1748 = vmatprep.subr.bf16.mxu0 0
        %1749 = vmatpush1.bf16.msra.mxu0 0
        %1750 = vmatprep.subr.bf16.mxu0 0
        %1751 = vmatpush1.bf16.msra.mxu0 0
        %1752 = vmatprep.subr.bf16.mxu0 0
        %1753 = vmatpush1.bf16.msra.mxu0 0
        %1754 = vmatprep.subr.bf16.mxu0 0
        %1755 = vmatpush1.bf16.msra.mxu0 0
        %1756 = vmatprep.subr.bf16.mxu0 0
        %1757 = vmatpush1.bf16.msra.mxu0 0
        %1758 = vmatprep.subr.bf16.mxu0 0
        %1759 = vmatpush1.bf16.msra.mxu0 %v1695
        %1760 = vmatprep.subr.bf16.mxu0 0
        %1761 = vmatpush1.bf16.msra.mxu0 %v1694
        %1762 = vmatprep.subr.bf16.mxu0 0
        %1763 = vmatpush2.bf16.msra.mxu0 0
        %1764 = vmatprep.subr.bf16.mxu0 0
        %1765 = vmatpush2.bf16.msra.mxu0 0
        %1766 = vmatprep.subr.bf16.mxu0 0
        %1767 = vmatpush2.bf16.msra.mxu0 0
        %1768 = vmatprep.subr.bf16.mxu0 0
        %1769 = vmatpush2.bf16.msra.mxu0 0
        %1770 = vmatprep.subr.bf16.mxu0 0
        %1771 = vmatpush2.bf16.msra.mxu0 0
        %1772 = vmatprep.subr.bf16.mxu0 0
        %1773 = vmatpush2.bf16.msra.mxu0 0
        %1774 = vmatprep.subr.bf16.mxu0 0
        %1775 = vmatpush2.bf16.msra.mxu0 0
        %1776 = vmatprep.subr.bf16.mxu0 0
        %1777 = vmatpush2.bf16.msra.mxu0 0
        %1778 = vmatprep.mubr.bf16.mxu0 0
        %1779 = vmatmul.mubr.bf16.gmra.mxu0 %v1699
        %v1780 = vpop.f32.mrf.mxu0
        %v1781 = vadd.f32 %v1684, %v1780
        %v1782 = vpop.f32.mrf.mxu0
        %v1783 = vpop.f32.mrf.mxu0
        %v1784 = vadd.f32 %v1684, %v1783
        %v1785 = vpop.f32.mrf.mxu0
        %1786 = vmatprep.mubr.bf16.mxu0 0
        %1787 = vmatmul.mubr.bf16.gmra.mxu0 %v1702
        %v1788 = vpop.f32.mrf.mxu0
        %v1789 = vadd.f32 %v1684, %v1788
        %v1790 = vpop.f32.mrf.mxu0
        %v1791 = vpop.f32.mrf.mxu0
        %v1792 = vadd.f32 %v1684, %v1791
        %v1793 = vpop.f32.mrf.mxu0
        %1794 = vmatprep.mubr.bf16.mxu0 0
        %1795 = vmatmul.mubr.bf16.gmra.mxu0 %v1705
        %v1796 = vpop.f32.mrf.mxu0
        %v1797 = vadd.f32 %v1684, %v1796
        %v1798 = vpop.f32.mrf.mxu0
        %v1799 = vpop.f32.mrf.mxu0
        %v1800 = vadd.f32 %v1684, %v1799
        %v1801 = vpop.f32.mrf.mxu0
        %1802 = vmatprep.mubr.bf16.mxu0 0
        %1803 = vmatmul.mubr.bf16.gmra.mxu0 %v1708
        %v1804 = vpop.f32.mrf.mxu0
        %v1805 = vadd.f32 %v1684, %v1804
        %v1806 = vpop.f32.mrf.mxu0
        %v1807 = vpop.f32.mrf.mxu0
        %v1808 = vadd.f32 %v1684, %v1807
        %v1809 = vpop.f32.mrf.mxu0
        %1810 = vmatprep.mubr.bf16.mxu0 0
        %1811 = vmatmul.mubr.bf16.gmra.mxu0 %v1711
        %v1812 = vpop.f32.mrf.mxu0
        %v1813 = vadd.f32 %v1684, %v1812
        %v1814 = vpop.f32.mrf.mxu0
        %v1815 = vpop.f32.mrf.mxu0
        %v1816 = vadd.f32 %v1684, %v1815
        %v1817 = vpop.f32.mrf.mxu0
        %1818 = vmatprep.mubr.bf16.mxu0 0
        %1819 = vmatmul.mubr.bf16.gmra.mxu0 %v1714
        %v1820 = vpop.f32.mrf.mxu0
        %v1821 = vadd.f32 %v1684, %v1820
        %v1822 = vpop.f32.mrf.mxu0
        %v1823 = vpop.f32.mrf.mxu0
        %v1824 = vadd.f32 %v1684, %v1823
        %v1825 = vpop.f32.mrf.mxu0
        %1826 = vmatprep.mubr.bf16.mxu0 0
        %1827 = vmatmul.mubr.bf16.gmra.mxu0 %v1717
        %v1828 = vpop.f32.mrf.mxu0
        %v1829 = vadd.f32 %v1684, %v1828
        %v1830 = vpop.f32.mrf.mxu0
        %v1831 = vpop.f32.mrf.mxu0
        %v1832 = vadd.f32 %v1684, %v1831
        %v1833 = vpop.f32.mrf.mxu0
        %1834 = vmatprep.mubr.bf16.mxu0 0
        %1835 = vmatmul.mubr.bf16.gmra.mxu0 %v1720
        %v1836 = vpop.f32.mrf.mxu0
        %v1837 = vadd.f32 %v1684, %v1836
        %v1838 = vpop.f32.mrf.mxu0
        %v1839 = vpop.f32.mrf.mxu0
        %v1840 = vadd.f32 %v1684, %v1839
        %v1841 = vpop.f32.mrf.mxu0
        %1842 = vmatprep.mubr.bf16.mxu0 0
        %1843 = vmatmul.mubr.bf16.gmra.mxu0 %v1723
        %v1844 = vpop.f32.mrf.mxu0
        %v1845 = vadd.f32 %v1684, %v1844
        %v1846 = vpop.f32.mrf.mxu0
        %v1847 = vpop.f32.mrf.mxu0
        %v1848 = vadd.f32 %v1684, %v1847
        %v1849 = vpop.f32.mrf.mxu0
        %1850 = vmatprep.mubr.bf16.mxu0 0
        %1851 = vmatmul.mubr.bf16.gmra.mxu0 %v1726
        %v1852 = vpop.f32.mrf.mxu0
        %v1853 = vadd.f32 %v1684, %v1852
        %v1854 = vpop.f32.mrf.mxu0
        %v1855 = vpop.f32.mrf.mxu0
        %v1856 = vadd.f32 %v1684, %v1855
        %v1857 = vpop.f32.mrf.mxu0
        %1858 = vmatprep.mubr.bf16.mxu0 0
        %1859 = vmatmul.mubr.bf16.gmra.mxu0 %v1729
        %v1860 = vpop.f32.mrf.mxu0
        %v1861 = vadd.f32 %v1684, %v1860
        %v1862 = vpop.f32.mrf.mxu0
        %v1863 = vpop.f32.mrf.mxu0
        %v1864 = vadd.f32 %v1684, %v1863
        %v1865 = vpop.f32.mrf.mxu0
        %1866 = vmatprep.mubr.bf16.mxu0 0
        %1867 = vmatmul.mubr.bf16.gmra.mxu0 %v1732
        %v1868 = vpop.f32.mrf.mxu0
        %v1869 = vadd.f32 %v1684, %v1868
        %v1870 = vpop.f32.mrf.mxu0
        %v1871 = vpop.f32.mrf.mxu0
        %v1872 = vadd.f32 %v1684, %v1871
        %v1873 = vpop.f32.mrf.mxu0
        %1874 = vmatprep.mubr.bf16.mxu0 0
        %1875 = vmatmul.mubr.bf16.gmra.mxu0 %v1735
        %v1876 = vpop.f32.mrf.mxu0
        %v1877 = vadd.f32 %v1684, %v1876
        %v1878 = vpop.f32.mrf.mxu0
        %v1879 = vpop.f32.mrf.mxu0
        %v1880 = vadd.f32 %v1684, %v1879
        %v1881 = vpop.f32.mrf.mxu0
        %1882 = vmatprep.mubr.bf16.mxu0 0
        %1883 = vmatmul.mubr.bf16.gmra.mxu0 %v1738
        %v1884 = vpop.f32.mrf.mxu0
        %v1885 = vadd.f32 %v1684, %v1884
        %v1886 = vpop.f32.mrf.mxu0
        %v1887 = vpop.f32.mrf.mxu0
        %v1888 = vadd.f32 %v1684, %v1887
        %v1889 = vpop.f32.mrf.mxu0
        %1890 = vmatprep.mubr.bf16.mxu0 0
        %1891 = vmatmul.mubr.bf16.gmra.mxu0 %v1741
        %v1892 = vpop.f32.mrf.mxu0
        %v1893 = vadd.f32 %v1684, %v1892
        %v1894 = vpop.f32.mrf.mxu0
        %v1895 = vpop.f32.mrf.mxu0
        %v1896 = vadd.f32 %v1684, %v1895
        %v1897 = vpop.f32.mrf.mxu0
        %1898 = vmatprep.mubr.bf16.mxu0 0
        %1899 = vmatmul.mubr.bf16.gmra.mxu0 %v1744
        %v1900 = vpop.f32.mrf.mxu0
        %v1901 = vadd.f32 %v1684, %v1900
        %v1902 = vpop.f32.mrf.mxu0
        %v1903 = vpop.f32.mrf.mxu0
        %v1904 = vadd.f32 %v1684, %v1903
        %v1905 = vpop.f32.mrf.mxu0
        %1906 = vdwg.mxu0
        %v1907 = vmul.f32 %v1781, 0.01
        %v1908 = vmul.f32 %v1784, 0.01
        %v1909 = vmul.f32 %v1789, 0.01
        %v1910 = vmul.f32 %v1792, 0.01
        %v1911 = vmul.f32 %v1797, 0.01
        %v1912 = vmul.f32 %v1800, 0.01
        %v1913 = vmul.f32 %v1805, 0.01
        %v1914 = vmul.f32 %v1808, 0.01
        %v1915 = vmul.f32 %v1813, 0.01
        %v1916 = vmul.f32 %v1816, 0.01
        %v1917 = vmul.f32 %v1821, 0.01
        %v1918 = vmul.f32 %v1824, 0.01
        %v1919 = vmul.f32 %v1829, 0.01
        %v1920 = vmul.f32 %v1832, 0.01
        %v1921 = vmul.f32 %v1837, 0.01
        %v1922 = vmul.f32 %v1840, 0.01
        %v1923 = vmul.f32 %v1845, 0.01
        %v1924 = vmul.f32 %v1848, 0.01
        %v1925 = vmul.f32 %v1853, 0.01
        %v1926 = vmul.f32 %v1856, 0.01
        %v1927 = vmul.f32 %v1861, 0.01
        %v1928 = vmul.f32 %v1864, 0.01
        %v1929 = vmul.f32 %v1869, 0.01
        %v1930 = vmul.f32 %v1872, 0.01
        %v1931 = vmul.f32 %v1877, 0.01
        %v1932 = vmul.f32 %v1880, 0.01
        %v1933 = vmul.f32 %v1885, 0.01
        %v1934 = vmul.f32 %v1888, 0.01
        %v1935 = vmul.f32 %v1893, 0.01
        %v1936 = vmul.f32 %v1896, 0.01
        %v1937 = vmul.f32 %v1901, 0.01
        %v1938 = vmul.f32 %v1904, 0.01
        %v1939 = vmax.f32 %v1781, %v1907
        %v1940 = vmax.f32 %v1784, %v1908
        %v1941 = vmax.f32 %v1789, %v1909
        %v1942 = vmax.f32 %v1792, %v1910
        %v1943 = vmax.f32 %v1797, %v1911
        %v1944 = vmax.f32 %v1800, %v1912
        %v1945 = vmax.f32 %v1805, %v1913
        %v1946 = vmax.f32 %v1808, %v1914
        %v1947 = vmax.f32 %v1813, %v1915
        %v1948 = vmax.f32 %v1816, %v1916
        %v1949 = vmax.f32 %v1821, %v1917
        %v1950 = vmax.f32 %v1824, %v1918
        %v1951 = vmax.f32 %v1829, %v1919
        %v1952 = vmax.f32 %v1832, %v1920
        %v1953 = vmax.f32 %v1837, %v1921
        %v1954 = vmax.f32 %v1840, %v1922
        %v1955 = vmax.f32 %v1845, %v1923
        %v1956 = vmax.f32 %v1848, %v1924
        %v1957 = vmax.f32 %v1853, %v1925
        %v1958 = vmax.f32 %v1856, %v1926
        %v1959 = vmax.f32 %v1861, %v1927
        %v1960 = vmax.f32 %v1864, %v1928
        %v1961 = vmax.f32 %v1869, %v1929
        %v1962 = vmax.f32 %v1872, %v1930
        %v1963 = vmax.f32 %v1877, %v1931
        %v1964 = vmax.f32 %v1880, %v1932
        %v1965 = vmax.f32 %v1885, %v1933
        %v1966 = vmax.f32 %v1888, %v1934
        %v1967 = vmax.f32 %v1893, %v1935
        %v1968 = vmax.f32 %v1896, %v1936
        %v1969 = vmax.f32 %v1901, %v1937
        %v1970 = vmax.f32 %v1904, %v1938
        %v1971 = vpack.c.bf16 %v1940, %v1939
        %v1972 = vpack.c.bf16 %v1942, %v1941
        %v1973 = vpack.c.bf16 %v1944, %v1943
        %v1974 = vpack.c.bf16 %v1946, %v1945
        %v1975 = vpack.c.bf16 %v1948, %v1947
        %v1976 = vpack.c.bf16 %v1950, %v1949
        %v1977 = vpack.c.bf16 %v1952, %v1951
        %v1978 = vpack.c.bf16 %v1954, %v1953
        %v1979 = vpack.c.bf16 %v1956, %v1955
        %v1980 = vpack.c.bf16 %v1958, %v1957
        %v1981 = vpack.c.bf16 %v1960, %v1959
        %v1982 = vpack.c.bf16 %v1962, %v1961
        %v1983 = vpack.c.bf16 %v1964, %v1963
        %v1984 = vpack.c.bf16 %v1966, %v1965
        %v1985 = vpack.c.bf16 %v1968, %v1967
        %v1986 = vpack.c.bf16 %v1970, %v1969
        %s1987 = scalar_lea.vmem %s3, 48
        %v1988 = vld [vmem:[%s1987] sm:$0xf]
        %v1989 = vld [vmem:[%s1987 + $0x4] sm:$0xf]
        %v1990 = vld [vmem:[%s1987 + $0x8] sm:$0xf]
        %v1991 = vld [vmem:[%s1987 + $0xc] sm:$0xf]
        %s1992 = scalar_lea.vmem %s4, 3
        %v1993 = vld [vmem:[%s1992] sm:$0x1]
        %v1995 = vlaneseq
        %v1996 = vshrl.u32 %v1995, 7
        %v1997 = vsub.s32 0, %v1996
        %v1998 = vrot.slane %v1993, %v1997
        %v2004 = vunpack.c.l.b16 %v1988
        %v2005 = vunpack.c.l.b16 %v1989
        %v2006 = vunpack.c.l.b16 %v1990
        %v2007 = vunpack.c.l.b16 %v1991
        %v2008 = vpack.c.b16 %v2005, %v2004
        %v2009 = vpack.c.b16 %v2007, %v2006
        %v2013 = vsel %vm1069, %v1971, 0
        %v2016 = vsel %vm1069, %v1972, 0
        %v2019 = vsel %vm1069, %v1973, 0
        %v2022 = vsel %vm1069, %v1974, 0
        %v2025 = vsel %vm1069, %v1975, 0
        %v2028 = vsel %vm1069, %v1976, 0
        %v2031 = vsel %vm1069, %v1977, 0
        %v2034 = vsel %vm1069, %v1978, 0
        %v2037 = vsel %vm1069, %v1979, 0
        %v2040 = vsel %vm1069, %v1980, 0
        %v2043 = vsel %vm1069, %v1981, 0
        %v2046 = vsel %vm1069, %v1982, 0
        %v2049 = vsel %vm1069, %v1983, 0
        %v2052 = vsel %vm1069, %v1984, 0
        %v2055 = vsel %vm1069, %v1985, 0
        %v2058 = vsel %vm1069, %v1986, 0
        %2060 = vmatprep.subr.bf16.mxu0 0
        %2061 = vmatpush1.bf16.msra.mxu0 0
        %2062 = vmatprep.subr.bf16.mxu0 0
        %2063 = vmatpush1.bf16.msra.mxu0 0
        %2064 = vmatprep.subr.bf16.mxu0 0
        %2065 = vmatpush1.bf16.msra.mxu0 0
        %2066 = vmatprep.subr.bf16.mxu0 0
        %2067 = vmatpush1.bf16.msra.mxu0 0
        %2068 = vmatprep.subr.bf16.mxu0 0
        %2069 = vmatpush1.bf16.msra.mxu0 0
        %2070 = vmatprep.subr.bf16.mxu0 0
        %2071 = vmatpush1.bf16.msra.mxu0 0
        %2072 = vmatprep.subr.bf16.mxu0 0
        %2073 = vmatpush1.bf16.msra.mxu0 %v2009
        %2074 = vmatprep.subr.bf16.mxu0 0
        %2075 = vmatpush1.bf16.msra.mxu0 %v2008
        %2076 = vmatprep.subr.bf16.mxu0 0
        %2077 = vmatpush2.bf16.msra.mxu0 0
        %2078 = vmatprep.subr.bf16.mxu0 0
        %2079 = vmatpush2.bf16.msra.mxu0 0
        %2080 = vmatprep.subr.bf16.mxu0 0
        %2081 = vmatpush2.bf16.msra.mxu0 0
        %2082 = vmatprep.subr.bf16.mxu0 0
        %2083 = vmatpush2.bf16.msra.mxu0 0
        %2084 = vmatprep.subr.bf16.mxu0 0
        %2085 = vmatpush2.bf16.msra.mxu0 0
        %2086 = vmatprep.subr.bf16.mxu0 0
        %2087 = vmatpush2.bf16.msra.mxu0 0
        %2088 = vmatprep.subr.bf16.mxu0 0
        %2089 = vmatpush2.bf16.msra.mxu0 0
        %2090 = vmatprep.subr.bf16.mxu0 0
        %2091 = vmatpush2.bf16.msra.mxu0 0
        %2092 = vmatprep.mubr.bf16.mxu0 0
        %2093 = vmatmul.mubr.bf16.gmra.mxu0 %v2013
        %v2094 = vpop.f32.mrf.mxu0
        %v2095 = vadd.f32 %v1998, %v2094
        %v2096 = vpop.f32.mrf.mxu0
        %v2097 = vpop.f32.mrf.mxu0
        %v2098 = vadd.f32 %v1998, %v2097
        %v2099 = vpop.f32.mrf.mxu0
        %2100 = vmatprep.mubr.bf16.mxu0 0
        %2101 = vmatmul.mubr.bf16.gmra.mxu0 %v2016
        %v2102 = vpop.f32.mrf.mxu0
        %v2103 = vadd.f32 %v1998, %v2102
        %v2104 = vpop.f32.mrf.mxu0
        %v2105 = vpop.f32.mrf.mxu0
        %v2106 = vadd.f32 %v1998, %v2105
        %v2107 = vpop.f32.mrf.mxu0
        %2108 = vmatprep.mubr.bf16.mxu0 0
        %2109 = vmatmul.mubr.bf16.gmra.mxu0 %v2019
        %v2110 = vpop.f32.mrf.mxu0
        %v2111 = vadd.f32 %v1998, %v2110
        %v2112 = vpop.f32.mrf.mxu0
        %v2113 = vpop.f32.mrf.mxu0
        %v2114 = vadd.f32 %v1998, %v2113
        %v2115 = vpop.f32.mrf.mxu0
        %2116 = vmatprep.mubr.bf16.mxu0 0
        %2117 = vmatmul.mubr.bf16.gmra.mxu0 %v2022
        %v2118 = vpop.f32.mrf.mxu0
        %v2119 = vadd.f32 %v1998, %v2118
        %v2120 = vpop.f32.mrf.mxu0
        %v2121 = vpop.f32.mrf.mxu0
        %v2122 = vadd.f32 %v1998, %v2121
        %v2123 = vpop.f32.mrf.mxu0
        %2124 = vmatprep.mubr.bf16.mxu0 0
        %2125 = vmatmul.mubr.bf16.gmra.mxu0 %v2025
        %v2126 = vpop.f32.mrf.mxu0
        %v2127 = vadd.f32 %v1998, %v2126
        %v2128 = vpop.f32.mrf.mxu0
        %v2129 = vpop.f32.mrf.mxu0
        %v2130 = vadd.f32 %v1998, %v2129
        %v2131 = vpop.f32.mrf.mxu0
        %2132 = vmatprep.mubr.bf16.mxu0 0
        %2133 = vmatmul.mubr.bf16.gmra.mxu0 %v2028
        %v2134 = vpop.f32.mrf.mxu0
        %v2135 = vadd.f32 %v1998, %v2134
        %v2136 = vpop.f32.mrf.mxu0
        %v2137 = vpop.f32.mrf.mxu0
        %v2138 = vadd.f32 %v1998, %v2137
        %v2139 = vpop.f32.mrf.mxu0
        %2140 = vmatprep.mubr.bf16.mxu0 0
        %2141 = vmatmul.mubr.bf16.gmra.mxu0 %v2031
        %v2142 = vpop.f32.mrf.mxu0
        %v2143 = vadd.f32 %v1998, %v2142
        %v2144 = vpop.f32.mrf.mxu0
        %v2145 = vpop.f32.mrf.mxu0
        %v2146 = vadd.f32 %v1998, %v2145
        %v2147 = vpop.f32.mrf.mxu0
        %2148 = vmatprep.mubr.bf16.mxu0 0
        %2149 = vmatmul.mubr.bf16.gmra.mxu0 %v2034
        %v2150 = vpop.f32.mrf.mxu0
        %v2151 = vadd.f32 %v1998, %v2150
        %v2152 = vpop.f32.mrf.mxu0
        %v2153 = vpop.f32.mrf.mxu0
        %v2154 = vadd.f32 %v1998, %v2153
        %v2155 = vpop.f32.mrf.mxu0
        %2156 = vmatprep.mubr.bf16.mxu0 0
        %2157 = vmatmul.mubr.bf16.gmra.mxu0 %v2037
        %v2158 = vpop.f32.mrf.mxu0
        %v2159 = vadd.f32 %v1998, %v2158
        %v2160 = vpop.f32.mrf.mxu0
        %v2161 = vpop.f32.mrf.mxu0
        %v2162 = vadd.f32 %v1998, %v2161
        %v2163 = vpop.f32.mrf.mxu0
        %2164 = vmatprep.mubr.bf16.mxu0 0
        %2165 = vmatmul.mubr.bf16.gmra.mxu0 %v2040
        %v2166 = vpop.f32.mrf.mxu0
        %v2167 = vadd.f32 %v1998, %v2166
        %v2168 = vpop.f32.mrf.mxu0
        %v2169 = vpop.f32.mrf.mxu0
        %v2170 = vadd.f32 %v1998, %v2169
        %v2171 = vpop.f32.mrf.mxu0
        %2172 = vmatprep.mubr.bf16.mxu0 0
        %2173 = vmatmul.mubr.bf16.gmra.mxu0 %v2043
        %v2174 = vpop.f32.mrf.mxu0
        %v2175 = vadd.f32 %v1998, %v2174
        %v2176 = vpop.f32.mrf.mxu0
        %v2177 = vpop.f32.mrf.mxu0
        %v2178 = vadd.f32 %v1998, %v2177
        %v2179 = vpop.f32.mrf.mxu0
        %2180 = vmatprep.mubr.bf16.mxu0 0
        %2181 = vmatmul.mubr.bf16.gmra.mxu0 %v2046
        %v2182 = vpop.f32.mrf.mxu0
        %v2183 = vadd.f32 %v1998, %v2182
        %v2184 = vpop.f32.mrf.mxu0
        %v2185 = vpop.f32.mrf.mxu0
        %v2186 = vadd.f32 %v1998, %v2185
        %v2187 = vpop.f32.mrf.mxu0
        %2188 = vmatprep.mubr.bf16.mxu0 0
        %2189 = vmatmul.mubr.bf16.gmra.mxu0 %v2049
        %v2190 = vpop.f32.mrf.mxu0
        %v2191 = vadd.f32 %v1998, %v2190
        %v2192 = vpop.f32.mrf.mxu0
        %v2193 = vpop.f32.mrf.mxu0
        %v2194 = vadd.f32 %v1998, %v2193
        %v2195 = vpop.f32.mrf.mxu0
        %2196 = vmatprep.mubr.bf16.mxu0 0
        %2197 = vmatmul.mubr.bf16.gmra.mxu0 %v2052
        %v2198 = vpop.f32.mrf.mxu0
        %v2199 = vadd.f32 %v1998, %v2198
        %v2200 = vpop.f32.mrf.mxu0
        %v2201 = vpop.f32.mrf.mxu0
        %v2202 = vadd.f32 %v1998, %v2201
        %v2203 = vpop.f32.mrf.mxu0
        %2204 = vmatprep.mubr.bf16.mxu0 0
        %2205 = vmatmul.mubr.bf16.gmra.mxu0 %v2055
        %v2206 = vpop.f32.mrf.mxu0
        %v2207 = vadd.f32 %v1998, %v2206
        %v2208 = vpop.f32.mrf.mxu0
        %v2209 = vpop.f32.mrf.mxu0
        %v2210 = vadd.f32 %v1998, %v2209
        %v2211 = vpop.f32.mrf.mxu0
        %2212 = vmatprep.mubr.bf16.mxu0 0
        %2213 = vmatmul.mubr.bf16.gmra.mxu0 %v2058
        %v2214 = vpop.f32.mrf.mxu0
        %v2215 = vadd.f32 %v1998, %v2214
        %v2216 = vpop.f32.mrf.mxu0
        %v2217 = vpop.f32.mrf.mxu0
        %v2218 = vadd.f32 %v1998, %v2217
        %v2219 = vpop.f32.mrf.mxu0
        %2220 = vdwg.mxu0
        %v2221 = vmul.f32 %v2095, 0.01
        %v2222 = vmul.f32 %v2098, 0.01
        %v2223 = vmul.f32 %v2103, 0.01
        %v2224 = vmul.f32 %v2106, 0.01
        %v2225 = vmul.f32 %v2111, 0.01
        %v2226 = vmul.f32 %v2114, 0.01
        %v2227 = vmul.f32 %v2119, 0.01
        %v2228 = vmul.f32 %v2122, 0.01
        %v2229 = vmul.f32 %v2127, 0.01
        %v2230 = vmul.f32 %v2130, 0.01
        %v2231 = vmul.f32 %v2135, 0.01
        %v2232 = vmul.f32 %v2138, 0.01
        %v2233 = vmul.f32 %v2143, 0.01
        %v2234 = vmul.f32 %v2146, 0.01
        %v2235 = vmul.f32 %v2151, 0.01
        %v2236 = vmul.f32 %v2154, 0.01
        %v2237 = vmul.f32 %v2159, 0.01
        %v2238 = vmul.f32 %v2162, 0.01
        %v2239 = vmul.f32 %v2167, 0.01
        %v2240 = vmul.f32 %v2170, 0.01
        %v2241 = vmul.f32 %v2175, 0.01
        %v2242 = vmul.f32 %v2178, 0.01
        %v2243 = vmul.f32 %v2183, 0.01
        %v2244 = vmul.f32 %v2186, 0.01
        %v2245 = vmul.f32 %v2191, 0.01
        %v2246 = vmul.f32 %v2194, 0.01
        %v2247 = vmul.f32 %v2199, 0.01
        %v2248 = vmul.f32 %v2202, 0.01
        %v2249 = vmul.f32 %v2207, 0.01
        %v2250 = vmul.f32 %v2210, 0.01
        %v2251 = vmul.f32 %v2215, 0.01
        %v2252 = vmul.f32 %v2218, 0.01
        %v2253 = vmax.f32 %v2095, %v2221
        %v2254 = vmax.f32 %v2098, %v2222
        %v2255 = vmax.f32 %v2103, %v2223
        %v2256 = vmax.f32 %v2106, %v2224
        %v2257 = vmax.f32 %v2111, %v2225
        %v2258 = vmax.f32 %v2114, %v2226
        %v2259 = vmax.f32 %v2119, %v2227
        %v2260 = vmax.f32 %v2122, %v2228
        %v2261 = vmax.f32 %v2127, %v2229
        %v2262 = vmax.f32 %v2130, %v2230
        %v2263 = vmax.f32 %v2135, %v2231
        %v2264 = vmax.f32 %v2138, %v2232
        %v2265 = vmax.f32 %v2143, %v2233
        %v2266 = vmax.f32 %v2146, %v2234
        %v2267 = vmax.f32 %v2151, %v2235
        %v2268 = vmax.f32 %v2154, %v2236
        %v2269 = vmax.f32 %v2159, %v2237
        %v2270 = vmax.f32 %v2162, %v2238
        %v2271 = vmax.f32 %v2167, %v2239
        %v2272 = vmax.f32 %v2170, %v2240
        %v2273 = vmax.f32 %v2175, %v2241
        %v2274 = vmax.f32 %v2178, %v2242
        %v2275 = vmax.f32 %v2183, %v2243
        %v2276 = vmax.f32 %v2186, %v2244
        %v2277 = vmax.f32 %v2191, %v2245
        %v2278 = vmax.f32 %v2194, %v2246
        %v2279 = vmax.f32 %v2199, %v2247
        %v2280 = vmax.f32 %v2202, %v2248
        %v2281 = vmax.f32 %v2207, %v2249
        %v2282 = vmax.f32 %v2210, %v2250
        %v2283 = vmax.f32 %v2215, %v2251
        %v2284 = vmax.f32 %v2218, %v2252
        %v2285 = vpack.c.bf16 %v2254, %v2253
        %v2286 = vpack.c.bf16 %v2256, %v2255
        %v2287 = vpack.c.bf16 %v2258, %v2257
        %v2288 = vpack.c.bf16 %v2260, %v2259
        %v2289 = vpack.c.bf16 %v2262, %v2261
        %v2290 = vpack.c.bf16 %v2264, %v2263
        %v2291 = vpack.c.bf16 %v2266, %v2265
        %v2292 = vpack.c.bf16 %v2268, %v2267
        %v2293 = vpack.c.bf16 %v2270, %v2269
        %v2294 = vpack.c.bf16 %v2272, %v2271
        %v2295 = vpack.c.bf16 %v2274, %v2273
        %v2296 = vpack.c.bf16 %v2276, %v2275
        %v2297 = vpack.c.bf16 %v2278, %v2277
        %v2298 = vpack.c.bf16 %v2280, %v2279
        %v2299 = vpack.c.bf16 %v2282, %v2281
        %v2300 = vpack.c.bf16 %v2284, %v2283
        %v2301 = vld [vmem:[%s5] sm:$0xff]
        %v2302 = vld [vmem:[%s5 + $0x8] sm:$0xff]
        %v2303 = vld [vmem:[%s5 + $0x10] sm:$0xff]
        %v2304 = vld [vmem:[%s5 + $0x18] sm:$0xff]
        %v2305 = vld [vmem:[%s5 + $0x20] sm:$0xff]
        %v2306 = vld [vmem:[%s5 + $0x28] sm:$0xff]
        %v2307 = vld [vmem:[%s5 + $0x30] sm:$0xff]
        %v2308 = vld [vmem:[%s5 + $0x38] sm:$0xff]
        %v2309 = vld [vmem:[%s6] sm:$0xf]
        %v2311 = vlaneseq
        %v2312 = vshrl.u32 %v2311, 7
        %v2313 = vsub.s32 0, %v2312
        %v2314 = vrot.slane %v2309, %v2313
        %v2315 = vlaneseq
        %v2316 = vshrl.u32 %v2315, 7
        %v2317 = vsub.s32 1, %v2316
        %v2318 = vrot.slane %v2309, %v2317
        %v2319 = vlaneseq
        %v2320 = vshrl.u32 %v2319, 7
        %v2321 = vsub.s32 2, %v2320
        %v2322 = vrot.slane %v2309, %v2321
        %v2323 = vlaneseq
        %v2324 = vshrl.u32 %v2323, 7
        %v2325 = vsub.s32 3, %v2324
        %v2326 = vrot.slane %v2309, %v2325
        %v2339 = vunpack.c.l.b16 %v2301
        %v2340 = vunpack.c.h.b16 %v2301
        %v2341 = vunpack.c.l.b16 %v2302
        %v2342 = vunpack.c.h.b16 %v2302
        %v2343 = vunpack.c.l.b16 %v2303
        %v2344 = vunpack.c.h.b16 %v2303
        %v2345 = vunpack.c.l.b16 %v2304
        %v2346 = vunpack.c.h.b16 %v2304
        %v2347 = vunpack.c.l.b16 %v2305
        %v2348 = vunpack.c.h.b16 %v2305
        %v2349 = vunpack.c.l.b16 %v2306
        %v2350 = vunpack.c.h.b16 %v2306
        %v2351 = vunpack.c.l.b16 %v2307
        %v2352 = vunpack.c.h.b16 %v2307
        %v2353 = vunpack.c.l.b16 %v2308
        %v2354 = vunpack.c.h.b16 %v2308
        %v2355 = vpack.c.b16 %v2343, %v2339
        %v2356 = vpack.c.b16 %v2344, %v2340
        %v2357 = vpack.c.b16 %v2345, %v2341
        %v2358 = vpack.c.b16 %v2346, %v2342
        %v2359 = vpack.c.b16 %v2351, %v2347
        %v2360 = vpack.c.b16 %v2352, %v2348
        %v2361 = vpack.c.b16 %v2353, %v2349
        %v2362 = vpack.c.b16 %v2354, %v2350
        %v2372 = vsel %vm1069, %v2285, 0
        %v2375 = vsel %vm1069, %v2286, 0
        %v2378 = vsel %vm1069, %v2287, 0
        %v2381 = vsel %vm1069, %v2288, 0
        %v2384 = vsel %vm1069, %v2289, 0
        %v2387 = vsel %vm1069, %v2290, 0
        %v2390 = vsel %vm1069, %v2291, 0
        %v2393 = vsel %vm1069, %v2292, 0
        %v2396 = vsel %vm1069, %v2293, 0
        %v2399 = vsel %vm1069, %v2294, 0
        %v2402 = vsel %vm1069, %v2295, 0
        %v2405 = vsel %vm1069, %v2296, 0
        %v2408 = vsel %vm1069, %v2297, 0
        %v2411 = vsel %vm1069, %v2298, 0
        %v2414 = vsel %vm1069, %v2299, 0
        %v2417 = vsel %vm1069, %v2300, 0
        %2419 = vmatprep.subr.bf16.mxu0 0
        %2420 = vmatpush1.bf16.msra.mxu0 0
        %2421 = vmatprep.subr.bf16.mxu0 0
        %2422 = vmatpush1.bf16.msra.mxu0 0
        %2423 = vmatprep.subr.bf16.mxu0 0
        %2424 = vmatpush1.bf16.msra.mxu0 0
        %2425 = vmatprep.subr.bf16.mxu0 0
        %2426 = vmatpush1.bf16.msra.mxu0 0
        %2427 = vmatprep.subr.bf16.mxu0 0
        %2428 = vmatpush1.bf16.msra.mxu0 0
        %2429 = vmatprep.subr.bf16.mxu0 0
        %2430 = vmatpush1.bf16.msra.mxu0 0
        %2431 = vmatprep.subr.bf16.mxu0 %v2360
        %2432 = vmatpush1.bf16.msra.mxu0 %v2359
        %2433 = vmatprep.subr.bf16.mxu0 %v2356
        %2434 = vmatpush1.bf16.msra.mxu0 %v2355
        %2435 = vmatprep.subr.bf16.mxu0 0
        %2436 = vmatpush2.bf16.msra.mxu0 0
        %2437 = vmatprep.subr.bf16.mxu0 0
        %2438 = vmatpush2.bf16.msra.mxu0 0
        %2439 = vmatprep.subr.bf16.mxu0 0
        %2440 = vmatpush2.bf16.msra.mxu0 0
        %2441 = vmatprep.subr.bf16.mxu0 0
        %2442 = vmatpush2.bf16.msra.mxu0 0
        %2443 = vmatprep.subr.bf16.mxu0 0
        %2444 = vmatpush2.bf16.msra.mxu0 0
        %2445 = vmatprep.subr.bf16.mxu0 0
        %2446 = vmatpush2.bf16.msra.mxu0 0
        %2447 = vmatprep.subr.bf16.mxu0 0
        %2448 = vmatpush2.bf16.msra.mxu0 0
        %2449 = vmatprep.subr.bf16.mxu0 0
        %2450 = vmatpush2.bf16.msra.mxu0 0
        %2451 = vmatprep.mubr.bf16.mxu0 0
        %2452 = vmatmul.mubr.bf16.gmra.mxu0 %v2372
        %v2453 = vpop.f32.mrf.mxu0
        %v2454 = vadd.f32 %v2314, %v2453
        %v2455 = vpop.f32.mrf.mxu0
        %v2456 = vadd.f32 %v2318, %v2455
        %v2457 = vpop.f32.mrf.mxu0
        %v2458 = vadd.f32 %v2314, %v2457
        %v2459 = vpop.f32.mrf.mxu0
        %v2460 = vadd.f32 %v2318, %v2459
        %2461 = vmatprep.mubr.bf16.mxu0 0
        %2462 = vmatmul.mubr.bf16.gmra.mxu0 %v2375
        %v2463 = vpop.f32.mrf.mxu0
        %v2464 = vadd.f32 %v2314, %v2463
        %v2465 = vpop.f32.mrf.mxu0
        %v2466 = vadd.f32 %v2318, %v2465
        %v2467 = vpop.f32.mrf.mxu0
        %v2468 = vadd.f32 %v2314, %v2467
        %v2469 = vpop.f32.mrf.mxu0
        %v2470 = vadd.f32 %v2318, %v2469
        %2471 = vmatprep.mubr.bf16.mxu0 0
        %2472 = vmatmul.mubr.bf16.gmra.mxu0 %v2378
        %v2473 = vpop.f32.mrf.mxu0
        %v2474 = vadd.f32 %v2314, %v2473
        %v2475 = vpop.f32.mrf.mxu0
        %v2476 = vadd.f32 %v2318, %v2475
        %v2477 = vpop.f32.mrf.mxu0
        %v2478 = vadd.f32 %v2314, %v2477
        %v2479 = vpop.f32.mrf.mxu0
        %v2480 = vadd.f32 %v2318, %v2479
        %2481 = vmatprep.mubr.bf16.mxu0 0
        %2482 = vmatmul.mubr.bf16.gmra.mxu0 %v2381
        %v2483 = vpop.f32.mrf.mxu0
        %v2484 = vadd.f32 %v2314, %v2483
        %v2485 = vpop.f32.mrf.mxu0
        %v2486 = vadd.f32 %v2318, %v2485
        %v2487 = vpop.f32.mrf.mxu0
        %v2488 = vadd.f32 %v2314, %v2487
        %v2489 = vpop.f32.mrf.mxu0
        %v2490 = vadd.f32 %v2318, %v2489
        %2491 = vmatprep.mubr.bf16.mxu0 0
        %2492 = vmatmul.mubr.bf16.gmra.mxu0 %v2384
        %v2493 = vpop.f32.mrf.mxu0
        %v2494 = vadd.f32 %v2314, %v2493
        %v2495 = vpop.f32.mrf.mxu0
        %v2496 = vadd.f32 %v2318, %v2495
        %v2497 = vpop.f32.mrf.mxu0
        %v2498 = vadd.f32 %v2314, %v2497
        %v2499 = vpop.f32.mrf.mxu0
        %v2500 = vadd.f32 %v2318, %v2499
        %2501 = vmatprep.mubr.bf16.mxu0 0
        %2502 = vmatmul.mubr.bf16.gmra.mxu0 %v2387
        %v2503 = vpop.f32.mrf.mxu0
        %v2504 = vadd.f32 %v2314, %v2503
        %v2505 = vpop.f32.mrf.mxu0
        %v2506 = vadd.f32 %v2318, %v2505
        %v2507 = vpop.f32.mrf.mxu0
        %v2508 = vadd.f32 %v2314, %v2507
        %v2509 = vpop.f32.mrf.mxu0
        %v2510 = vadd.f32 %v2318, %v2509
        %2511 = vmatprep.mubr.bf16.mxu0 0
        %2512 = vmatmul.mubr.bf16.gmra.mxu0 %v2390
        %v2513 = vpop.f32.mrf.mxu0
        %v2514 = vadd.f32 %v2314, %v2513
        %v2515 = vpop.f32.mrf.mxu0
        %v2516 = vadd.f32 %v2318, %v2515
        %v2517 = vpop.f32.mrf.mxu0
        %v2518 = vadd.f32 %v2314, %v2517
        %v2519 = vpop.f32.mrf.mxu0
        %v2520 = vadd.f32 %v2318, %v2519
        %2521 = vmatprep.mubr.bf16.mxu0 0
        %2522 = vmatmul.mubr.bf16.gmra.mxu0 %v2393
        %v2523 = vpop.f32.mrf.mxu0
        %v2524 = vadd.f32 %v2314, %v2523
        %v2525 = vpop.f32.mrf.mxu0
        %v2526 = vadd.f32 %v2318, %v2525
        %v2527 = vpop.f32.mrf.mxu0
        %v2528 = vadd.f32 %v2314, %v2527
        %v2529 = vpop.f32.mrf.mxu0
        %v2530 = vadd.f32 %v2318, %v2529
        %2531 = vmatprep.mubr.bf16.mxu0 0
        %2532 = vmatmul.mubr.bf16.gmra.mxu0 %v2396
        %v2533 = vpop.f32.mrf.mxu0
        %v2534 = vadd.f32 %v2314, %v2533
        %v2535 = vpop.f32.mrf.mxu0
        %v2536 = vadd.f32 %v2318, %v2535
        %v2537 = vpop.f32.mrf.mxu0
        %v2538 = vadd.f32 %v2314, %v2537
        %v2539 = vpop.f32.mrf.mxu0
        %v2540 = vadd.f32 %v2318, %v2539
        %2541 = vmatprep.mubr.bf16.mxu0 0
        %2542 = vmatmul.mubr.bf16.gmra.mxu0 %v2399
        %v2543 = vpop.f32.mrf.mxu0
        %v2544 = vadd.f32 %v2314, %v2543
        %v2545 = vpop.f32.mrf.mxu0
        %v2546 = vadd.f32 %v2318, %v2545
        %v2547 = vpop.f32.mrf.mxu0
        %v2548 = vadd.f32 %v2314, %v2547
        %v2549 = vpop.f32.mrf.mxu0
        %v2550 = vadd.f32 %v2318, %v2549
        %2551 = vmatprep.mubr.bf16.mxu0 0
        %2552 = vmatmul.mubr.bf16.gmra.mxu0 %v2402
        %v2553 = vpop.f32.mrf.mxu0
        %v2554 = vadd.f32 %v2314, %v2553
        %v2555 = vpop.f32.mrf.mxu0
        %v2556 = vadd.f32 %v2318, %v2555
        %v2557 = vpop.f32.mrf.mxu0
        %v2558 = vadd.f32 %v2314, %v2557
        %v2559 = vpop.f32.mrf.mxu0
        %v2560 = vadd.f32 %v2318, %v2559
        %2561 = vmatprep.mubr.bf16.mxu0 0
        %2562 = vmatmul.mubr.bf16.gmra.mxu0 %v2405
        %v2563 = vpop.f32.mrf.mxu0
        %v2564 = vadd.f32 %v2314, %v2563
        %v2565 = vpop.f32.mrf.mxu0
        %v2566 = vadd.f32 %v2318, %v2565
        %v2567 = vpop.f32.mrf.mxu0
        %v2568 = vadd.f32 %v2314, %v2567
        %v2569 = vpop.f32.mrf.mxu0
        %v2570 = vadd.f32 %v2318, %v2569
        %2571 = vmatprep.mubr.bf16.mxu0 0
        %2572 = vmatmul.mubr.bf16.gmra.mxu0 %v2408
        %v2573 = vpop.f32.mrf.mxu0
        %v2574 = vadd.f32 %v2314, %v2573
        %v2575 = vpop.f32.mrf.mxu0
        %v2576 = vadd.f32 %v2318, %v2575
        %v2577 = vpop.f32.mrf.mxu0
        %v2578 = vadd.f32 %v2314, %v2577
        %v2579 = vpop.f32.mrf.mxu0
        %v2580 = vadd.f32 %v2318, %v2579
        %2581 = vmatprep.mubr.bf16.mxu0 0
        %2582 = vmatmul.mubr.bf16.gmra.mxu0 %v2411
        %v2583 = vpop.f32.mrf.mxu0
        %v2584 = vadd.f32 %v2314, %v2583
        %v2585 = vpop.f32.mrf.mxu0
        %v2586 = vadd.f32 %v2318, %v2585
        %v2587 = vpop.f32.mrf.mxu0
        %v2588 = vadd.f32 %v2314, %v2587
        %v2589 = vpop.f32.mrf.mxu0
        %v2590 = vadd.f32 %v2318, %v2589
        %2591 = vmatprep.mubr.bf16.mxu0 0
        %2592 = vmatmul.mubr.bf16.gmra.mxu0 %v2414
        %v2593 = vpop.f32.mrf.mxu0
        %v2594 = vadd.f32 %v2314, %v2593
        %v2595 = vpop.f32.mrf.mxu0
        %v2596 = vadd.f32 %v2318, %v2595
        %v2597 = vpop.f32.mrf.mxu0
        %v2598 = vadd.f32 %v2314, %v2597
        %v2599 = vpop.f32.mrf.mxu0
        %v2600 = vadd.f32 %v2318, %v2599
        %2601 = vmatprep.mubr.bf16.mxu0 0
        %2602 = vmatmul.mubr.bf16.gmra.mxu0 %v2417
        %v2603 = vpop.f32.mrf.mxu0
        %v2604 = vadd.f32 %v2314, %v2603
        %v2605 = vpop.f32.mrf.mxu0
        %v2606 = vadd.f32 %v2318, %v2605
        %v2607 = vpop.f32.mrf.mxu0
        %v2608 = vadd.f32 %v2314, %v2607
        %v2609 = vpop.f32.mrf.mxu0
        %v2610 = vadd.f32 %v2318, %v2609
        %2611 = vdwg.mxu0
        %2612 = vmatprep.subr.bf16.mxu0 0
        %2613 = vmatpush1.bf16.msra.mxu0 0
        %2614 = vmatprep.subr.bf16.mxu0 0
        %2615 = vmatpush1.bf16.msra.mxu0 0
        %2616 = vmatprep.subr.bf16.mxu0 0
        %2617 = vmatpush1.bf16.msra.mxu0 0
        %2618 = vmatprep.subr.bf16.mxu0 0
        %2619 = vmatpush1.bf16.msra.mxu0 0
        %2620 = vmatprep.subr.bf16.mxu0 0
        %2621 = vmatpush1.bf16.msra.mxu0 0
        %2622 = vmatprep.subr.bf16.mxu0 0
        %2623 = vmatpush1.bf16.msra.mxu0 0
        %2624 = vmatprep.subr.bf16.mxu0 %v2362
        %2625 = vmatpush1.bf16.msra.mxu0 %v2361
        %2626 = vmatprep.subr.bf16.mxu0 %v2358
        %2627 = vmatpush1.bf16.msra.mxu0 %v2357
        %2628 = vmatprep.subr.bf16.mxu0 0
        %2629 = vmatpush2.bf16.msra.mxu0 0
        %2630 = vmatprep.subr.bf16.mxu0 0
        %2631 = vmatpush2.bf16.msra.mxu0 0
        %2632 = vmatprep.subr.bf16.mxu0 0
        %2633 = vmatpush2.bf16.msra.mxu0 0
        %2634 = vmatprep.subr.bf16.mxu0 0
        %2635 = vmatpush2.bf16.msra.mxu0 0
        %2636 = vmatprep.subr.bf16.mxu0 0
        %2637 = vmatpush2.bf16.msra.mxu0 0
        %2638 = vmatprep.subr.bf16.mxu0 0
        %2639 = vmatpush2.bf16.msra.mxu0 0
        %2640 = vmatprep.subr.bf16.mxu0 0
        %2641 = vmatpush2.bf16.msra.mxu0 0
        %2642 = vmatprep.subr.bf16.mxu0 0
        %2643 = vmatpush2.bf16.msra.mxu0 0
        %2644 = vmatprep.mubr.bf16.mxu0 0
        %2645 = vmatmul.mubr.bf16.gmra.mxu0 %v2372
        %v2646 = vpop.f32.mrf.mxu0
        %v2647 = vadd.f32 %v2322, %v2646
        %v2648 = vpop.f32.mrf.mxu0
        %v2649 = vadd.f32 %v2326, %v2648
        %v2650 = vpop.f32.mrf.mxu0
        %v2651 = vadd.f32 %v2322, %v2650
        %v2652 = vpop.f32.mrf.mxu0
        %v2653 = vadd.f32 %v2326, %v2652
        %2654 = vmatprep.mubr.bf16.mxu0 0
        %2655 = vmatmul.mubr.bf16.gmra.mxu0 %v2375
        %v2656 = vpop.f32.mrf.mxu0
        %v2657 = vadd.f32 %v2322, %v2656
        %v2658 = vpop.f32.mrf.mxu0
        %v2659 = vadd.f32 %v2326, %v2658
        %v2660 = vpop.f32.mrf.mxu0
        %v2661 = vadd.f32 %v2322, %v2660
        %v2662 = vpop.f32.mrf.mxu0
        %v2663 = vadd.f32 %v2326, %v2662
        %2664 = vmatprep.mubr.bf16.mxu0 0
        %2665 = vmatmul.mubr.bf16.gmra.mxu0 %v2378
        %v2666 = vpop.f32.mrf.mxu0
        %v2667 = vadd.f32 %v2322, %v2666
        %v2668 = vpop.f32.mrf.mxu0
        %v2669 = vadd.f32 %v2326, %v2668
        %v2670 = vpop.f32.mrf.mxu0
        %v2671 = vadd.f32 %v2322, %v2670
        %v2672 = vpop.f32.mrf.mxu0
        %v2673 = vadd.f32 %v2326, %v2672
        %2674 = vmatprep.mubr.bf16.mxu0 0
        %2675 = vmatmul.mubr.bf16.gmra.mxu0 %v2381
        %v2676 = vpop.f32.mrf.mxu0
        %v2677 = vadd.f32 %v2322, %v2676
        %v2678 = vpop.f32.mrf.mxu0
        %v2679 = vadd.f32 %v2326, %v2678
        %v2680 = vpop.f32.mrf.mxu0
        %v2681 = vadd.f32 %v2322, %v2680
        %v2682 = vpop.f32.mrf.mxu0
        %v2683 = vadd.f32 %v2326, %v2682
        %2684 = vmatprep.mubr.bf16.mxu0 0
        %2685 = vmatmul.mubr.bf16.gmra.mxu0 %v2384
        %v2686 = vpop.f32.mrf.mxu0
        %v2687 = vadd.f32 %v2322, %v2686
        %v2688 = vpop.f32.mrf.mxu0
        %v2689 = vadd.f32 %v2326, %v2688
        %v2690 = vpop.f32.mrf.mxu0
        %v2691 = vadd.f32 %v2322, %v2690
        %v2692 = vpop.f32.mrf.mxu0
        %v2693 = vadd.f32 %v2326, %v2692
        %2694 = vmatprep.mubr.bf16.mxu0 0
        %2695 = vmatmul.mubr.bf16.gmra.mxu0 %v2387
        %v2696 = vpop.f32.mrf.mxu0
        %v2697 = vadd.f32 %v2322, %v2696
        %v2698 = vpop.f32.mrf.mxu0
        %v2699 = vadd.f32 %v2326, %v2698
        %v2700 = vpop.f32.mrf.mxu0
        %v2701 = vadd.f32 %v2322, %v2700
        %v2702 = vpop.f32.mrf.mxu0
        %v2703 = vadd.f32 %v2326, %v2702
        %2704 = vmatprep.mubr.bf16.mxu0 0
        %2705 = vmatmul.mubr.bf16.gmra.mxu0 %v2390
        %v2706 = vpop.f32.mrf.mxu0
        %v2707 = vadd.f32 %v2322, %v2706
        %v2708 = vpop.f32.mrf.mxu0
        %v2709 = vadd.f32 %v2326, %v2708
        %v2710 = vpop.f32.mrf.mxu0
        %v2711 = vadd.f32 %v2322, %v2710
        %v2712 = vpop.f32.mrf.mxu0
        %v2713 = vadd.f32 %v2326, %v2712
        %2714 = vmatprep.mubr.bf16.mxu0 0
        %2715 = vmatmul.mubr.bf16.gmra.mxu0 %v2393
        %v2716 = vpop.f32.mrf.mxu0
        %v2717 = vadd.f32 %v2322, %v2716
        %v2718 = vpop.f32.mrf.mxu0
        %v2719 = vadd.f32 %v2326, %v2718
        %v2720 = vpop.f32.mrf.mxu0
        %v2721 = vadd.f32 %v2322, %v2720
        %v2722 = vpop.f32.mrf.mxu0
        %v2723 = vadd.f32 %v2326, %v2722
        %2724 = vmatprep.mubr.bf16.mxu0 0
        %2725 = vmatmul.mubr.bf16.gmra.mxu0 %v2396
        %v2726 = vpop.f32.mrf.mxu0
        %v2727 = vadd.f32 %v2322, %v2726
        %v2728 = vpop.f32.mrf.mxu0
        %v2729 = vadd.f32 %v2326, %v2728
        %v2730 = vpop.f32.mrf.mxu0
        %v2731 = vadd.f32 %v2322, %v2730
        %v2732 = vpop.f32.mrf.mxu0
        %v2733 = vadd.f32 %v2326, %v2732
        %2734 = vmatprep.mubr.bf16.mxu0 0
        %2735 = vmatmul.mubr.bf16.gmra.mxu0 %v2399
        %v2736 = vpop.f32.mrf.mxu0
        %v2737 = vadd.f32 %v2322, %v2736
        %v2738 = vpop.f32.mrf.mxu0
        %v2739 = vadd.f32 %v2326, %v2738
        %v2740 = vpop.f32.mrf.mxu0
        %v2741 = vadd.f32 %v2322, %v2740
        %v2742 = vpop.f32.mrf.mxu0
        %v2743 = vadd.f32 %v2326, %v2742
        %2744 = vmatprep.mubr.bf16.mxu0 0
        %2745 = vmatmul.mubr.bf16.gmra.mxu0 %v2402
        %v2746 = vpop.f32.mrf.mxu0
        %v2747 = vadd.f32 %v2322, %v2746
        %v2748 = vpop.f32.mrf.mxu0
        %v2749 = vadd.f32 %v2326, %v2748
        %v2750 = vpop.f32.mrf.mxu0
        %v2751 = vadd.f32 %v2322, %v2750
        %v2752 = vpop.f32.mrf.mxu0
        %v2753 = vadd.f32 %v2326, %v2752
        %2754 = vmatprep.mubr.bf16.mxu0 0
        %2755 = vmatmul.mubr.bf16.gmra.mxu0 %v2405
        %v2756 = vpop.f32.mrf.mxu0
        %v2757 = vadd.f32 %v2322, %v2756
        %v2758 = vpop.f32.mrf.mxu0
        %v2759 = vadd.f32 %v2326, %v2758
        %v2760 = vpop.f32.mrf.mxu0
        %v2761 = vadd.f32 %v2322, %v2760
        %v2762 = vpop.f32.mrf.mxu0
        %v2763 = vadd.f32 %v2326, %v2762
        %2764 = vmatprep.mubr.bf16.mxu0 0
        %2765 = vmatmul.mubr.bf16.gmra.mxu0 %v2408
        %v2766 = vpop.f32.mrf.mxu0
        %v2767 = vadd.f32 %v2322, %v2766
        %v2768 = vpop.f32.mrf.mxu0
        %v2769 = vadd.f32 %v2326, %v2768
        %v2770 = vpop.f32.mrf.mxu0
        %v2771 = vadd.f32 %v2322, %v2770
        %v2772 = vpop.f32.mrf.mxu0
        %v2773 = vadd.f32 %v2326, %v2772
        %2774 = vmatprep.mubr.bf16.mxu0 0
        %2775 = vmatmul.mubr.bf16.gmra.mxu0 %v2411
        %v2776 = vpop.f32.mrf.mxu0
        %v2777 = vadd.f32 %v2322, %v2776
        %v2778 = vpop.f32.mrf.mxu0
        %v2779 = vadd.f32 %v2326, %v2778
        %v2780 = vpop.f32.mrf.mxu0
        %v2781 = vadd.f32 %v2322, %v2780
        %v2782 = vpop.f32.mrf.mxu0
        %v2783 = vadd.f32 %v2326, %v2782
        %2784 = vmatprep.mubr.bf16.mxu0 0
        %2785 = vmatmul.mubr.bf16.gmra.mxu0 %v2414
        %v2786 = vpop.f32.mrf.mxu0
        %v2787 = vadd.f32 %v2322, %v2786
        %v2788 = vpop.f32.mrf.mxu0
        %v2789 = vadd.f32 %v2326, %v2788
        %v2790 = vpop.f32.mrf.mxu0
        %v2791 = vadd.f32 %v2322, %v2790
        %v2792 = vpop.f32.mrf.mxu0
        %v2793 = vadd.f32 %v2326, %v2792
        %2794 = vmatprep.mubr.bf16.mxu0 0
        %2795 = vmatmul.mubr.bf16.gmra.mxu0 %v2417
        %v2796 = vpop.f32.mrf.mxu0
        %v2797 = vadd.f32 %v2322, %v2796
        %v2798 = vpop.f32.mrf.mxu0
        %v2799 = vadd.f32 %v2326, %v2798
        %v2800 = vpop.f32.mrf.mxu0
        %v2801 = vadd.f32 %v2322, %v2800
        %v2802 = vpop.f32.mrf.mxu0
        %v2803 = vadd.f32 %v2326, %v2802
        %2804 = vdwg.mxu0
        %v2805 = vmul.f32 %v2454, 0.01
        %v2806 = vmul.f32 %v2456, 0.01
        %v2807 = vmul.f32 %v2647, 0.01
        %v2808 = vmul.f32 %v2649, 0.01
        %v2809 = vmul.f32 %v2458, 0.01
        %v2810 = vmul.f32 %v2460, 0.01
        %v2811 = vmul.f32 %v2651, 0.01
        %v2812 = vmul.f32 %v2653, 0.01
        %v2813 = vmul.f32 %v2464, 0.01
        %v2814 = vmul.f32 %v2466, 0.01
        %v2815 = vmul.f32 %v2657, 0.01
        %v2816 = vmul.f32 %v2659, 0.01
        %v2817 = vmul.f32 %v2468, 0.01
        %v2818 = vmul.f32 %v2470, 0.01
        %v2819 = vmul.f32 %v2661, 0.01
        %v2820 = vmul.f32 %v2663, 0.01
        %v2821 = vmul.f32 %v2474, 0.01
        %v2822 = vmul.f32 %v2476, 0.01
        %v2823 = vmul.f32 %v2667, 0.01
        %v2824 = vmul.f32 %v2669, 0.01
        %v2825 = vmul.f32 %v2478, 0.01
        %v2826 = vmul.f32 %v2480, 0.01
        %v2827 = vmul.f32 %v2671, 0.01
        %v2828 = vmul.f32 %v2673, 0.01
        %v2829 = vmul.f32 %v2484, 0.01
        %v2830 = vmul.f32 %v2486, 0.01
        %v2831 = vmul.f32 %v2677, 0.01
        %v2832 = vmul.f32 %v2679, 0.01
        %v2833 = vmul.f32 %v2488, 0.01
        %v2834 = vmul.f32 %v2490, 0.01
        %v2835 = vmul.f32 %v2681, 0.01
        %v2836 = vmul.f32 %v2683, 0.01
        %v2837 = vmul.f32 %v2494, 0.01
        %v2838 = vmul.f32 %v2496, 0.01
        %v2839 = vmul.f32 %v2687, 0.01
        %v2840 = vmul.f32 %v2689, 0.01
        %v2841 = vmul.f32 %v2498, 0.01
        %v2842 = vmul.f32 %v2500, 0.01
        %v2843 = vmul.f32 %v2691, 0.01
        %v2844 = vmul.f32 %v2693, 0.01
        %v2845 = vmul.f32 %v2504, 0.01
        %v2846 = vmul.f32 %v2506, 0.01
        %v2847 = vmul.f32 %v2697, 0.01
        %v2848 = vmul.f32 %v2699, 0.01
        %v2849 = vmul.f32 %v2508, 0.01
        %v2850 = vmul.f32 %v2510, 0.01
        %v2851 = vmul.f32 %v2701, 0.01
        %v2852 = vmul.f32 %v2703, 0.01
        %v2853 = vmul.f32 %v2514, 0.01
        %v2854 = vmul.f32 %v2516, 0.01
        %v2855 = vmul.f32 %v2707, 0.01
        %v2856 = vmul.f32 %v2709, 0.01
        %v2857 = vmul.f32 %v2518, 0.01
        %v2858 = vmul.f32 %v2520, 0.01
        %v2859 = vmul.f32 %v2711, 0.01
        %v2860 = vmul.f32 %v2713, 0.01
        %v2861 = vmul.f32 %v2524, 0.01
        %v2862 = vmul.f32 %v2526, 0.01
        %v2863 = vmul.f32 %v2717, 0.01
        %v2864 = vmul.f32 %v2719, 0.01
        %v2865 = vmul.f32 %v2528, 0.01
        %v2866 = vmul.f32 %v2530, 0.01
        %v2867 = vmul.f32 %v2721, 0.01
        %v2868 = vmul.f32 %v2723, 0.01
        %v2869 = vmul.f32 %v2534, 0.01
        %v2870 = vmul.f32 %v2536, 0.01
        %v2871 = vmul.f32 %v2727, 0.01
        %v2872 = vmul.f32 %v2729, 0.01
        %v2873 = vmul.f32 %v2538, 0.01
        %v2874 = vmul.f32 %v2540, 0.01
        %v2875 = vmul.f32 %v2731, 0.01
        %v2876 = vmul.f32 %v2733, 0.01
        %v2877 = vmul.f32 %v2544, 0.01
        %v2878 = vmul.f32 %v2546, 0.01
        %v2879 = vmul.f32 %v2737, 0.01
        %v2880 = vmul.f32 %v2739, 0.01
        %v2881 = vmul.f32 %v2548, 0.01
        %v2882 = vmul.f32 %v2550, 0.01
        %v2883 = vmul.f32 %v2741, 0.01
        %v2884 = vmul.f32 %v2743, 0.01
        %v2885 = vmul.f32 %v2554, 0.01
        %v2886 = vmul.f32 %v2556, 0.01
        %v2887 = vmul.f32 %v2747, 0.01
        %v2888 = vmul.f32 %v2749, 0.01
        %v2889 = vmul.f32 %v2558, 0.01
        %v2890 = vmul.f32 %v2560, 0.01
        %v2891 = vmul.f32 %v2751, 0.01
        %v2892 = vmul.f32 %v2753, 0.01
        %v2893 = vmul.f32 %v2564, 0.01
        %v2894 = vmul.f32 %v2566, 0.01
        %v2895 = vmul.f32 %v2757, 0.01
        %v2896 = vmul.f32 %v2759, 0.01
        %v2897 = vmul.f32 %v2568, 0.01
        %v2898 = vmul.f32 %v2570, 0.01
        %v2899 = vmul.f32 %v2761, 0.01
        %v2900 = vmul.f32 %v2763, 0.01
        %v2901 = vmul.f32 %v2574, 0.01
        %v2902 = vmul.f32 %v2576, 0.01
        %v2903 = vmul.f32 %v2767, 0.01
        %v2904 = vmul.f32 %v2769, 0.01
        %v2905 = vmul.f32 %v2578, 0.01
        %v2906 = vmul.f32 %v2580, 0.01
        %v2907 = vmul.f32 %v2771, 0.01
        %v2908 = vmul.f32 %v2773, 0.01
        %v2909 = vmul.f32 %v2584, 0.01
        %v2910 = vmul.f32 %v2586, 0.01
        %v2911 = vmul.f32 %v2777, 0.01
        %v2912 = vmul.f32 %v2779, 0.01
        %v2913 = vmul.f32 %v2588, 0.01
        %v2914 = vmul.f32 %v2590, 0.01
        %v2915 = vmul.f32 %v2781, 0.01
        %v2916 = vmul.f32 %v2783, 0.01
        %v2917 = vmul.f32 %v2594, 0.01
        %v2918 = vmul.f32 %v2596, 0.01
        %v2919 = vmul.f32 %v2787, 0.01
        %v2920 = vmul.f32 %v2789, 0.01
        %v2921 = vmul.f32 %v2598, 0.01
        %v2922 = vmul.f32 %v2600, 0.01
        %v2923 = vmul.f32 %v2791, 0.01
        %v2924 = vmul.f32 %v2793, 0.01
        %v2925 = vmul.f32 %v2604, 0.01
        %v2926 = vmul.f32 %v2606, 0.01
        %v2927 = vmul.f32 %v2797, 0.01
        %v2928 = vmul.f32 %v2799, 0.01
        %v2929 = vmul.f32 %v2608, 0.01
        %v2930 = vmul.f32 %v2610, 0.01
        %v2931 = vmul.f32 %v2801, 0.01
        %v2932 = vmul.f32 %v2803, 0.01
        %v2933 = vmax.f32 %v2454, %v2805
        %v2934 = vmax.f32 %v2456, %v2806
        %v2935 = vmax.f32 %v2647, %v2807
        %v2936 = vmax.f32 %v2649, %v2808
        %v2937 = vmax.f32 %v2458, %v2809
        %v2938 = vmax.f32 %v2460, %v2810
        %v2939 = vmax.f32 %v2651, %v2811
        %v2940 = vmax.f32 %v2653, %v2812
        %v2941 = vmax.f32 %v2464, %v2813
        %v2942 = vmax.f32 %v2466, %v2814
        %v2943 = vmax.f32 %v2657, %v2815
        %v2944 = vmax.f32 %v2659, %v2816
        %v2945 = vmax.f32 %v2468, %v2817
        %v2946 = vmax.f32 %v2470, %v2818
        %v2947 = vmax.f32 %v2661, %v2819
        %v2948 = vmax.f32 %v2663, %v2820
        %v2949 = vmax.f32 %v2474, %v2821
        %v2950 = vmax.f32 %v2476, %v2822
        %v2951 = vmax.f32 %v2667, %v2823
        %v2952 = vmax.f32 %v2669, %v2824
        %v2953 = vmax.f32 %v2478, %v2825
        %v2954 = vmax.f32 %v2480, %v2826
        %v2955 = vmax.f32 %v2671, %v2827
        %v2956 = vmax.f32 %v2673, %v2828
        %v2957 = vmax.f32 %v2484, %v2829
        %v2958 = vmax.f32 %v2486, %v2830
        %v2959 = vmax.f32 %v2677, %v2831
        %v2960 = vmax.f32 %v2679, %v2832
        %v2961 = vmax.f32 %v2488, %v2833
        %v2962 = vmax.f32 %v2490, %v2834
        %v2963 = vmax.f32 %v2681, %v2835
        %v2964 = vmax.f32 %v2683, %v2836
        %v2965 = vmax.f32 %v2494, %v2837
        %v2966 = vmax.f32 %v2496, %v2838
        %v2967 = vmax.f32 %v2687, %v2839
        %v2968 = vmax.f32 %v2689, %v2840
        %v2969 = vmax.f32 %v2498, %v2841
        %v2970 = vmax.f32 %v2500, %v2842
        %v2971 = vmax.f32 %v2691, %v2843
        %v2972 = vmax.f32 %v2693, %v2844
        %v2973 = vmax.f32 %v2504, %v2845
        %v2974 = vmax.f32 %v2506, %v2846
        %v2975 = vmax.f32 %v2697, %v2847
        %v2976 = vmax.f32 %v2699, %v2848
        %v2977 = vmax.f32 %v2508, %v2849
        %v2978 = vmax.f32 %v2510, %v2850
        %v2979 = vmax.f32 %v2701, %v2851
        %v2980 = vmax.f32 %v2703, %v2852
        %v2981 = vmax.f32 %v2514, %v2853
        %v2982 = vmax.f32 %v2516, %v2854
        %v2983 = vmax.f32 %v2707, %v2855
        %v2984 = vmax.f32 %v2709, %v2856
        %v2985 = vmax.f32 %v2518, %v2857
        %v2986 = vmax.f32 %v2520, %v2858
        %v2987 = vmax.f32 %v2711, %v2859
        %v2988 = vmax.f32 %v2713, %v2860
        %v2989 = vmax.f32 %v2524, %v2861
        %v2990 = vmax.f32 %v2526, %v2862
        %v2991 = vmax.f32 %v2717, %v2863
        %v2992 = vmax.f32 %v2719, %v2864
        %v2993 = vmax.f32 %v2528, %v2865
        %v2994 = vmax.f32 %v2530, %v2866
        %v2995 = vmax.f32 %v2721, %v2867
        %v2996 = vmax.f32 %v2723, %v2868
        %v2997 = vmax.f32 %v2534, %v2869
        %v2998 = vmax.f32 %v2536, %v2870
        %v2999 = vmax.f32 %v2727, %v2871
        %v3000 = vmax.f32 %v2729, %v2872
        %v3001 = vmax.f32 %v2538, %v2873
        %v3002 = vmax.f32 %v2540, %v2874
        %v3003 = vmax.f32 %v2731, %v2875
        %v3004 = vmax.f32 %v2733, %v2876
        %v3005 = vmax.f32 %v2544, %v2877
        %v3006 = vmax.f32 %v2546, %v2878
        %v3007 = vmax.f32 %v2737, %v2879
        %v3008 = vmax.f32 %v2739, %v2880
        %v3009 = vmax.f32 %v2548, %v2881
        %v3010 = vmax.f32 %v2550, %v2882
        %v3011 = vmax.f32 %v2741, %v2883
        %v3012 = vmax.f32 %v2743, %v2884
        %v3013 = vmax.f32 %v2554, %v2885
        %v3014 = vmax.f32 %v2556, %v2886
        %v3015 = vmax.f32 %v2747, %v2887
        %v3016 = vmax.f32 %v2749, %v2888
        %v3017 = vmax.f32 %v2558, %v2889
        %v3018 = vmax.f32 %v2560, %v2890
        %v3019 = vmax.f32 %v2751, %v2891
        %v3020 = vmax.f32 %v2753, %v2892
        %v3021 = vmax.f32 %v2564, %v2893
        %v3022 = vmax.f32 %v2566, %v2894
        %v3023 = vmax.f32 %v2757, %v2895
        %v3024 = vmax.f32 %v2759, %v2896
        %v3025 = vmax.f32 %v2568, %v2897
        %v3026 = vmax.f32 %v2570, %v2898
        %v3027 = vmax.f32 %v2761, %v2899
        %v3028 = vmax.f32 %v2763, %v2900
        %v3029 = vmax.f32 %v2574, %v2901
        %v3030 = vmax.f32 %v2576, %v2902
        %v3031 = vmax.f32 %v2767, %v2903
        %v3032 = vmax.f32 %v2769, %v2904
        %v3033 = vmax.f32 %v2578, %v2905
        %v3034 = vmax.f32 %v2580, %v2906
        %v3035 = vmax.f32 %v2771, %v2907
        %v3036 = vmax.f32 %v2773, %v2908
        %v3037 = vmax.f32 %v2584, %v2909
        %v3038 = vmax.f32 %v2586, %v2910
        %v3039 = vmax.f32 %v2777, %v2911
        %v3040 = vmax.f32 %v2779, %v2912
        %v3041 = vmax.f32 %v2588, %v2913
        %v3042 = vmax.f32 %v2590, %v2914
        %v3043 = vmax.f32 %v2781, %v2915
        %v3044 = vmax.f32 %v2783, %v2916
        %v3045 = vmax.f32 %v2594, %v2917
        %v3046 = vmax.f32 %v2596, %v2918
        %v3047 = vmax.f32 %v2787, %v2919
        %v3048 = vmax.f32 %v2789, %v2920
        %v3049 = vmax.f32 %v2598, %v2921
        %v3050 = vmax.f32 %v2600, %v2922
        %v3051 = vmax.f32 %v2791, %v2923
        %v3052 = vmax.f32 %v2793, %v2924
        %v3053 = vmax.f32 %v2604, %v2925
        %v3054 = vmax.f32 %v2606, %v2926
        %v3055 = vmax.f32 %v2797, %v2927
        %v3056 = vmax.f32 %v2799, %v2928
        %v3057 = vmax.f32 %v2608, %v2929
        %v3058 = vmax.f32 %v2610, %v2930
        %v3059 = vmax.f32 %v2801, %v2931
        %v3060 = vmax.f32 %v2803, %v2932
        %3061 = vst [vmem:[%s274] sm:$0xff] %v2933
        %3062 = vst [vmem:[%s274 + $0x8] sm:$0xff] %v2934
        %3063 = vst [vmem:[%s274 + $0x10] sm:$0xff] %v2935
        %3064 = vst [vmem:[%s274 + $0x18] sm:$0xff] %v2936
        %3065 = vst [vmem:[%s274 + $0x20] sm:$0xff] %v2937
        %3066 = vst [vmem:[%s274 + $0x28] sm:$0xff] %v2938
        %3067 = vst [vmem:[%s274 + $0x30] sm:$0xff] %v2939
        %3068 = vst [vmem:[%s274 + $0x38] sm:$0xff] %v2940
        %3069 = vst [vmem:[%s274 + $0x40] sm:$0xff] %v2941
        %3070 = vst [vmem:[%s274 + $0x48] sm:$0xff] %v2942
        %3071 = vst [vmem:[%s274 + $0x50] sm:$0xff] %v2943
        %3072 = vst [vmem:[%s274 + $0x58] sm:$0xff] %v2944
        %3073 = vst [vmem:[%s274 + $0x60] sm:$0xff] %v2945
        %3074 = vst [vmem:[%s274 + $0x68] sm:$0xff] %v2946
        %3075 = vst [vmem:[%s274 + $0x70] sm:$0xff] %v2947
        %3076 = vst [vmem:[%s274 + $0x78] sm:$0xff] %v2948
        %3077 = vst [vmem:[%s274 + $0x80] sm:$0xff] %v2949
        %3078 = vst [vmem:[%s274 + $0x88] sm:$0xff] %v2950
        %3079 = vst [vmem:[%s274 + $0x90] sm:$0xff] %v2951
        %3080 = vst [vmem:[%s274 + $0x98] sm:$0xff] %v2952
        %3081 = vst [vmem:[%s274 + $0xa0] sm:$0xff] %v2953
        %3082 = vst [vmem:[%s274 + $0xa8] sm:$0xff] %v2954
        %3083 = vst [vmem:[%s274 + $0xb0] sm:$0xff] %v2955
        %3084 = vst [vmem:[%s274 + $0xb8] sm:$0xff] %v2956
        %3085 = vst [vmem:[%s274 + $0xc0] sm:$0xff] %v2957
        %3086 = vst [vmem:[%s274 + $0xc8] sm:$0xff] %v2958
        %3087 = vst [vmem:[%s274 + $0xd0] sm:$0xff] %v2959
        %3088 = vst [vmem:[%s274 + $0xd8] sm:$0xff] %v2960
        %3089 = vst [vmem:[%s274 + $0xe0] sm:$0xff] %v2961
        %3090 = vst [vmem:[%s274 + $0xe8] sm:$0xff] %v2962
        %3091 = vst [vmem:[%s274 + $0xf0] sm:$0xff] %v2963
        %3092 = vst [vmem:[%s274 + $0xf8] sm:$0xff] %v2964
        %3093 = vst [vmem:[%s274 + $0x100] sm:$0xff] %v2965
        %3094 = vst [vmem:[%s274 + $0x108] sm:$0xff] %v2966
        %3095 = vst [vmem:[%s274 + $0x110] sm:$0xff] %v2967
        %3096 = vst [vmem:[%s274 + $0x118] sm:$0xff] %v2968
        %3097 = vst [vmem:[%s274 + $0x120] sm:$0xff] %v2969
        %3098 = vst [vmem:[%s274 + $0x128] sm:$0xff] %v2970
        %3099 = vst [vmem:[%s274 + $0x130] sm:$0xff] %v2971
        %3100 = vst [vmem:[%s274 + $0x138] sm:$0xff] %v2972
        %3101 = vst [vmem:[%s274 + $0x140] sm:$0xff] %v2973
        %3102 = vst [vmem:[%s274 + $0x148] sm:$0xff] %v2974
        %3103 = vst [vmem:[%s274 + $0x150] sm:$0xff] %v2975
        %3104 = vst [vmem:[%s274 + $0x158] sm:$0xff] %v2976
        %3105 = vst [vmem:[%s274 + $0x160] sm:$0xff] %v2977
        %3106 = vst [vmem:[%s274 + $0x168] sm:$0xff] %v2978
        %3107 = vst [vmem:[%s274 + $0x170] sm:$0xff] %v2979
        %3108 = vst [vmem:[%s274 + $0x178] sm:$0xff] %v2980
        %3109 = vst [vmem:[%s274 + $0x180] sm:$0xff] %v2981
        %3110 = vst [vmem:[%s274 + $0x188] sm:$0xff] %v2982
        %3111 = vst [vmem:[%s274 + $0x190] sm:$0xff] %v2983
        %3112 = vst [vmem:[%s274 + $0x198] sm:$0xff] %v2984
        %3113 = vst [vmem:[%s274 + $0x1a0] sm:$0xff] %v2985
        %3114 = vst [vmem:[%s274 + $0x1a8] sm:$0xff] %v2986
        %3115 = vst [vmem:[%s274 + $0x1b0] sm:$0xff] %v2987
        %3116 = vst [vmem:[%s274 + $0x1b8] sm:$0xff] %v2988
        %3117 = vst [vmem:[%s274 + $0x1c0] sm:$0xff] %v2989
        %3118 = vst [vmem:[%s274 + $0x1c8] sm:$0xff] %v2990
        %3119 = vst [vmem:[%s274 + $0x1d0] sm:$0xff] %v2991
        %3120 = vst [vmem:[%s274 + $0x1d8] sm:$0xff] %v2992
        %3121 = vst [vmem:[%s274 + $0x1e0] sm:$0xff] %v2993
        %3122 = vst [vmem:[%s274 + $0x1e8] sm:$0xff] %v2994
        %3123 = vst [vmem:[%s274 + $0x1f0] sm:$0xff] %v2995
        %3124 = vst [vmem:[%s274 + $0x1f8] sm:$0xff] %v2996
        %3125 = vst [vmem:[%s274 + $0x200] sm:$0xff] %v2997
        %3126 = vst [vmem:[%s274 + $0x208] sm:$0xff] %v2998
        %3127 = vst [vmem:[%s274 + $0x210] sm:$0xff] %v2999
        %3128 = vst [vmem:[%s274 + $0x218] sm:$0xff] %v3000
        %3129 = vst [vmem:[%s274 + $0x220] sm:$0xff] %v3001
        %3130 = vst [vmem:[%s274 + $0x228] sm:$0xff] %v3002
        %3131 = vst [vmem:[%s274 + $0x230] sm:$0xff] %v3003
        %3132 = vst [vmem:[%s274 + $0x238] sm:$0xff] %v3004
        %3133 = vst [vmem:[%s274 + $0x240] sm:$0xff] %v3005
        %3134 = vst [vmem:[%s274 + $0x248] sm:$0xff] %v3006
        %3135 = vst [vmem:[%s274 + $0x250] sm:$0xff] %v3007
        %3136 = vst [vmem:[%s274 + $0x258] sm:$0xff] %v3008
        %3137 = vst [vmem:[%s274 + $0x260] sm:$0xff] %v3009
        %3138 = vst [vmem:[%s274 + $0x268] sm:$0xff] %v3010
        %3139 = vst [vmem:[%s274 + $0x270] sm:$0xff] %v3011
        %3140 = vst [vmem:[%s274 + $0x278] sm:$0xff] %v3012
        %3141 = vst [vmem:[%s274 + $0x280] sm:$0xff] %v3013
        %3142 = vst [vmem:[%s274 + $0x288] sm:$0xff] %v3014
        %3143 = vst [vmem:[%s274 + $0x290] sm:$0xff] %v3015
        %3144 = vst [vmem:[%s274 + $0x298] sm:$0xff] %v3016
        %3145 = vst [vmem:[%s274 + $0x2a0] sm:$0xff] %v3017
        %3146 = vst [vmem:[%s274 + $0x2a8] sm:$0xff] %v3018
        %3147 = vst [vmem:[%s274 + $0x2b0] sm:$0xff] %v3019
        %3148 = vst [vmem:[%s274 + $0x2b8] sm:$0xff] %v3020
        %3149 = vst [vmem:[%s274 + $0x2c0] sm:$0xff] %v3021
        %3150 = vst [vmem:[%s274 + $0x2c8] sm:$0xff] %v3022
        %3151 = vst [vmem:[%s274 + $0x2d0] sm:$0xff] %v3023
        %3152 = vst [vmem:[%s274 + $0x2d8] sm:$0xff] %v3024
        %3153 = vst [vmem:[%s274 + $0x2e0] sm:$0xff] %v3025
        %3154 = vst [vmem:[%s274 + $0x2e8] sm:$0xff] %v3026
        %3155 = vst [vmem:[%s274 + $0x2f0] sm:$0xff] %v3027
        %3156 = vst [vmem:[%s274 + $0x2f8] sm:$0xff] %v3028
        %3157 = vst [vmem:[%s274 + $0x300] sm:$0xff] %v3029
        %3158 = vst [vmem:[%s274 + $0x308] sm:$0xff] %v3030
        %3159 = vst [vmem:[%s274 + $0x310] sm:$0xff] %v3031
        %3160 = vst [vmem:[%s274 + $0x318] sm:$0xff] %v3032
        %3161 = vst [vmem:[%s274 + $0x320] sm:$0xff] %v3033
        %3162 = vst [vmem:[%s274 + $0x328] sm:$0xff] %v3034
        %3163 = vst [vmem:[%s274 + $0x330] sm:$0xff] %v3035
        %3164 = vst [vmem:[%s274 + $0x338] sm:$0xff] %v3036
        %3165 = vst [vmem:[%s274 + $0x340] sm:$0xff] %v3037
        %3166 = vst [vmem:[%s274 + $0x348] sm:$0xff] %v3038
        %3167 = vst [vmem:[%s274 + $0x350] sm:$0xff] %v3039
        %3168 = vst [vmem:[%s274 + $0x358] sm:$0xff] %v3040
        %3169 = vst [vmem:[%s274 + $0x360] sm:$0xff] %v3041
        %3170 = vst [vmem:[%s274 + $0x368] sm:$0xff] %v3042
        %3171 = vst [vmem:[%s274 + $0x370] sm:$0xff] %v3043
        %3172 = vst [vmem:[%s274 + $0x378] sm:$0xff] %v3044
        %3173 = vst [vmem:[%s274 + $0x380] sm:$0xff] %v3045
        %3174 = vst [vmem:[%s274 + $0x388] sm:$0xff] %v3046
        %3175 = vst [vmem:[%s274 + $0x390] sm:$0xff] %v3047
        %3176 = vst [vmem:[%s274 + $0x398] sm:$0xff] %v3048
        %3177 = vst [vmem:[%s274 + $0x3a0] sm:$0xff] %v3049
        %3178 = vst [vmem:[%s274 + $0x3a8] sm:$0xff] %v3050
        %3179 = vst [vmem:[%s274 + $0x3b0] sm:$0xff] %v3051
        %3180 = vst [vmem:[%s274 + $0x3b8] sm:$0xff] %v3052
        %3181 = vst [vmem:[%s274 + $0x3c0] sm:$0xff] %v3053
        %3182 = vst [vmem:[%s274 + $0x3c8] sm:$0xff] %v3054
        %3183 = vst [vmem:[%s274 + $0x3d0] sm:$0xff] %v3055
        %3184 = vst [vmem:[%s274 + $0x3d8] sm:$0xff] %v3056
        %3185 = vst [vmem:[%s274 + $0x3e0] sm:$0xff] %v3057
        %3186 = vst [vmem:[%s274 + $0x3e8] sm:$0xff] %v3058
        %3187 = vst [vmem:[%s274 + $0x3f0] sm:$0xff] %v3059
        %3188 = vst [vmem:[%s274 + $0x3f8] sm:$0xff] %v3060
        %s3189 = sand.u32 %s181, 1
        %s3190 = scalar_lea.sflag [#allocation3], %s3189
        %s3191 = sand.u32 %s181, 1
        %s3192 = smul.addr %s3191, 1024
        %s3193 = scalar_lea.vmem [#allocation2], %s3192
        // Predicated region
        $region49: #{encoder_forward.1} parent=47 // pred_check
          %p3194 = pneg %p191
        $region50: #{encoder_forward.1} parent=47 // pred_check_branch
          %3196 = sbr.rel (%p3194) target = $region52
        $region51: #{encoder_forward.1} parent=47 // pred_region
          %s3197 = smul.u32 32, %s21
          %s3199 = ssub.s32 16384, 16384
          %3200 = vsyncadd %s3190, %s3199
          %s3201 = smul.addr %s3197, 4
          %s3202 = smul.addr %s3201, 128
          %s3203 = scalar_lea.hbm %s7, %s3202
          %s3204 = sshll.u32 %s3193, 4
          %s3205 = int_to_ptr.vmem [resolvable:$true] %s3204
          %3210 = dma.vmem_to_hbm [thread:$0]  %s3205, 16384, %s3203, %s3190, 512, 512, 32
        $region52: #{encoder_forward.1} parent=47 // pred_fallthru
          _
      $region48: #{encoder_forward.1} parent=5 // pred_fallthru
        _
      %p3211 = scmp.le.s32.totalorder 2, %s16
      // Predicated region
      $region53: #{encoder_forward.1} parent=5 // pred_check
        %p3212 = pneg %p3211
      $region54: #{encoder_forward.1} parent=5 // pred_check_branch
        %3214 = sbr.rel (%p3212) target = $region56
      $region55: #{encoder_forward.1} parent=5 // pred_region
        %s3215 = ssub.s32 %s16, 2
        // Predicated region
        $region57: #{encoder_forward.1} parent=55 // pred_check
          %p3216 = pneg %p197
        $region58: #{encoder_forward.1} parent=55 // pred_check_branch
          %3218 = sbr.rel (%p3216) target = $region60
        $region59: #{encoder_forward.1} parent=55 // pred_region
          %s3219 = sand.u32 %s182, 1
          %s3220 = scalar_lea.sflag [#allocation3], %s3219
          %s3221 = sand.u32 %s182, 1
          %s3222 = smul.addr %s3221, 1024
          %s3223 = scalar_lea.vmem [#allocation2], %s3222
          %3224 = dma.done %s3220, 16384
        $region60: #{encoder_forward.1} parent=55 // pred_fallthru
          _
      $region56: #{encoder_forward.1} parent=5 // pred_fallthru
        _
    $region6: #{encoder_forward.1} parent=1 // loop_footer
      %s20 = sadd.s32 1, %s16
    $region7: #{encoder_forward.1} parent=1 // loop_footer_branch
      %15 = sbr.rel target = $region3
    $region8: #{encoder_forward.1} parent=1 // loop_exit
      _
    %3225 = vsyncpa [#allocation3], 1
    %s3226 = scalar_lea.sflag [#allocation3], 1
    %3227 = vsyncpa %s3226, 1

</llo_original>
